<compile_context>
chip_gen: v7x
topology: tpu7x:2x2x1
jax: 0.10.0
libtpu: 0.0.40
codegen_flags: <defaults>
</compile_context>

<pallas_src>
import jax
import jax.numpy as jnp
from jax.experimental import pallas as pl
from jax.experimental.pallas import tpu as pltpu


def _decoder_kernel(x_ref, z_ref, h0_ref, c0_ref,
                    wx_ref, wz_ref, whh_ref, b_ref, wo_ref, bo_ref,
                    y_ref, hf_ref, cf_ref):
    """Fused LSTM recurrence + output projection, single invocation.

    x_ref:  (B, T, D_x)  batch-first (as PyTorch hands it over)
    z_ref:  (B, T, D_z)
    h0/c0:  (1, B, H)
    wx/wz:  (D_x, 4H) / (D_z, 4H)   (split W_ih^T, concat folded away)
    whh:    (H, 4H)   (W_hh^T)
    b:      (1, 4H)   (b_ih + b_hh fused)
    wo:     (H, D_out) (W_out^T), bo: (1, D_out)
    y_ref:  (B, T, D_out) batch-first
    hf/cf:  (1, B, H)
    """
    B, T, D_x = x_ref.shape
    D_z = z_ref.shape[2]
    H = h0_ref.shape[2]
    H4 = 4 * H
    D_out = y_ref.shape[2]
    hi = jax.lax.Precision.HIGHEST

    # (1) Hoisted input projection + fused bias: two big (B*T, D) matmuls
    #     instead of T tiny ones inside the serial loop (concat folded into
    #     the split weights).
    x2 = x_ref[...].reshape(B * T, D_x)
    z2 = z_ref[...].reshape(B * T, D_z)
    gx_bm = (jnp.dot(x2, wx_ref[...],
                     preferred_element_type=jnp.float32, precision=hi)
             + jnp.dot(z2, wz_ref[...],
                       preferred_element_type=jnp.float32, precision=hi)
             + b_ref[...])                                  # (B*T, 4H)
    gx3 = gx_bm.reshape(B, T, H4)                           # batch-major

    whh = whh_ref[...]                                      # read once
    # TODO(synk): hold whh resident in the MXU via pltpu.matmul_push_rhs /
    # matmul_acc_lhs if a Mosaic dump shows the unrolled jnp.dot re-pushing
    # the RHS every step.

    # Constant gate-selection lane mask, hoisted: lanes [2H,3H) are gate g
    # (tanh); the rest (i,f,o) get sigmoid.
    lane = jax.lax.broadcasted_iota(jnp.int32, (B, H4), 1)
    g_lanes = (lane >= 2 * H) & (lane < 3 * H)

    h = h0_ref[0]
    c = c0_ref[0]
    hs = []

    # (2) Serial recurrence, fully unrolled (T small & static): only the
    #     recurrent matmul + gate math remain on the critical path.
    for t in range(T):
        gates = gx3[:, t, :] + jnp.dot(
            h, whh, preferred_element_type=jnp.float32, precision=hi)

        # Single EUP pass: sigmoid(x) = 0.5 * (1 + tanh(x/2)).
        pre = jnp.where(g_lanes, gates, 0.5 * gates)
        th = jnp.tanh(pre)
        act = jnp.where(g_lanes, th, 0.5 * (th + 1.0))

        i_g = act[:, 0 * H:1 * H]
        f_g = act[:, 1 * H:2 * H]
        g_g = act[:, 2 * H:3 * H]
        o_g = act[:, 3 * H:4 * H]

        c = f_g * c + i_g * g_g
        h = o_g * jnp.tanh(c)
        hs.append(h)                                        # stays in vregs

    # (3) Batched output projection (nn.Linear): h history assembled
    #     batch-major in vregs (no VMEM scratch), one matmul, one slab store.
    h_bm = jnp.stack(hs, axis=1).reshape(B * T, H)          # (B*T, H)
    y_bm = (jnp.dot(h_bm, wo_ref[...],
                    preferred_element_type=jnp.float32, precision=hi)
            + bo_ref[...])                                  # (B*T, D_out)
    y_ref[...] = y_bm.reshape(B, T, D_out).astype(y_ref.dtype)
    hf_ref[0] = h
    cf_ref[0] = c


def prepare_decoder_params(params, d_x):
    """One-time weight prep (transpose / cast / bias fuse / W_ih split).

    params = (weight_ih_l0, weight_hh_l0, bias_ih_l0, bias_hh_l0,
              linear.weight, linear.bias) in PyTorch layouts.
    """
    w_ih, w_hh, b_ih, b_hh, w_out, b_out = params
    H = w_hh.shape[1]
    D_out = w_out.shape[0]

    w_ih_t = jnp.transpose(w_ih).astype(jnp.float32)            # (D_in, 4H)
    wx_t = w_ih_t[:d_x]                                         # (D_x, 4H)
    wz_t = w_ih_t[d_x:]                                         # (D_z, 4H)
    whh_t = jnp.transpose(w_hh).astype(jnp.float32)             # (H, 4H)
    bias = (b_ih + b_hh).reshape(1, 4 * H).astype(jnp.float32)  # (1, 4H)
    wo_t = jnp.transpose(w_out).astype(jnp.float32)             # (H, D_out)
    bo = b_out.reshape(1, D_out).astype(jnp.float32)            # (1, D_out)
    return (wx_t, wz_t, whh_t, bias, wo_t, bo)


def decoder_forward(inp, hidden, z, prepped):
    """inp: (B, T, D_x), z: (B, T, D_z), hidden = (h0, c0) each (1, B, H).

    `prepped` comes from prepare_decoder_params (one-time). No per-call glue:
    the kernel consumes the batch-first inputs directly.
    """
    wx_t, wz_t, whh_t, bias, wo_t, bo = prepped
    h0, c0 = hidden

    B, T, _ = inp.shape
    H = whh_t.shape[0]
    D_out = wo_t.shape[1]

    inp = inp.astype(jnp.float32)          # no-ops when already f32
    z = z.astype(jnp.float32)
    h0 = h0.astype(jnp.float32)
    c0 = c0.astype(jnp.float32)

    vmem = lambda: pl.BlockSpec(memory_space=pltpu.MemorySpace.VMEM)

    y, h_n, c_n = pl.pallas_call(
        _decoder_kernel,
        out_shape=(
            jax.ShapeDtypeStruct((B, T, D_out), jnp.float32),
            jax.ShapeDtypeStruct((1, B, H), jnp.float32),
            jax.ShapeDtypeStruct((1, B, H), jnp.float32),
        ),
        in_specs=[vmem() for _ in range(10)],
        out_specs=(vmem(), vmem(), vmem()),
    )(inp, z, h0, c0, wx_t, wz_t, whh_t, bias, wo_t, bo)

    # TODO(synk): if B/H scale up, add a batch-parallel leading grid axis
    # (dimension_semantics=("parallel",)) to use both v7x TensorCores, budget
    # tiles against 64 MiB VMEM on v7x (128 MiB on v5e/v6e), and make the y
    # writeback lane-dense once B*D_out >= 128.
    return y, (h_n, c_n)


def _reference(inp, hidden, z, params):
    """Pure-JAX reference of the PyTorch forward (for correctness check)."""
    w_ih, w_hh, b_ih, b_hh, w_out, b_out = params
    h, c = hidden[0][0], hidden[1][0]
    x = jnp.concatenate([inp, z], axis=2)
    H = w_hh.shape[1]
    ys = []
    for t in range(x.shape[1]):
        g = x[:, t] @ w_ih.T + b_ih + h @ w_hh.T + b_hh
        i = jax.nn.sigmoid(g[:, 0 * H:1 * H])
        f = jax.nn.sigmoid(g[:, 1 * H:2 * H])
        gg = jnp.tanh(g[:, 2 * H:3 * H])
        o = jax.nn.sigmoid(g[:, 3 * H:4 * H])
        c = f * c + i * gg
        h = o * jnp.tanh(c)
        ys.append(h @ w_out.T + b_out)
    return jnp.stack(ys, axis=1), (h[None], c[None])


if __name__ == "__main__":
    # Small shapes implied by the forward: D_in = D_x + D_z.
    B, T = 2, 8
    D_x, D_z = 16, 16
    D_in = D_x + D_z          # LSTM input size
    H = 32                    # hidden size
    D_out = 8                 # linear output size

    key = jax.random.PRNGKey(0)
    ks = jax.random.split(key, 10)
    s = 1.0 / jnp.sqrt(H)     # PyTorch default init scale
    params = (
        jax.random.uniform(ks[0], (4 * H, D_in), jnp.float32, -s, s),  # weight_ih_l0
        jax.random.uniform(ks[1], (4 * H, H), jnp.float32, -s, s),     # weight_hh_l0
        jax.random.uniform(ks[2], (4 * H,), jnp.float32, -s, s),       # bias_ih_l0
        jax.random.uniform(ks[3], (4 * H,), jnp.float32, -s, s),       # bias_hh_l0
        jax.random.uniform(ks[4], (D_out, H), jnp.float32, -s, s),     # linear.weight
        jax.random.uniform(ks[5], (D_out,), jnp.float32, -s, s),       # linear.bias
    )
    prepped = prepare_decoder_params(params, D_x)   # one-time weight prep

    inp = jax.random.normal(ks[6], (B, T, D_x), jnp.float32)
    z = jax.random.normal(ks[7], (B, T, D_z), jnp.float32)
    h0 = jax.random.normal(ks[8], (1, B, H), jnp.float32)
    c0 = jax.random.normal(ks[9], (1, B, H), jnp.float32)

    out, (h_n, c_n) = decoder_forward(inp, (h0, c0), z, prepped)
    jax.block_until_ready((out, h_n, c_n))

    ref_out, (ref_h, ref_c) = _reference(inp, (h0, c0), z, params)
    assert out.shape == ref_out.shape and h_n.shape == ref_h.shape
    assert jnp.allclose(out, ref_out, atol=1e-4), "output mismatch"
    assert jnp.allclose(h_n, ref_h, atol=1e-4), "h_n mismatch"
    assert jnp.allclose(c_n, ref_c, atol=1e-4), "c_n mismatch"

    print("KERNEL_OK")
</pallas_src>

<mosaic_0001>
module attributes {stable_mosaic.version = 11 : i64} {
  func.func @_decoder_kernel(%arg0: memref<2x8x16xf32, #tpu.memory_space<vmem>>, %arg1: memref<2x8x16xf32, #tpu.memory_space<vmem>>, %arg2: memref<1x2x32xf32, #tpu.memory_space<vmem>>, %arg3: memref<1x2x32xf32, #tpu.memory_space<vmem>>, %arg4: memref<16x128xf32, #tpu.memory_space<vmem>>, %arg5: memref<16x128xf32, #tpu.memory_space<vmem>>, %arg6: memref<32x128xf32, #tpu.memory_space<vmem>>, %arg7: memref<1x128xf32, #tpu.memory_space<vmem>>, %arg8: memref<32x8xf32, #tpu.memory_space<vmem>>, %arg9: memref<1x8xf32, #tpu.memory_space<vmem>>, %arg10: memref<2x8x8xf32, #tpu.memory_space<vmem>>, %arg11: memref<1x2x32xf32, #tpu.memory_space<vmem>>, %arg12: memref<1x2x32xf32, #tpu.memory_space<vmem>>) attributes {dimension_semantics = [], scalar_prefetch = 0 : i64, scratch_operands = 0 : i64, tpu.core_type = #tpu.core_type<tc>} {
    %c0 = arith.constant 0 : index
    %c0_0 = arith.constant 0 : index
    %c0_1 = arith.constant 0 : index
    %0 = vector.load %arg0[%c0, %c0_0, %c0_1] : memref<2x8x16xf32, #tpu.memory_space<vmem>>, vector<2x8x16xf32>
    %1 = vector.shape_cast %0 : vector<2x8x16xf32> to vector<16x16xf32>
    %c0_2 = arith.constant 0 : index
    %c0_3 = arith.constant 0 : index
    %c0_4 = arith.constant 0 : index
    %2 = vector.load %arg1[%c0_2, %c0_3, %c0_4] : memref<2x8x16xf32, #tpu.memory_space<vmem>>, vector<2x8x16xf32>
    %3 = vector.shape_cast %2 : vector<2x8x16xf32> to vector<16x16xf32>
    %c0_5 = arith.constant 0 : index
    %c0_6 = arith.constant 0 : index
    %4 = vector.load %arg4[%c0_5, %c0_6] : memref<16x128xf32, #tpu.memory_space<vmem>>, vector<16x128xf32>
    %cst = arith.constant dense<0.000000e+00> : vector<16x128xf32>
    %5 = tpu.matmul %1, %4, %cst {dimension_numbers = #tpu.dot_dimension_numbers<[1], [0], [0], [1], [0, 0, 1, 1], [], []>, precision = #tpu.contract_precision<fp32>} : vector<16x16xf32>, vector<16x128xf32>, vector<16x128xf32> -> vector<16x128xf32>
    %c0_7 = arith.constant 0 : index
    %c0_8 = arith.constant 0 : index
    %6 = vector.load %arg5[%c0_7, %c0_8] : memref<16x128xf32, #tpu.memory_space<vmem>>, vector<16x128xf32>
    %cst_9 = arith.constant dense<0.000000e+00> : vector<16x128xf32>
    %7 = tpu.matmul %3, %6, %cst_9 {dimension_numbers = #tpu.dot_dimension_numbers<[1], [0], [0], [1], [0, 0, 1, 1], [], []>, precision = #tpu.contract_precision<fp32>} : vector<16x16xf32>, vector<16x128xf32>, vector<16x128xf32> -> vector<16x128xf32>
    %8 = arith.addf %5, %7 : vector<16x128xf32>
    %c0_10 = arith.constant 0 : index
    %c0_11 = arith.constant 0 : index
    %9 = vector.load %arg7[%c0_10, %c0_11] : memref<1x128xf32, #tpu.memory_space<vmem>>, vector<1x128xf32>
    %10 = vector.broadcast %9 : vector<1x128xf32> to vector<16x128xf32>
    %11 = arith.addf %8, %10 : vector<16x128xf32>
    %12 = vector.shape_cast %11 : vector<16x128xf32> to vector<2x8x128xf32>
    %c0_12 = arith.constant 0 : index
    %c0_13 = arith.constant 0 : index
    %13 = vector.load %arg6[%c0_12, %c0_13] : memref<32x128xf32, #tpu.memory_space<vmem>>, vector<32x128xf32>
    %14 = tpu.iota {dimensions = array<i32: 1>} : vector<2x128xi32>
    %c64_i32 = arith.constant 64 : i32
    %15 = vector.broadcast %c64_i32 : i32 to vector<2x128xi32>
    %16 = arith.cmpi sge, %14, %15 : vector<2x128xi32>
    %c96_i32 = arith.constant 96 : i32
    %17 = vector.broadcast %c96_i32 : i32 to vector<2x128xi32>
    %18 = arith.cmpi slt, %14, %17 : vector<2x128xi32>
    %19 = arith.andi %16, %18 : vector<2x128xi1>
    %c0_14 = arith.constant 0 : index
    %c0_15 = arith.constant 0 : index
    %c0_16 = arith.constant 0 : index
    %20 = vector.load %arg2[%c0_14, %c0_15, %c0_16] : memref<1x2x32xf32, #tpu.memory_space<vmem>>, vector<1x2x32xf32>
    %21 = vector.shape_cast %20 : vector<1x2x32xf32> to vector<2x32xf32>
    %c0_17 = arith.constant 0 : index
    %c0_18 = arith.constant 0 : index
    %c0_19 = arith.constant 0 : index
    %22 = vector.load %arg3[%c0_17, %c0_18, %c0_19] : memref<1x2x32xf32, #tpu.memory_space<vmem>>, vector<1x2x32xf32>
    %23 = vector.shape_cast %22 : vector<1x2x32xf32> to vector<2x32xf32>
    %24 = vector.extract_strided_slice %12 {offsets = [0, 0, 0], sizes = [2, 1, 128], strides = [1, 1, 1]} : vector<2x8x128xf32> to vector<2x1x128xf32>
    %25 = vector.shape_cast %24 : vector<2x1x128xf32> to vector<2x128xf32>
    %cst_20 = arith.constant dense<0.000000e+00> : vector<2x128xf32>
    %26 = tpu.matmul %21, %13, %cst_20 {dimension_numbers = #tpu.dot_dimension_numbers<[1], [0], [0], [1], [0, 0, 1, 1], [], []>, precision = #tpu.contract_precision<fp32>} : vector<2x32xf32>, vector<32x128xf32>, vector<2x128xf32> -> vector<2x128xf32>
    %27 = arith.addf %25, %26 : vector<2x128xf32>
    %cst_21 = arith.constant 5.000000e-01 : f32
    %28 = vector.broadcast %cst_21 : f32 to vector<2x128xf32>
    %29 = arith.mulf %28, %27 : vector<2x128xf32>
    %30 = arith.select %19, %27, %29 : vector<2x128xi1>, vector<2x128xf32>
    %31 = math.tanh %30 : vector<2x128xf32>
    %cst_22 = arith.constant 1.000000e+00 : f32
    %32 = vector.broadcast %cst_22 : f32 to vector<2x128xf32>
    %33 = arith.addf %31, %32 : vector<2x128xf32>
    %cst_23 = arith.constant 5.000000e-01 : f32
    %34 = vector.broadcast %cst_23 : f32 to vector<2x128xf32>
    %35 = arith.mulf %34, %33 : vector<2x128xf32>
    %36 = arith.select %19, %31, %35 : vector<2x128xi1>, vector<2x128xf32>
    %37 = vector.extract_strided_slice %36 {offsets = [0, 0], sizes = [2, 32], strides = [1, 1]} : vector<2x128xf32> to vector<2x32xf32>
    %38 = vector.extract_strided_slice %36 {offsets = [0, 32], sizes = [2, 32], strides = [1, 1]} : vector<2x128xf32> to vector<2x32xf32>
    %39 = vector.extract_strided_slice %36 {offsets = [0, 64], sizes = [2, 32], strides = [1, 1]} : vector<2x128xf32> to vector<2x32xf32>
    %40 = vector.extract_strided_slice %36 {offsets = [0, 96], sizes = [2, 32], strides = [1, 1]} : vector<2x128xf32> to vector<2x32xf32>
    %41 = arith.mulf %38, %23 : vector<2x32xf32>
    %42 = arith.mulf %37, %39 : vector<2x32xf32>
    %43 = arith.addf %41, %42 : vector<2x32xf32>
    %44 = math.tanh %43 : vector<2x32xf32>
    %45 = arith.mulf %40, %44 : vector<2x32xf32>
    %46 = vector.extract_strided_slice %12 {offsets = [0, 1, 0], sizes = [2, 1, 128], strides = [1, 1, 1]} : vector<2x8x128xf32> to vector<2x1x128xf32>
    %47 = vector.shape_cast %46 : vector<2x1x128xf32> to vector<2x128xf32>
    %cst_24 = arith.constant dense<0.000000e+00> : vector<2x128xf32>
    %48 = tpu.matmul %45, %13, %cst_24 {dimension_numbers = #tpu.dot_dimension_numbers<[1], [0], [0], [1], [0, 0, 1, 1], [], []>, precision = #tpu.contract_precision<fp32>} : vector<2x32xf32>, vector<32x128xf32>, vector<2x128xf32> -> vector<2x128xf32>
    %49 = arith.addf %47, %48 : vector<2x128xf32>
    %cst_25 = arith.constant 5.000000e-01 : f32
    %50 = vector.broadcast %cst_25 : f32 to vector<2x128xf32>
    %51 = arith.mulf %50, %49 : vector<2x128xf32>
    %52 = arith.select %19, %49, %51 : vector<2x128xi1>, vector<2x128xf32>
    %53 = math.tanh %52 : vector<2x128xf32>
    %cst_26 = arith.constant 1.000000e+00 : f32
    %54 = vector.broadcast %cst_26 : f32 to vector<2x128xf32>
    %55 = arith.addf %53, %54 : vector<2x128xf32>
    %cst_27 = arith.constant 5.000000e-01 : f32
    %56 = vector.broadcast %cst_27 : f32 to vector<2x128xf32>
    %57 = arith.mulf %56, %55 : vector<2x128xf32>
    %58 = arith.select %19, %53, %57 : vector<2x128xi1>, vector<2x128xf32>
    %59 = vector.extract_strided_slice %58 {offsets = [0, 0], sizes = [2, 32], strides = [1, 1]} : vector<2x128xf32> to vector<2x32xf32>
    %60 = vector.extract_strided_slice %58 {offsets = [0, 32], sizes = [2, 32], strides = [1, 1]} : vector<2x128xf32> to vector<2x32xf32>
    %61 = vector.extract_strided_slice %58 {offsets = [0, 64], sizes = [2, 32], strides = [1, 1]} : vector<2x128xf32> to vector<2x32xf32>
    %62 = vector.extract_strided_slice %58 {offsets = [0, 96], sizes = [2, 32], strides = [1, 1]} : vector<2x128xf32> to vector<2x32xf32>
    %63 = arith.mulf %60, %43 : vector<2x32xf32>
    %64 = arith.mulf %59, %61 : vector<2x32xf32>
    %65 = arith.addf %63, %64 : vector<2x32xf32>
    %66 = math.tanh %65 : vector<2x32xf32>
    %67 = arith.mulf %62, %66 : vector<2x32xf32>
    %68 = vector.extract_strided_slice %12 {offsets = [0, 2, 0], sizes = [2, 1, 128], strides = [1, 1, 1]} : vector<2x8x128xf32> to vector<2x1x128xf32>
    %69 = vector.shape_cast %68 : vector<2x1x128xf32> to vector<2x128xf32>
    %cst_28 = arith.constant dense<0.000000e+00> : vector<2x128xf32>
    %70 = tpu.matmul %67, %13, %cst_28 {dimension_numbers = #tpu.dot_dimension_numbers<[1], [0], [0], [1], [0, 0, 1, 1], [], []>, precision = #tpu.contract_precision<fp32>} : vector<2x32xf32>, vector<32x128xf32>, vector<2x128xf32> -> vector<2x128xf32>
    %71 = arith.addf %69, %70 : vector<2x128xf32>
    %cst_29 = arith.constant 5.000000e-01 : f32
    %72 = vector.broadcast %cst_29 : f32 to vector<2x128xf32>
    %73 = arith.mulf %72, %71 : vector<2x128xf32>
    %74 = arith.select %19, %71, %73 : vector<2x128xi1>, vector<2x128xf32>
    %75 = math.tanh %74 : vector<2x128xf32>
    %cst_30 = arith.constant 1.000000e+00 : f32
    %76 = vector.broadcast %cst_30 : f32 to vector<2x128xf32>
    %77 = arith.addf %75, %76 : vector<2x128xf32>
    %cst_31 = arith.constant 5.000000e-01 : f32
    %78 = vector.broadcast %cst_31 : f32 to vector<2x128xf32>
    %79 = arith.mulf %78, %77 : vector<2x128xf32>
    %80 = arith.select %19, %75, %79 : vector<2x128xi1>, vector<2x128xf32>
    %81 = vector.extract_strided_slice %80 {offsets = [0, 0], sizes = [2, 32], strides = [1, 1]} : vector<2x128xf32> to vector<2x32xf32>
    %82 = vector.extract_strided_slice %80 {offsets = [0, 32], sizes = [2, 32], strides = [1, 1]} : vector<2x128xf32> to vector<2x32xf32>
    %83 = vector.extract_strided_slice %80 {offsets = [0, 64], sizes = [2, 32], strides = [1, 1]} : vector<2x128xf32> to vector<2x32xf32>
    %84 = vector.extract_strided_slice %80 {offsets = [0, 96], sizes = [2, 32], strides = [1, 1]} : vector<2x128xf32> to vector<2x32xf32>
    %85 = arith.mulf %82, %65 : vector<2x32xf32>
    %86 = arith.mulf %81, %83 : vector<2x32xf32>
    %87 = arith.addf %85, %86 : vector<2x32xf32>
    %88 = math.tanh %87 : vector<2x32xf32>
    %89 = arith.mulf %84, %88 : vector<2x32xf32>
    %90 = vector.extract_strided_slice %12 {offsets = [0, 3, 0], sizes = [2, 1, 128], strides = [1, 1, 1]} : vector<2x8x128xf32> to vector<2x1x128xf32>
    %91 = vector.shape_cast %90 : vector<2x1x128xf32> to vector<2x128xf32>
    %cst_32 = arith.constant dense<0.000000e+00> : vector<2x128xf32>
    %92 = tpu.matmul %89, %13, %cst_32 {dimension_numbers = #tpu.dot_dimension_numbers<[1], [0], [0], [1], [0, 0, 1, 1], [], []>, precision = #tpu.contract_precision<fp32>} : vector<2x32xf32>, vector<32x128xf32>, vector<2x128xf32> -> vector<2x128xf32>
    %93 = arith.addf %91, %92 : vector<2x128xf32>
    %cst_33 = arith.constant 5.000000e-01 : f32
    %94 = vector.broadcast %cst_33 : f32 to vector<2x128xf32>
    %95 = arith.mulf %94, %93 : vector<2x128xf32>
    %96 = arith.select %19, %93, %95 : vector<2x128xi1>, vector<2x128xf32>
    %97 = math.tanh %96 : vector<2x128xf32>
    %cst_34 = arith.constant 1.000000e+00 : f32
    %98 = vector.broadcast %cst_34 : f32 to vector<2x128xf32>
    %99 = arith.addf %97, %98 : vector<2x128xf32>
    %cst_35 = arith.constant 5.000000e-01 : f32
    %100 = vector.broadcast %cst_35 : f32 to vector<2x128xf32>
    %101 = arith.mulf %100, %99 : vector<2x128xf32>
    %102 = arith.select %19, %97, %101 : vector<2x128xi1>, vector<2x128xf32>
    %103 = vector.extract_strided_slice %102 {offsets = [0, 0], sizes = [2, 32], strides = [1, 1]} : vector<2x128xf32> to vector<2x32xf32>
    %104 = vector.extract_strided_slice %102 {offsets = [0, 32], sizes = [2, 32], strides = [1, 1]} : vector<2x128xf32> to vector<2x32xf32>
    %105 = vector.extract_strided_slice %102 {offsets = [0, 64], sizes = [2, 32], strides = [1, 1]} : vector<2x128xf32> to vector<2x32xf32>
    %106 = vector.extract_strided_slice %102 {offsets = [0, 96], sizes = [2, 32], strides = [1, 1]} : vector<2x128xf32> to vector<2x32xf32>
    %107 = arith.mulf %104, %87 : vector<2x32xf32>
    %108 = arith.mulf %103, %105 : vector<2x32xf32>
    %109 = arith.addf %107, %108 : vector<2x32xf32>
    %110 = math.tanh %109 : vector<2x32xf32>
    %111 = arith.mulf %106, %110 : vector<2x32xf32>
    %112 = vector.extract_strided_slice %12 {offsets = [0, 4, 0], sizes = [2, 1, 128], strides = [1, 1, 1]} : vector<2x8x128xf32> to vector<2x1x128xf32>
    %113 = vector.shape_cast %112 : vector<2x1x128xf32> to vector<2x128xf32>
    %cst_36 = arith.constant dense<0.000000e+00> : vector<2x128xf32>
    %114 = tpu.matmul %111, %13, %cst_36 {dimension_numbers = #tpu.dot_dimension_numbers<[1], [0], [0], [1], [0, 0, 1, 1], [], []>, precision = #tpu.contract_precision<fp32>} : vector<2x32xf32>, vector<32x128xf32>, vector<2x128xf32> -> vector<2x128xf32>
    %115 = arith.addf %113, %114 : vector<2x128xf32>
    %cst_37 = arith.constant 5.000000e-01 : f32
    %116 = vector.broadcast %cst_37 : f32 to vector<2x128xf32>
    %117 = arith.mulf %116, %115 : vector<2x128xf32>
    %118 = arith.select %19, %115, %117 : vector<2x128xi1>, vector<2x128xf32>
    %119 = math.tanh %118 : vector<2x128xf32>
    %cst_38 = arith.constant 1.000000e+00 : f32
    %120 = vector.broadcast %cst_38 : f32 to vector<2x128xf32>
    %121 = arith.addf %119, %120 : vector<2x128xf32>
    %cst_39 = arith.constant 5.000000e-01 : f32
    %122 = vector.broadcast %cst_39 : f32 to vector<2x128xf32>
    %123 = arith.mulf %122, %121 : vector<2x128xf32>
    %124 = arith.select %19, %119, %123 : vector<2x128xi1>, vector<2x128xf32>
    %125 = vector.extract_strided_slice %124 {offsets = [0, 0], sizes = [2, 32], strides = [1, 1]} : vector<2x128xf32> to vector<2x32xf32>
    %126 = vector.extract_strided_slice %124 {offsets = [0, 32], sizes = [2, 32], strides = [1, 1]} : vector<2x128xf32> to vector<2x32xf32>
    %127 = vector.extract_strided_slice %124 {offsets = [0, 64], sizes = [2, 32], strides = [1, 1]} : vector<2x128xf32> to vector<2x32xf32>
    %128 = vector.extract_strided_slice %124 {offsets = [0, 96], sizes = [2, 32], strides = [1, 1]} : vector<2x128xf32> to vector<2x32xf32>
    %129 = arith.mulf %126, %109 : vector<2x32xf32>
    %130 = arith.mulf %125, %127 : vector<2x32xf32>
    %131 = arith.addf %129, %130 : vector<2x32xf32>
    %132 = math.tanh %131 : vector<2x32xf32>
    %133 = arith.mulf %128, %132 : vector<2x32xf32>
    %134 = vector.extract_strided_slice %12 {offsets = [0, 5, 0], sizes = [2, 1, 128], strides = [1, 1, 1]} : vector<2x8x128xf32> to vector<2x1x128xf32>
    %135 = vector.shape_cast %134 : vector<2x1x128xf32> to vector<2x128xf32>
    %cst_40 = arith.constant dense<0.000000e+00> : vector<2x128xf32>
    %136 = tpu.matmul %133, %13, %cst_40 {dimension_numbers = #tpu.dot_dimension_numbers<[1], [0], [0], [1], [0, 0, 1, 1], [], []>, precision = #tpu.contract_precision<fp32>} : vector<2x32xf32>, vector<32x128xf32>, vector<2x128xf32> -> vector<2x128xf32>
    %137 = arith.addf %135, %136 : vector<2x128xf32>
    %cst_41 = arith.constant 5.000000e-01 : f32
    %138 = vector.broadcast %cst_41 : f32 to vector<2x128xf32>
    %139 = arith.mulf %138, %137 : vector<2x128xf32>
    %140 = arith.select %19, %137, %139 : vector<2x128xi1>, vector<2x128xf32>
    %141 = math.tanh %140 : vector<2x128xf32>
    %cst_42 = arith.constant 1.000000e+00 : f32
    %142 = vector.broadcast %cst_42 : f32 to vector<2x128xf32>
    %143 = arith.addf %141, %142 : vector<2x128xf32>
    %cst_43 = arith.constant 5.000000e-01 : f32
    %144 = vector.broadcast %cst_43 : f32 to vector<2x128xf32>
    %145 = arith.mulf %144, %143 : vector<2x128xf32>
    %146 = arith.select %19, %141, %145 : vector<2x128xi1>, vector<2x128xf32>
    %147 = vector.extract_strided_slice %146 {offsets = [0, 0], sizes = [2, 32], strides = [1, 1]} : vector<2x128xf32> to vector<2x32xf32>
    %148 = vector.extract_strided_slice %146 {offsets = [0, 32], sizes = [2, 32], strides = [1, 1]} : vector<2x128xf32> to vector<2x32xf32>
    %149 = vector.extract_strided_slice %146 {offsets = [0, 64], sizes = [2, 32], strides = [1, 1]} : vector<2x128xf32> to vector<2x32xf32>
    %150 = vector.extract_strided_slice %146 {offsets = [0, 96], sizes = [2, 32], strides = [1, 1]} : vector<2x128xf32> to vector<2x32xf32>
    %151 = arith.mulf %148, %131 : vector<2x32xf32>
    %152 = arith.mulf %147, %149 : vector<2x32xf32>
    %153 = arith.addf %151, %152 : vector<2x32xf32>
    %154 = math.tanh %153 : vector<2x32xf32>
    %155 = arith.mulf %150, %154 : vector<2x32xf32>
    %156 = vector.extract_strided_slice %12 {offsets = [0, 6, 0], sizes = [2, 1, 128], strides = [1, 1, 1]} : vector<2x8x128xf32> to vector<2x1x128xf32>
    %157 = vector.shape_cast %156 : vector<2x1x128xf32> to vector<2x128xf32>
    %cst_44 = arith.constant dense<0.000000e+00> : vector<2x128xf32>
    %158 = tpu.matmul %155, %13, %cst_44 {dimension_numbers = #tpu.dot_dimension_numbers<[1], [0], [0], [1], [0, 0, 1, 1], [], []>, precision = #tpu.contract_precision<fp32>} : vector<2x32xf32>, vector<32x128xf32>, vector<2x128xf32> -> vector<2x128xf32>
    %159 = arith.addf %157, %158 : vector<2x128xf32>
    %cst_45 = arith.constant 5.000000e-01 : f32
    %160 = vector.broadcast %cst_45 : f32 to vector<2x128xf32>
    %161 = arith.mulf %160, %159 : vector<2x128xf32>
    %162 = arith.select %19, %159, %161 : vector<2x128xi1>, vector<2x128xf32>
    %163 = math.tanh %162 : vector<2x128xf32>
    %cst_46 = arith.constant 1.000000e+00 : f32
    %164 = vector.broadcast %cst_46 : f32 to vector<2x128xf32>
    %165 = arith.addf %163, %164 : vector<2x128xf32>
    %cst_47 = arith.constant 5.000000e-01 : f32
    %166 = vector.broadcast %cst_47 : f32 to vector<2x128xf32>
    %167 = arith.mulf %166, %165 : vector<2x128xf32>
    %168 = arith.select %19, %163, %167 : vector<2x128xi1>, vector<2x128xf32>
    %169 = vector.extract_strided_slice %168 {offsets = [0, 0], sizes = [2, 32], strides = [1, 1]} : vector<2x128xf32> to vector<2x32xf32>
    %170 = vector.extract_strided_slice %168 {offsets = [0, 32], sizes = [2, 32], strides = [1, 1]} : vector<2x128xf32> to vector<2x32xf32>
    %171 = vector.extract_strided_slice %168 {offsets = [0, 64], sizes = [2, 32], strides = [1, 1]} : vector<2x128xf32> to vector<2x32xf32>
    %172 = vector.extract_strided_slice %168 {offsets = [0, 96], sizes = [2, 32], strides = [1, 1]} : vector<2x128xf32> to vector<2x32xf32>
    %173 = arith.mulf %170, %153 : vector<2x32xf32>
    %174 = arith.mulf %169, %171 : vector<2x32xf32>
    %175 = arith.addf %173, %174 : vector<2x32xf32>
    %176 = math.tanh %175 : vector<2x32xf32>
    %177 = arith.mulf %172, %176 : vector<2x32xf32>
    %178 = vector.extract_strided_slice %12 {offsets = [0, 7, 0], sizes = [2, 1, 128], strides = [1, 1, 1]} : vector<2x8x128xf32> to vector<2x1x128xf32>
    %179 = vector.shape_cast %178 : vector<2x1x128xf32> to vector<2x128xf32>
    %cst_48 = arith.constant dense<0.000000e+00> : vector<2x128xf32>
    %180 = tpu.matmul %177, %13, %cst_48 {dimension_numbers = #tpu.dot_dimension_numbers<[1], [0], [0], [1], [0, 0, 1, 1], [], []>, precision = #tpu.contract_precision<fp32>} : vector<2x32xf32>, vector<32x128xf32>, vector<2x128xf32> -> vector<2x128xf32>
    %181 = arith.addf %179, %180 : vector<2x128xf32>
    %cst_49 = arith.constant 5.000000e-01 : f32
    %182 = vector.broadcast %cst_49 : f32 to vector<2x128xf32>
    %183 = arith.mulf %182, %181 : vector<2x128xf32>
    %184 = arith.select %19, %181, %183 : vector<2x128xi1>, vector<2x128xf32>
    %185 = math.tanh %184 : vector<2x128xf32>
    %cst_50 = arith.constant 1.000000e+00 : f32
    %186 = vector.broadcast %cst_50 : f32 to vector<2x128xf32>
    %187 = arith.addf %185, %186 : vector<2x128xf32>
    %cst_51 = arith.constant 5.000000e-01 : f32
    %188 = vector.broadcast %cst_51 : f32 to vector<2x128xf32>
    %189 = arith.mulf %188, %187 : vector<2x128xf32>
    %190 = arith.select %19, %185, %189 : vector<2x128xi1>, vector<2x128xf32>
    %191 = vector.extract_strided_slice %190 {offsets = [0, 0], sizes = [2, 32], strides = [1, 1]} : vector<2x128xf32> to vector<2x32xf32>
    %192 = vector.extract_strided_slice %190 {offsets = [0, 32], sizes = [2, 32], strides = [1, 1]} : vector<2x128xf32> to vector<2x32xf32>
    %193 = vector.extract_strided_slice %190 {offsets = [0, 64], sizes = [2, 32], strides = [1, 1]} : vector<2x128xf32> to vector<2x32xf32>
    %194 = vector.extract_strided_slice %190 {offsets = [0, 96], sizes = [2, 32], strides = [1, 1]} : vector<2x128xf32> to vector<2x32xf32>
    %195 = arith.mulf %192, %175 : vector<2x32xf32>
    %196 = arith.mulf %191, %193 : vector<2x32xf32>
    %197 = arith.addf %195, %196 : vector<2x32xf32>
    %198 = math.tanh %197 : vector<2x32xf32>
    %199 = arith.mulf %194, %198 : vector<2x32xf32>
    %200 = vector.shape_cast %45 : vector<2x32xf32> to vector<2x1x32xf32>
    %201 = vector.shape_cast %67 : vector<2x32xf32> to vector<2x1x32xf32>
    %202 = vector.shape_cast %89 : vector<2x32xf32> to vector<2x1x32xf32>
    %203 = vector.shape_cast %111 : vector<2x32xf32> to vector<2x1x32xf32>
    %204 = vector.shape_cast %133 : vector<2x32xf32> to vector<2x1x32xf32>
    %205 = vector.shape_cast %155 : vector<2x32xf32> to vector<2x1x32xf32>
    %206 = vector.shape_cast %177 : vector<2x32xf32> to vector<2x1x32xf32>
    %207 = vector.shape_cast %199 : vector<2x32xf32> to vector<2x1x32xf32>
    %208 = tpu.concatenate %200, %201, %202, %203, %204, %205, %206, %207 in 1 : vector<2x1x32xf32>, vector<2x1x32xf32>, vector<2x1x32xf32>, vector<2x1x32xf32>, vector<2x1x32xf32>, vector<2x1x32xf32>, vector<2x1x32xf32>, vector<2x1x32xf32> -> vector<2x8x32xf32>
    %209 = vector.shape_cast %208 : vector<2x8x32xf32> to vector<16x32xf32>
    %c0_52 = arith.constant 0 : index
    %c0_53 = arith.constant 0 : index
    %210 = vector.load %arg8[%c0_52, %c0_53] : memref<32x8xf32, #tpu.memory_space<vmem>>, vector<32x8xf32>
    %cst_54 = arith.constant dense<0.000000e+00> : vector<16x8xf32>
    %211 = tpu.matmul %209, %210, %cst_54 {dimension_numbers = #tpu.dot_dimension_numbers<[1], [0], [0], [1], [0, 0, 1, 1], [], []>, precision = #tpu.contract_precision<fp32>} : vector<16x32xf32>, vector<32x8xf32>, vector<16x8xf32> -> vector<16x8xf32>
    %c0_55 = arith.constant 0 : index
    %c0_56 = arith.constant 0 : index
    %212 = vector.load %arg9[%c0_55, %c0_56] : memref<1x8xf32, #tpu.memory_space<vmem>>, vector<1x8xf32>
    %213 = vector.broadcast %212 : vector<1x8xf32> to vector<16x8xf32>
    %214 = arith.addf %211, %213 : vector<16x8xf32>
    %215 = vector.shape_cast %214 : vector<16x8xf32> to vector<2x8x8xf32>
    %c0_57 = arith.constant 0 : index
    %c0_58 = arith.constant 0 : index
    %c0_59 = arith.constant 0 : index
    %216 = vector.load %arg10[%c0_57, %c0_58, %c0_59] : memref<2x8x8xf32, #tpu.memory_space<vmem>>, vector<2x8x8xf32>
    tpu.vector_store %arg10[%c0_57, %c0_58, %c0_59], %215 {strides = array<i32>} : memref<2x8x8xf32, #tpu.memory_space<vmem>>, vector<2x8x8xf32>,
    %c0_60 = arith.constant 0 : index
    %c0_61 = arith.constant 0 : index
    %c0_62 = arith.constant 0 : index
    %217 = vector.load %arg11[%c0_60, %c0_61, %c0_62] : memref<1x2x32xf32, #tpu.memory_space<vmem>>, vector<1x2x32xf32>
    %218 = vector.shape_cast %217 : vector<1x2x32xf32> to vector<2x32xf32>
    %219 = vector.shape_cast %199 : vector<2x32xf32> to vector<1x2x32xf32>
    tpu.vector_store %arg11[%c0_60, %c0_61, %c0_62], %219 {strides = array<i32>} : memref<1x2x32xf32, #tpu.memory_space<vmem>>, vector<1x2x32xf32>,
    %c0_63 = arith.constant 0 : index
    %c0_64 = arith.constant 0 : index
    %c0_65 = arith.constant 0 : index
    %220 = vector.load %arg12[%c0_63, %c0_64, %c0_65] : memref<1x2x32xf32, #tpu.memory_space<vmem>>, vector<1x2x32xf32>
    %221 = vector.shape_cast %220 : vector<1x2x32xf32> to vector<2x32xf32>
    %222 = vector.shape_cast %197 : vector<2x32xf32> to vector<1x2x32xf32>
    tpu.vector_store %arg12[%c0_63, %c0_64, %c0_65], %222 {strides = array<i32>} : memref<1x2x32xf32, #tpu.memory_space<vmem>>, vector<1x2x32xf32>,
    return
  }
}

</mosaic_0001>

<llo_original>
// kernel: tpu_custom_call.1
$region0: #{tpu_custom_call.1}
  #allocation0 [shape = 'u32[]', space=smem, size = 0x4, offset = 0x4, fixed_abs, tag = 'smem constant byte address 0x4 - core index']
  #allocation1 [shape = 'u32[144,128]{1,0:T(1,128)}', space=vmem, size = 0x12000, scoped, tag = 'internal scratch']
  %s0 = inlined_call_operand.vmem [shape: f32[2,8,16], index: 0, kind: input, shape index: {}]
  %s1 = inlined_call_operand.hbm [shape: f32[2,8,16], index: 1, kind: input, shape index: {}]
  %s2 = inlined_call_operand.vmem [shape: f32[1,2,32], index: 2, kind: input, shape index: {}]
  %s3 = inlined_call_operand.vmem [shape: f32[1,2,32], index: 3, kind: input, shape index: {}]
  %s4 = inlined_call_operand.hbm [shape: f32[16,128], index: 4, kind: input, shape index: {}]
  %s5 = inlined_call_operand.hbm [shape: f32[16,128], index: 5, kind: input, shape index: {}]
  %s6 = inlined_call_operand.vmem [shape: f32[32,128], index: 6, kind: input, shape index: {}]
  %s7 = inlined_call_operand.vmem [shape: f32[1,128], index: 7, kind: input, shape index: {}]
  %s8 = inlined_call_operand.vmem [shape: f32[32,8], index: 8, kind: input, shape index: {}]
  %s9 = inlined_call_operand.vmem [shape: f32[1,8], index: 9, kind: input, shape index: {}]
  %s10 = inlined_call_operand.hbm [shape: f32[2,8,8], index: 10, kind: output, shape index: {0}]
  %s11 = inlined_call_operand.hbm [shape: f32[1,2,32], index: 11, kind: output, shape index: {1}]
  %s12 = inlined_call_operand.hbm [shape: f32[1,2,32], index: 12, kind: output, shape index: {2}]
  %13 = xla_tuple %s10, %s11, %s12
  %s14 = sld [smem:[#allocation0]]
  $region78: #{tpu_custom_call.1} parent=0
    _
  %s16 = ssub.s32 1, %s14
  %s17 = scalar_select 0, %s16, %s14
  $region1: #{tpu_custom_call.1} parent=0
    #allocation2 [shape = 'u8[8192]{0}', space=vmem, size = 0x2000, scoped, tag = 'input window, operand 1, single buffered']
    #allocation3 [shape = 's32[1]{0}', space=sflag, size = 0x4, scoped, tag = 'scoped memory for tpu_custom_call.1']
    #allocation4 [shape = 's32[1]{0}', space=sflag, size = 0x4, scoped, tag = 'scoped memory for tpu_custom_call.1']
    #allocation5 [shape = 'u8[8192]{0}', space=vmem, size = 0x2000, scoped, tag = 'input window, operand 4, single buffered']
    #allocation6 [shape = 's32[1]{0}', space=sflag, size = 0x4, scoped, tag = 'scoped memory for tpu_custom_call.1']
    #allocation7 [shape = 'u8[8192]{0}', space=vmem, size = 0x2000, scoped, tag = 'input window, operand 5, single buffered']
    #allocation8 [shape = 'u8[8192]{0}', space=vmem, size = 0x2000, scoped, tag = 'output window, operand 0, single buffered']
    #allocation9 [shape = 'u8[1024]{0}', space=vmem, size = 0x400, scoped, tag = 'output window, operand 1, single buffered']
    #allocation10 [shape = 's32[1]{0}', space=sflag, size = 0x4, scoped, tag = 'scoped memory for tpu_custom_call.1']
    #allocation11 [shape = 'u8[1024]{0}', space=vmem, size = 0x400, scoped, tag = 'output window, operand 2, single buffered']
    %18 = vsyncpa [#allocation3], 0
    %19 = vsyncpa [#allocation6], 0
    %20 = vsyncpa [#allocation4], 0
    %21 = vsyncpa [#allocation10], 0
    // Predicated region
    $region2: #{tpu_custom_call.1} parent=1 // pred_check
      _
    $region3: #{tpu_custom_call.1} parent=1 // pred_check_branch
      %23 = sbr.rel (0) target = $region5
    $region4: #{tpu_custom_call.1} parent=1 // pred_region
      _
    $region5: #{tpu_custom_call.1} parent=1 // pred_fallthru
      _
    // Predicated region
    $region6: #{tpu_custom_call.1} parent=1 // pred_check
      _
    $region7: #{tpu_custom_call.1} parent=1 // pred_check_branch
      %25 = sbr.rel (0) target = $region9
    $region8: #{tpu_custom_call.1} parent=1 // pred_region
      %s27 = ssub.s32 256, 256
      %28 = vsyncadd [#allocation3], %s27
      %s29 = sshll.u32 [#allocation2], 4
      %s30 = int_to_ptr.vmem [resolvable:$true] %s29
      %35 = dma.hbm_to_vmem [thread:$0]  %s1, 256, %s30, [#allocation3], 128, 128, 8
    $region9: #{tpu_custom_call.1} parent=1 // pred_fallthru
      _
    // Predicated region
    $region10: #{tpu_custom_call.1} parent=1 // pred_check
      _
    $region11: #{tpu_custom_call.1} parent=1 // pred_check_branch
      %37 = sbr.rel (0) target = $region13
    $region12: #{tpu_custom_call.1} parent=1 // pred_region
      _
    $region13: #{tpu_custom_call.1} parent=1 // pred_fallthru
      _
    // Predicated region
    $region14: #{tpu_custom_call.1} parent=1 // pred_check
      _
    $region15: #{tpu_custom_call.1} parent=1 // pred_check_branch
      %39 = sbr.rel (0) target = $region17
    $region16: #{tpu_custom_call.1} parent=1 // pred_region
      _
    $region17: #{tpu_custom_call.1} parent=1 // pred_fallthru
      _
    // Predicated region
    $region18: #{tpu_custom_call.1} parent=1 // pred_check
      _
    $region19: #{tpu_custom_call.1} parent=1 // pred_check_branch
      %41 = sbr.rel (0) target = $region21
    $region20: #{tpu_custom_call.1} parent=1 // pred_region
      %s43 = ssub.s32 256, 256
      %44 = vsyncadd [#allocation6], %s43
      %s45 = sshll.u32 [#allocation5], 4
      %s46 = int_to_ptr.vmem [resolvable:$true] %s45
      %51 = dma.hbm_to_vmem [thread:$0]  %s4, 256, %s46, [#allocation6], 128, 128, 8
    $region21: #{tpu_custom_call.1} parent=1 // pred_fallthru
      _
    // Predicated region
    $region22: #{tpu_custom_call.1} parent=1 // pred_check
      _
    $region23: #{tpu_custom_call.1} parent=1 // pred_check_branch
      %53 = sbr.rel (0) target = $region25
    $region24: #{tpu_custom_call.1} parent=1 // pred_region
      %s55 = ssub.s32 256, 256
      %56 = vsyncadd [#allocation6], %s55
      %s57 = sshll.u32 [#allocation7], 4
      %s58 = int_to_ptr.vmem [resolvable:$true] %s57
      %63 = dma.hbm_to_vmem [thread:$0]  %s5, 256, %s58, [#allocation6], 128, 128, 8
    $region25: #{tpu_custom_call.1} parent=1 // pred_fallthru
      _
    // Predicated region
    $region26: #{tpu_custom_call.1} parent=1 // pred_check
      _
    $region27: #{tpu_custom_call.1} parent=1 // pred_check_branch
      %65 = sbr.rel (0) target = $region29
    $region28: #{tpu_custom_call.1} parent=1 // pred_region
      _
    $region29: #{tpu_custom_call.1} parent=1 // pred_fallthru
      _
    // Predicated region
    $region30: #{tpu_custom_call.1} parent=1 // pred_check
      _
    $region31: #{tpu_custom_call.1} parent=1 // pred_check_branch
      %67 = sbr.rel (0) target = $region33
    $region32: #{tpu_custom_call.1} parent=1 // pred_region
      _
    $region33: #{tpu_custom_call.1} parent=1 // pred_fallthru
      _
    // Predicated region
    $region34: #{tpu_custom_call.1} parent=1 // pred_check
      _
    $region35: #{tpu_custom_call.1} parent=1 // pred_check_branch
      %69 = sbr.rel (0) target = $region37
    $region36: #{tpu_custom_call.1} parent=1 // pred_region
      _
    $region37: #{tpu_custom_call.1} parent=1 // pred_fallthru
      _
    // Predicated region
    $region38: #{tpu_custom_call.1} parent=1 // pred_check
      _
    $region39: #{tpu_custom_call.1} parent=1 // pred_check_branch
      %71 = sbr.rel (0) target = $region41
    $region40: #{tpu_custom_call.1} parent=1 // pred_region
      _
    $region41: #{tpu_custom_call.1} parent=1 // pred_fallthru
      _
    // Predicated region
    $region42: #{tpu_custom_call.1} parent=1 // pred_check
      _
    $region43: #{tpu_custom_call.1} parent=1 // pred_check_branch
      %73 = sbr.rel (0) target = $region45
    $region44: #{tpu_custom_call.1} parent=1 // pred_region
      %74 = dma.done [#allocation3], 256
    $region45: #{tpu_custom_call.1} parent=1 // pred_fallthru
      _
    // Predicated region
    $region46: #{tpu_custom_call.1} parent=1 // pred_check
      _
    $region47: #{tpu_custom_call.1} parent=1 // pred_check_branch
      %76 = sbr.rel (0) target = $region49
    $region48: #{tpu_custom_call.1} parent=1 // pred_region
      %77 = dma.done [#allocation6], 256
    $region49: #{tpu_custom_call.1} parent=1 // pred_fallthru
      _
    // Predicated region
    $region50: #{tpu_custom_call.1} parent=1 // pred_check
      _
    $region51: #{tpu_custom_call.1} parent=1 // pred_check_branch
      %79 = sbr.rel (0) target = $region53
    $region52: #{tpu_custom_call.1} parent=1 // pred_region
      %80 = dma.done [#allocation6], 256
    $region53: #{tpu_custom_call.1} parent=1 // pred_fallthru
      _
    %v81 = vld [vmem:[%s0] sm:$0xff]
    %v82 = vld [vmem:[%s0 + $0x8] sm:$0xff]
    %v83 = vld [vmem:[#allocation2] sm:$0xff]
    %v84 = vld [vmem:[#allocation2 + $0x8] sm:$0xff]
    %v85 = vld [vmem:[#allocation5] sm:$0xff]
    %v86 = vld [vmem:[#allocation5 + $0x8] sm:$0xff]
    %v87 = vld [vmem:[#allocation7] sm:$0xff]
    %v88 = vld [vmem:[#allocation7 + $0x8] sm:$0xff]
    %vm89 = vcmask 130048
    %v91 = vsel %vm89, %v83, 0
    %v94 = vsel %vm89, %v84, 0
    %96 = vmatprep.subr.mxu0 0.0
    %v97 = vand.u32 %v87, 4294901760
    %98 = vmatpush1.msra.mxu0 %v97
    %99 = vmatprep.subr.mxu0 0.0
    %v100 = vand.u32 %v88, 4294901760
    %101 = vmatpush1.msra.mxu0 %v100
    %102 = vmatprep.subr.mxu0 0.0
    %103 = vmatpush1.msra.mxu0 0.0
    %104 = vmatprep.subr.mxu0 0.0
    %105 = vmatpush1.msra.mxu0 0.0
    %106 = vmatprep.subr.mxu0 0.0
    %107 = vmatpush1.msra.mxu0 0.0
    %108 = vmatprep.subr.mxu0 0.0
    %109 = vmatpush1.msra.mxu0 0.0
    %110 = vmatprep.subr.mxu0 0.0
    %111 = vmatpush1.msra.mxu0 0.0
    %112 = vmatprep.subr.mxu0 0.0
    %113 = vmatpush1.msra.mxu0 0.0
    %114 = vmatprep.subr.mxu0 0.0
    %115 = vmatpush1.msra.mxu0 0.0
    %116 = vmatprep.subr.mxu0 0.0
    %117 = vmatpush1.msra.mxu0 0.0
    %118 = vmatprep.subr.mxu0 0.0
    %119 = vmatpush1.msra.mxu0 0.0
    %120 = vmatprep.subr.mxu0 0.0
    %121 = vmatpush1.msra.mxu0 0.0
    %122 = vmatprep.subr.mxu0 0.0
    %123 = vmatpush1.msra.mxu0 0.0
    %124 = vmatprep.subr.mxu0 0.0
    %125 = vmatpush1.msra.mxu0 0.0
    %126 = vmatprep.subr.mxu0 0.0
    %127 = vmatpush1.msra.mxu0 0.0
    %128 = vmatprep.subr.mxu0 0.0
    %129 = vmatpush1.msra.mxu0 0.0
    %130 = vmatprep.subr.mxu0 0.0
    %131 = vmatpush1.msra.mxu0 0.0
    %132 = vmatprep.subr.mxu0 0.0
    %133 = vmatpush1.msra.mxu0 0.0
    %134 = vmatprep.subr.mxu0 0.0
    %135 = vmatpush1.msra.mxu0 0.0
    %136 = vmatprep.subr.mxu0 0.0
    %137 = vmatpush1.msra.mxu0 0.0
    %138 = vmatprep.subr.mxu0 0.0
    %139 = vmatpush1.msra.mxu0 0.0
    %140 = vmatprep.subr.mxu0 0.0
    %141 = vmatpush1.msra.mxu0 0.0
    %142 = vmatprep.subr.mxu0 0.0
    %143 = vmatpush1.msra.mxu0 0.0
    %144 = vmatprep.subr.mxu0 0.0
    %145 = vmatpush1.msra.mxu0 0.0
    %146 = vmatprep.subr.mxu0 0.0
    %147 = vmatpush1.msra.mxu0 0.0
    %148 = vmatprep.subr.mxu0 0.0
    %149 = vmatpush1.msra.mxu0 0.0
    %150 = vmatprep.subr.mxu0 0.0
    %151 = vmatpush1.msra.mxu0 0.0
    %152 = vmatprep.subr.mxu0 0.0
    %153 = vmatpush1.msra.mxu0 0.0
    %154 = vmatprep.subr.mxu0 0.0
    %155 = vmatpush1.msra.mxu0 0.0
    %156 = vmatprep.subr.mxu0 0.0
    %157 = vmatpush1.msra.mxu0 0.0
    %158 = vmatprep.subr.mxu0 0.0
    %159 = vmatpush1.msra.mxu0 0.0
    %160 = vmatprep.subr.mxu0 0.0
    %161 = vmatpush1.msra.mxu0 0.0
    %162 = vmatprep.mubr.f32.mxu0 0.0
    %v163 = vand.u32 %v91, 4294901760
    %v164 = vsub.f32 %v91, %v163
    %v165 = vand.u32 %v164, 4294901760
    %v166 = vsub.f32 %v164, %v165
    %v167 = vand.u32 %v166, 4294901760
    %168 = vmatmul.mubr.f32.gmra.mrb[0].mxu0 %v167
    %v169 = vpop.f32.mrb[0].mxu0
    %v170 = vadd.f32 0.0, %v169
    %v171 = vpop.f32.mrb[0].mxu0
    %172 = vmatprep.mubr.f32.mxu0 0.0
    %v173 = vand.u32 %v94, 4294901760
    %v174 = vsub.f32 %v94, %v173
    %v175 = vand.u32 %v174, 4294901760
    %v176 = vsub.f32 %v174, %v175
    %v177 = vand.u32 %v176, 4294901760
    %178 = vmatmul.mubr.f32.gmra.mrb[0].mxu0 %v177
    %v179 = vpop.f32.mrb[0].mxu0
    %v180 = vadd.f32 0.0, %v179
    %v181 = vpop.f32.mrb[0].mxu0
    %182 = vdwg.mxu0
    %183 = vmatprep.subr.mxu0 0.0
    %v184 = vand.u32 %v87, 4294901760
    %v185 = vsub.f32 %v87, %v184
    %v186 = vand.u32 %v185, 4294901760
    %v187 = vsub.f32 %v185, %v186
    %v188 = vand.u32 %v187, 4294901760
    %189 = vmatpush1.msra.mxu0 %v188
    %190 = vmatprep.subr.mxu0 0.0
    %v191 = vand.u32 %v88, 4294901760
    %v192 = vsub.f32 %v88, %v191
    %v193 = vand.u32 %v192, 4294901760
    %v194 = vsub.f32 %v192, %v193
    %v195 = vand.u32 %v194, 4294901760
    %196 = vmatpush1.msra.mxu0 %v195
    %197 = vmatprep.subr.mxu0 0.0
    %198 = vmatpush1.msra.mxu0 0.0
    %199 = vmatprep.subr.mxu0 0.0
    %200 = vmatpush1.msra.mxu0 0.0
    %201 = vmatprep.subr.mxu0 0.0
    %202 = vmatpush1.msra.mxu0 0.0
    %203 = vmatprep.subr.mxu0 0.0
    %204 = vmatpush1.msra.mxu0 0.0
    %205 = vmatprep.subr.mxu0 0.0
    %206 = vmatpush1.msra.mxu0 0.0
    %207 = vmatprep.subr.mxu0 0.0
    %208 = vmatpush1.msra.mxu0 0.0
    %209 = vmatprep.subr.mxu0 0.0
    %210 = vmatpush1.msra.mxu0 0.0
    %211 = vmatprep.subr.mxu0 0.0
    %212 = vmatpush1.msra.mxu0 0.0
    %213 = vmatprep.subr.mxu0 0.0
    %214 = vmatpush1.msra.mxu0 0.0
    %215 = vmatprep.subr.mxu0 0.0
    %216 = vmatpush1.msra.mxu0 0.0
    %217 = vmatprep.subr.mxu0 0.0
    %218 = vmatpush1.msra.mxu0 0.0
    %219 = vmatprep.subr.mxu0 0.0
    %220 = vmatpush1.msra.mxu0 0.0
    %221 = vmatprep.subr.mxu0 0.0
    %222 = vmatpush1.msra.mxu0 0.0
    %223 = vmatprep.subr.mxu0 0.0
    %224 = vmatpush1.msra.mxu0 0.0
    %225 = vmatprep.subr.mxu0 0.0
    %226 = vmatpush1.msra.mxu0 0.0
    %227 = vmatprep.subr.mxu0 0.0
    %228 = vmatpush1.msra.mxu0 0.0
    %229 = vmatprep.subr.mxu0 0.0
    %230 = vmatpush1.msra.mxu0 0.0
    %231 = vmatprep.subr.mxu0 0.0
    %232 = vmatpush1.msra.mxu0 0.0
    %233 = vmatprep.subr.mxu0 0.0
    %234 = vmatpush1.msra.mxu0 0.0
    %235 = vmatprep.subr.mxu0 0.0
    %236 = vmatpush1.msra.mxu0 0.0
    %237 = vmatprep.subr.mxu0 0.0
    %238 = vmatpush1.msra.mxu0 0.0
    %239 = vmatprep.subr.mxu0 0.0
    %240 = vmatpush1.msra.mxu0 0.0
    %241 = vmatprep.subr.mxu0 0.0
    %242 = vmatpush1.msra.mxu0 0.0
    %243 = vmatprep.subr.mxu0 0.0
    %244 = vmatpush1.msra.mxu0 0.0
    %245 = vmatprep.subr.mxu0 0.0
    %246 = vmatpush1.msra.mxu0 0.0
    %247 = vmatprep.subr.mxu0 0.0
    %248 = vmatpush1.msra.mxu0 0.0
    %249 = vmatprep.subr.mxu0 0.0
    %250 = vmatpush1.msra.mxu0 0.0
    %251 = vmatprep.subr.mxu0 0.0
    %252 = vmatpush1.msra.mxu0 0.0
    %253 = vmatprep.subr.mxu0 0.0
    %254 = vmatpush1.msra.mxu0 0.0
    %255 = vmatprep.subr.mxu0 0.0
    %256 = vmatpush1.msra.mxu0 0.0
    %257 = vmatprep.mubr.f32.mxu0 0.0
    %v258 = vand.u32 %v91, 4294901760
    %259 = vmatmul.mubr.f32.gmra.mrb[0].mxu0 %v258
    %v260 = vpop.f32.mrb[0].mxu0
    %v261 = vadd.f32 %v170, %v260
    %v262 = vpop.f32.mrb[0].mxu0
    %263 = vmatprep.mubr.f32.mxu0 0.0
    %v264 = vand.u32 %v94, 4294901760
    %265 = vmatmul.mubr.f32.gmra.mrb[0].mxu0 %v264
    %v266 = vpop.f32.mrb[0].mxu0
    %v267 = vadd.f32 %v180, %v266
    %v268 = vpop.f32.mrb[0].mxu0
    %269 = vdwg.mxu0
    %270 = vmatprep.subr.mxu0 0.0
    %v271 = vand.u32 %v87, 4294901760
    %v272 = vsub.f32 %v87, %v271
    %273 = vmatpush1.msra.mxu0 %v272
    %274 = vmatprep.subr.mxu0 0.0
    %v275 = vand.u32 %v88, 4294901760
    %v276 = vsub.f32 %v88, %v275
    %277 = vmatpush1.msra.mxu0 %v276
    %278 = vmatprep.subr.mxu0 0.0
    %279 = vmatpush1.msra.mxu0 0.0
    %280 = vmatprep.subr.mxu0 0.0
    %281 = vmatpush1.msra.mxu0 0.0
    %282 = vmatprep.subr.mxu0 0.0
    %283 = vmatpush1.msra.mxu0 0.0
    %284 = vmatprep.subr.mxu0 0.0
    %285 = vmatpush1.msra.mxu0 0.0
    %286 = vmatprep.subr.mxu0 0.0
    %287 = vmatpush1.msra.mxu0 0.0
    %288 = vmatprep.subr.mxu0 0.0
    %289 = vmatpush1.msra.mxu0 0.0
    %290 = vmatprep.subr.mxu0 0.0
    %291 = vmatpush1.msra.mxu0 0.0
    %292 = vmatprep.subr.mxu0 0.0
    %293 = vmatpush1.msra.mxu0 0.0
    %294 = vmatprep.subr.mxu0 0.0
    %295 = vmatpush1.msra.mxu0 0.0
    %296 = vmatprep.subr.mxu0 0.0
    %297 = vmatpush1.msra.mxu0 0.0
    %298 = vmatprep.subr.mxu0 0.0
    %299 = vmatpush1.msra.mxu0 0.0
    %300 = vmatprep.subr.mxu0 0.0
    %301 = vmatpush1.msra.mxu0 0.0
    %302 = vmatprep.subr.mxu0 0.0
    %303 = vmatpush1.msra.mxu0 0.0
    %304 = vmatprep.subr.mxu0 0.0
    %305 = vmatpush1.msra.mxu0 0.0
    %306 = vmatprep.subr.mxu0 0.0
    %307 = vmatpush1.msra.mxu0 0.0
    %308 = vmatprep.subr.mxu0 0.0
    %309 = vmatpush1.msra.mxu0 0.0
    %310 = vmatprep.subr.mxu0 0.0
    %311 = vmatpush1.msra.mxu0 0.0
    %312 = vmatprep.subr.mxu0 0.0
    %313 = vmatpush1.msra.mxu0 0.0
    %314 = vmatprep.subr.mxu0 0.0
    %315 = vmatpush1.msra.mxu0 0.0
    %316 = vmatprep.subr.mxu0 0.0
    %317 = vmatpush1.msra.mxu0 0.0
    %318 = vmatprep.subr.mxu0 0.0
    %319 = vmatpush1.msra.mxu0 0.0
    %320 = vmatprep.subr.mxu0 0.0
    %321 = vmatpush1.msra.mxu0 0.0
    %322 = vmatprep.subr.mxu0 0.0
    %323 = vmatpush1.msra.mxu0 0.0
    %324 = vmatprep.subr.mxu0 0.0
    %325 = vmatpush1.msra.mxu0 0.0
    %326 = vmatprep.subr.mxu0 0.0
    %327 = vmatpush1.msra.mxu0 0.0
    %328 = vmatprep.subr.mxu0 0.0
    %329 = vmatpush1.msra.mxu0 0.0
    %330 = vmatprep.subr.mxu0 0.0
    %331 = vmatpush1.msra.mxu0 0.0
    %332 = vmatprep.subr.mxu0 0.0
    %333 = vmatpush1.msra.mxu0 0.0
    %334 = vmatprep.subr.mxu0 0.0
    %335 = vmatpush1.msra.mxu0 0.0
    %336 = vmatprep.subr.mxu0 0.0
    %337 = vmatpush1.msra.mxu0 0.0
    %338 = vmatprep.mubr.f32.mxu0 0.0
    %v339 = vand.u32 %v91, 4294901760
    %v340 = vsub.f32 %v91, %v339
    %341 = vmatmul.mubr.f32.gmra.mrb[0].mxu0 %v340
    %v342 = vpop.f32.mrb[0].mxu0
    %v343 = vadd.f32 %v261, %v342
    %v344 = vpop.f32.mrb[0].mxu0
    %345 = vmatprep.mubr.f32.mxu0 0.0
    %v346 = vand.u32 %v94, 4294901760
    %v347 = vsub.f32 %v94, %v346
    %348 = vmatmul.mubr.f32.gmra.mrb[0].mxu0 %v347
    %v349 = vpop.f32.mrb[0].mxu0
    %v350 = vadd.f32 %v267, %v349
    %v351 = vpop.f32.mrb[0].mxu0
    %352 = vdwg.mxu0
    %353 = vmatprep.subr.mxu0 0.0
    %v354 = vand.u32 %v87, 4294901760
    %355 = vmatpush1.msra.mxu0 %v354
    %356 = vmatprep.subr.mxu0 0.0
    %v357 = vand.u32 %v88, 4294901760
    %358 = vmatpush1.msra.mxu0 %v357
    %359 = vmatprep.subr.mxu0 0.0
    %360 = vmatpush1.msra.mxu0 0.0
    %361 = vmatprep.subr.mxu0 0.0
    %362 = vmatpush1.msra.mxu0 0.0
    %363 = vmatprep.subr.mxu0 0.0
    %364 = vmatpush1.msra.mxu0 0.0
    %365 = vmatprep.subr.mxu0 0.0
    %366 = vmatpush1.msra.mxu0 0.0
    %367 = vmatprep.subr.mxu0 0.0
    %368 = vmatpush1.msra.mxu0 0.0
    %369 = vmatprep.subr.mxu0 0.0
    %370 = vmatpush1.msra.mxu0 0.0
    %371 = vmatprep.subr.mxu0 0.0
    %372 = vmatpush1.msra.mxu0 0.0
    %373 = vmatprep.subr.mxu0 0.0
    %374 = vmatpush1.msra.mxu0 0.0
    %375 = vmatprep.subr.mxu0 0.0
    %376 = vmatpush1.msra.mxu0 0.0
    %377 = vmatprep.subr.mxu0 0.0
    %378 = vmatpush1.msra.mxu0 0.0
    %379 = vmatprep.subr.mxu0 0.0
    %380 = vmatpush1.msra.mxu0 0.0
    %381 = vmatprep.subr.mxu0 0.0
    %382 = vmatpush1.msra.mxu0 0.0
    %383 = vmatprep.subr.mxu0 0.0
    %384 = vmatpush1.msra.mxu0 0.0
    %385 = vmatprep.subr.mxu0 0.0
    %386 = vmatpush1.msra.mxu0 0.0
    %387 = vmatprep.subr.mxu0 0.0
    %388 = vmatpush1.msra.mxu0 0.0
    %389 = vmatprep.subr.mxu0 0.0
    %390 = vmatpush1.msra.mxu0 0.0
    %391 = vmatprep.subr.mxu0 0.0
    %392 = vmatpush1.msra.mxu0 0.0
    %393 = vmatprep.subr.mxu0 0.0
    %394 = vmatpush1.msra.mxu0 0.0
    %395 = vmatprep.subr.mxu0 0.0
    %396 = vmatpush1.msra.mxu0 0.0
    %397 = vmatprep.subr.mxu0 0.0
    %398 = vmatpush1.msra.mxu0 0.0
    %399 = vmatprep.subr.mxu0 0.0
    %400 = vmatpush1.msra.mxu0 0.0
    %401 = vmatprep.subr.mxu0 0.0
    %402 = vmatpush1.msra.mxu0 0.0
    %403 = vmatprep.subr.mxu0 0.0
    %404 = vmatpush1.msra.mxu0 0.0
    %405 = vmatprep.subr.mxu0 0.0
    %406 = vmatpush1.msra.mxu0 0.0
    %407 = vmatprep.subr.mxu0 0.0
    %408 = vmatpush1.msra.mxu0 0.0
    %409 = vmatprep.subr.mxu0 0.0
    %410 = vmatpush1.msra.mxu0 0.0
    %411 = vmatprep.subr.mxu0 0.0
    %412 = vmatpush1.msra.mxu0 0.0
    %413 = vmatprep.subr.mxu0 0.0
    %414 = vmatpush1.msra.mxu0 0.0
    %415 = vmatprep.subr.mxu0 0.0
    %416 = vmatpush1.msra.mxu0 0.0
    %417 = vmatprep.subr.mxu0 0.0
    %418 = vmatpush1.msra.mxu0 0.0
    %419 = vmatprep.mubr.f32.mxu0 0.0
    %v420 = vand.u32 %v91, 4294901760
    %v421 = vsub.f32 %v91, %v420
    %v422 = vand.u32 %v421, 4294901760
    %423 = vmatmul.mubr.f32.gmra.mrb[0].mxu0 %v422
    %v424 = vpop.f32.mrb[0].mxu0
    %v425 = vadd.f32 %v343, %v424
    %v426 = vpop.f32.mrb[0].mxu0
    %427 = vmatprep.mubr.f32.mxu0 0.0
    %v428 = vand.u32 %v94, 4294901760
    %v429 = vsub.f32 %v94, %v428
    %v430 = vand.u32 %v429, 4294901760
    %431 = vmatmul.mubr.f32.gmra.mrb[0].mxu0 %v430
    %v432 = vpop.f32.mrb[0].mxu0
    %v433 = vadd.f32 %v350, %v432
    %v434 = vpop.f32.mrb[0].mxu0
    %435 = vdwg.mxu0
    %436 = vmatprep.subr.mxu0 0.0
    %v437 = vand.u32 %v87, 4294901760
    %v438 = vsub.f32 %v87, %v437
    %v439 = vand.u32 %v438, 4294901760
    %440 = vmatpush1.msra.mxu0 %v439
    %441 = vmatprep.subr.mxu0 0.0
    %v442 = vand.u32 %v88, 4294901760
    %v443 = vsub.f32 %v88, %v442
    %v444 = vand.u32 %v443, 4294901760
    %445 = vmatpush1.msra.mxu0 %v444
    %446 = vmatprep.subr.mxu0 0.0
    %447 = vmatpush1.msra.mxu0 0.0
    %448 = vmatprep.subr.mxu0 0.0
    %449 = vmatpush1.msra.mxu0 0.0
    %450 = vmatprep.subr.mxu0 0.0
    %451 = vmatpush1.msra.mxu0 0.0
    %452 = vmatprep.subr.mxu0 0.0
    %453 = vmatpush1.msra.mxu0 0.0
    %454 = vmatprep.subr.mxu0 0.0
    %455 = vmatpush1.msra.mxu0 0.0
    %456 = vmatprep.subr.mxu0 0.0
    %457 = vmatpush1.msra.mxu0 0.0
    %458 = vmatprep.subr.mxu0 0.0
    %459 = vmatpush1.msra.mxu0 0.0
    %460 = vmatprep.subr.mxu0 0.0
    %461 = vmatpush1.msra.mxu0 0.0
    %462 = vmatprep.subr.mxu0 0.0
    %463 = vmatpush1.msra.mxu0 0.0
    %464 = vmatprep.subr.mxu0 0.0
    %465 = vmatpush1.msra.mxu0 0.0
    %466 = vmatprep.subr.mxu0 0.0
    %467 = vmatpush1.msra.mxu0 0.0
    %468 = vmatprep.subr.mxu0 0.0
    %469 = vmatpush1.msra.mxu0 0.0
    %470 = vmatprep.subr.mxu0 0.0
    %471 = vmatpush1.msra.mxu0 0.0
    %472 = vmatprep.subr.mxu0 0.0
    %473 = vmatpush1.msra.mxu0 0.0
    %474 = vmatprep.subr.mxu0 0.0
    %475 = vmatpush1.msra.mxu0 0.0
    %476 = vmatprep.subr.mxu0 0.0
    %477 = vmatpush1.msra.mxu0 0.0
    %478 = vmatprep.subr.mxu0 0.0
    %479 = vmatpush1.msra.mxu0 0.0
    %480 = vmatprep.subr.mxu0 0.0
    %481 = vmatpush1.msra.mxu0 0.0
    %482 = vmatprep.subr.mxu0 0.0
    %483 = vmatpush1.msra.mxu0 0.0
    %484 = vmatprep.subr.mxu0 0.0
    %485 = vmatpush1.msra.mxu0 0.0
    %486 = vmatprep.subr.mxu0 0.0
    %487 = vmatpush1.msra.mxu0 0.0
    %488 = vmatprep.subr.mxu0 0.0
    %489 = vmatpush1.msra.mxu0 0.0
    %490 = vmatprep.subr.mxu0 0.0
    %491 = vmatpush1.msra.mxu0 0.0
    %492 = vmatprep.subr.mxu0 0.0
    %493 = vmatpush1.msra.mxu0 0.0
    %494 = vmatprep.subr.mxu0 0.0
    %495 = vmatpush1.msra.mxu0 0.0
    %496 = vmatprep.subr.mxu0 0.0
    %497 = vmatpush1.msra.mxu0 0.0
    %498 = vmatprep.subr.mxu0 0.0
    %499 = vmatpush1.msra.mxu0 0.0
    %500 = vmatprep.subr.mxu0 0.0
    %501 = vmatpush1.msra.mxu0 0.0
    %502 = vmatprep.subr.mxu0 0.0
    %503 = vmatpush1.msra.mxu0 0.0
    %504 = vmatprep.subr.mxu0 0.0
    %505 = vmatpush1.msra.mxu0 0.0
    %506 = vmatprep.mubr.f32.mxu0 0.0
    %v507 = vand.u32 %v91, 4294901760
    %508 = vmatmul.mubr.f32.gmra.mrb[0].mxu0 %v507
    %v509 = vpop.f32.mrb[0].mxu0
    %v510 = vadd.f32 %v425, %v509
    %v511 = vpop.f32.mrb[0].mxu0
    %512 = vmatprep.mubr.f32.mxu0 0.0
    %v513 = vand.u32 %v94, 4294901760
    %514 = vmatmul.mubr.f32.gmra.mrb[0].mxu0 %v513
    %v515 = vpop.f32.mrb[0].mxu0
    %v516 = vadd.f32 %v433, %v515
    %v517 = vpop.f32.mrb[0].mxu0
    %518 = vdwg.mxu0
    %519 = vmatprep.subr.mxu0 0.0
    %v520 = vand.u32 %v87, 4294901760
    %521 = vmatpush1.msra.mxu0 %v520
    %522 = vmatprep.subr.mxu0 0.0
    %v523 = vand.u32 %v88, 4294901760
    %524 = vmatpush1.msra.mxu0 %v523
    %525 = vmatprep.subr.mxu0 0.0
    %526 = vmatpush1.msra.mxu0 0.0
    %527 = vmatprep.subr.mxu0 0.0
    %528 = vmatpush1.msra.mxu0 0.0
    %529 = vmatprep.subr.mxu0 0.0
    %530 = vmatpush1.msra.mxu0 0.0
    %531 = vmatprep.subr.mxu0 0.0
    %532 = vmatpush1.msra.mxu0 0.0
    %533 = vmatprep.subr.mxu0 0.0
    %534 = vmatpush1.msra.mxu0 0.0
    %535 = vmatprep.subr.mxu0 0.0
    %536 = vmatpush1.msra.mxu0 0.0
    %537 = vmatprep.subr.mxu0 0.0
    %538 = vmatpush1.msra.mxu0 0.0
    %539 = vmatprep.subr.mxu0 0.0
    %540 = vmatpush1.msra.mxu0 0.0
    %541 = vmatprep.subr.mxu0 0.0
    %542 = vmatpush1.msra.mxu0 0.0
    %543 = vmatprep.subr.mxu0 0.0
    %544 = vmatpush1.msra.mxu0 0.0
    %545 = vmatprep.subr.mxu0 0.0
    %546 = vmatpush1.msra.mxu0 0.0
    %547 = vmatprep.subr.mxu0 0.0
    %548 = vmatpush1.msra.mxu0 0.0
    %549 = vmatprep.subr.mxu0 0.0
    %550 = vmatpush1.msra.mxu0 0.0
    %551 = vmatprep.subr.mxu0 0.0
    %552 = vmatpush1.msra.mxu0 0.0
    %553 = vmatprep.subr.mxu0 0.0
    %554 = vmatpush1.msra.mxu0 0.0
    %555 = vmatprep.subr.mxu0 0.0
    %556 = vmatpush1.msra.mxu0 0.0
    %557 = vmatprep.subr.mxu0 0.0
    %558 = vmatpush1.msra.mxu0 0.0
    %559 = vmatprep.subr.mxu0 0.0
    %560 = vmatpush1.msra.mxu0 0.0
    %561 = vmatprep.subr.mxu0 0.0
    %562 = vmatpush1.msra.mxu0 0.0
    %563 = vmatprep.subr.mxu0 0.0
    %564 = vmatpush1.msra.mxu0 0.0
    %565 = vmatprep.subr.mxu0 0.0
    %566 = vmatpush1.msra.mxu0 0.0
    %567 = vmatprep.subr.mxu0 0.0
    %568 = vmatpush1.msra.mxu0 0.0
    %569 = vmatprep.subr.mxu0 0.0
    %570 = vmatpush1.msra.mxu0 0.0
    %571 = vmatprep.subr.mxu0 0.0
    %572 = vmatpush1.msra.mxu0 0.0
    %573 = vmatprep.subr.mxu0 0.0
    %574 = vmatpush1.msra.mxu0 0.0
    %575 = vmatprep.subr.mxu0 0.0
    %576 = vmatpush1.msra.mxu0 0.0
    %577 = vmatprep.subr.mxu0 0.0
    %578 = vmatpush1.msra.mxu0 0.0
    %579 = vmatprep.subr.mxu0 0.0
    %580 = vmatpush1.msra.mxu0 0.0
    %581 = vmatprep.subr.mxu0 0.0
    %582 = vmatpush1.msra.mxu0 0.0
    %583 = vmatprep.subr.mxu0 0.0
    %584 = vmatpush1.msra.mxu0 0.0
    %585 = vmatprep.mubr.f32.mxu0 0.0
    %v586 = vand.u32 %v91, 4294901760
    %587 = vmatmul.mubr.f32.gmra.mrb[0].mxu0 %v586
    %v588 = vpop.f32.mrb[0].mxu0
    %v589 = vadd.f32 %v510, %v588
    %v590 = vpop.f32.mrb[0].mxu0
    %591 = vmatprep.mubr.f32.mxu0 0.0
    %v592 = vand.u32 %v94, 4294901760
    %593 = vmatmul.mubr.f32.gmra.mrb[0].mxu0 %v592
    %v594 = vpop.f32.mrb[0].mxu0
    %v595 = vadd.f32 %v516, %v594
    %v596 = vpop.f32.mrb[0].mxu0
    %597 = vdwg.mxu0
    %v599 = vsel %vm89, %v81, 0
    %v602 = vsel %vm89, %v82, 0
    %604 = vmatprep.subr.mxu0 0.0
    %v605 = vand.u32 %v85, 4294901760
    %606 = vmatpush1.msra.mxu0 %v605
    %607 = vmatprep.subr.mxu0 0.0
    %v608 = vand.u32 %v86, 4294901760
    %609 = vmatpush1.msra.mxu0 %v608
    %610 = vmatprep.subr.mxu0 0.0
    %611 = vmatpush1.msra.mxu0 0.0
    %612 = vmatprep.subr.mxu0 0.0
    %613 = vmatpush1.msra.mxu0 0.0
    %614 = vmatprep.subr.mxu0 0.0
    %615 = vmatpush1.msra.mxu0 0.0
    %616 = vmatprep.subr.mxu0 0.0
    %617 = vmatpush1.msra.mxu0 0.0
    %618 = vmatprep.subr.mxu0 0.0
    %619 = vmatpush1.msra.mxu0 0.0
    %620 = vmatprep.subr.mxu0 0.0
    %621 = vmatpush1.msra.mxu0 0.0
    %622 = vmatprep.subr.mxu0 0.0
    %623 = vmatpush1.msra.mxu0 0.0
    %624 = vmatprep.subr.mxu0 0.0
    %625 = vmatpush1.msra.mxu0 0.0
    %626 = vmatprep.subr.mxu0 0.0
    %627 = vmatpush1.msra.mxu0 0.0
    %628 = vmatprep.subr.mxu0 0.0
    %629 = vmatpush1.msra.mxu0 0.0
    %630 = vmatprep.subr.mxu0 0.0
    %631 = vmatpush1.msra.mxu0 0.0
    %632 = vmatprep.subr.mxu0 0.0
    %633 = vmatpush1.msra.mxu0 0.0
    %634 = vmatprep.subr.mxu0 0.0
    %635 = vmatpush1.msra.mxu0 0.0
    %636 = vmatprep.subr.mxu0 0.0
    %637 = vmatpush1.msra.mxu0 0.0
    %638 = vmatprep.subr.mxu0 0.0
    %639 = vmatpush1.msra.mxu0 0.0
    %640 = vmatprep.subr.mxu0 0.0
    %641 = vmatpush1.msra.mxu0 0.0
    %642 = vmatprep.subr.mxu0 0.0
    %643 = vmatpush1.msra.mxu0 0.0
    %644 = vmatprep.subr.mxu0 0.0
    %645 = vmatpush1.msra.mxu0 0.0
    %646 = vmatprep.subr.mxu0 0.0
    %647 = vmatpush1.msra.mxu0 0.0
    %648 = vmatprep.subr.mxu0 0.0
    %649 = vmatpush1.msra.mxu0 0.0
    %650 = vmatprep.subr.mxu0 0.0
    %651 = vmatpush1.msra.mxu0 0.0
    %652 = vmatprep.subr.mxu0 0.0
    %653 = vmatpush1.msra.mxu0 0.0
    %654 = vmatprep.subr.mxu0 0.0
    %655 = vmatpush1.msra.mxu0 0.0
    %656 = vmatprep.subr.mxu0 0.0
    %657 = vmatpush1.msra.mxu0 0.0
    %658 = vmatprep.subr.mxu0 0.0
    %659 = vmatpush1.msra.mxu0 0.0
    %660 = vmatprep.subr.mxu0 0.0
    %661 = vmatpush1.msra.mxu0 0.0
    %662 = vmatprep.subr.mxu0 0.0
    %663 = vmatpush1.msra.mxu0 0.0
    %664 = vmatprep.subr.mxu0 0.0
    %665 = vmatpush1.msra.mxu0 0.0
    %666 = vmatprep.subr.mxu0 0.0
    %667 = vmatpush1.msra.mxu0 0.0
    %668 = vmatprep.subr.mxu0 0.0
    %669 = vmatpush1.msra.mxu0 0.0
    %670 = vmatprep.mubr.f32.mxu0 0.0
    %v671 = vand.u32 %v599, 4294901760
    %v672 = vsub.f32 %v599, %v671
    %v673 = vand.u32 %v672, 4294901760
    %v674 = vsub.f32 %v672, %v673
    %v675 = vand.u32 %v674, 4294901760
    %676 = vmatmul.mubr.f32.gmra.mrb[0].mxu0 %v675
    %v677 = vpop.f32.mrb[0].mxu0
    %v678 = vadd.f32 %v589, %v677
    %v679 = vpop.f32.mrb[0].mxu0
    %680 = vmatprep.mubr.f32.mxu0 0.0
    %v681 = vand.u32 %v602, 4294901760
    %v682 = vsub.f32 %v602, %v681
    %v683 = vand.u32 %v682, 4294901760
    %v684 = vsub.f32 %v682, %v683
    %v685 = vand.u32 %v684, 4294901760
    %686 = vmatmul.mubr.f32.gmra.mrb[0].mxu0 %v685
    %v687 = vpop.f32.mrb[0].mxu0
    %v688 = vadd.f32 %v595, %v687
    %v689 = vpop.f32.mrb[0].mxu0
    %690 = vdwg.mxu0
    %691 = vmatprep.subr.mxu0 0.0
    %v692 = vand.u32 %v85, 4294901760
    %v693 = vsub.f32 %v85, %v692
    %v694 = vand.u32 %v693, 4294901760
    %v695 = vsub.f32 %v693, %v694
    %v696 = vand.u32 %v695, 4294901760
    %697 = vmatpush1.msra.mxu0 %v696
    %698 = vmatprep.subr.mxu0 0.0
    %v699 = vand.u32 %v86, 4294901760
    %v700 = vsub.f32 %v86, %v699
    %v701 = vand.u32 %v700, 4294901760
    %v702 = vsub.f32 %v700, %v701
    %v703 = vand.u32 %v702, 4294901760
    %704 = vmatpush1.msra.mxu0 %v703
    %705 = vmatprep.subr.mxu0 0.0
    %706 = vmatpush1.msra.mxu0 0.0
    %707 = vmatprep.subr.mxu0 0.0
    %708 = vmatpush1.msra.mxu0 0.0
    %709 = vmatprep.subr.mxu0 0.0
    %710 = vmatpush1.msra.mxu0 0.0
    %711 = vmatprep.subr.mxu0 0.0
    %712 = vmatpush1.msra.mxu0 0.0
    %713 = vmatprep.subr.mxu0 0.0
    %714 = vmatpush1.msra.mxu0 0.0
    %715 = vmatprep.subr.mxu0 0.0
    %716 = vmatpush1.msra.mxu0 0.0
    %717 = vmatprep.subr.mxu0 0.0
    %718 = vmatpush1.msra.mxu0 0.0
    %719 = vmatprep.subr.mxu0 0.0
    %720 = vmatpush1.msra.mxu0 0.0
    %721 = vmatprep.subr.mxu0 0.0
    %722 = vmatpush1.msra.mxu0 0.0
    %723 = vmatprep.subr.mxu0 0.0
    %724 = vmatpush1.msra.mxu0 0.0
    %725 = vmatprep.subr.mxu0 0.0
    %726 = vmatpush1.msra.mxu0 0.0
    %727 = vmatprep.subr.mxu0 0.0
    %728 = vmatpush1.msra.mxu0 0.0
    %729 = vmatprep.subr.mxu0 0.0
    %730 = vmatpush1.msra.mxu0 0.0
    %731 = vmatprep.subr.mxu0 0.0
    %732 = vmatpush1.msra.mxu0 0.0
    %733 = vmatprep.subr.mxu0 0.0
    %734 = vmatpush1.msra.mxu0 0.0
    %735 = vmatprep.subr.mxu0 0.0
    %736 = vmatpush1.msra.mxu0 0.0
    %737 = vmatprep.subr.mxu0 0.0
    %738 = vmatpush1.msra.mxu0 0.0
    %739 = vmatprep.subr.mxu0 0.0
    %740 = vmatpush1.msra.mxu0 0.0
    %741 = vmatprep.subr.mxu0 0.0
    %742 = vmatpush1.msra.mxu0 0.0
    %743 = vmatprep.subr.mxu0 0.0
    %744 = vmatpush1.msra.mxu0 0.0
    %745 = vmatprep.subr.mxu0 0.0
    %746 = vmatpush1.msra.mxu0 0.0
    %747 = vmatprep.subr.mxu0 0.0
    %748 = vmatpush1.msra.mxu0 0.0
    %749 = vmatprep.subr.mxu0 0.0
    %750 = vmatpush1.msra.mxu0 0.0
    %751 = vmatprep.subr.mxu0 0.0
    %752 = vmatpush1.msra.mxu0 0.0
    %753 = vmatprep.subr.mxu0 0.0
    %754 = vmatpush1.msra.mxu0 0.0
    %755 = vmatprep.subr.mxu0 0.0
    %756 = vmatpush1.msra.mxu0 0.0
    %757 = vmatprep.subr.mxu0 0.0
    %758 = vmatpush1.msra.mxu0 0.0
    %759 = vmatprep.subr.mxu0 0.0
    %760 = vmatpush1.msra.mxu0 0.0
    %761 = vmatprep.subr.mxu0 0.0
    %762 = vmatpush1.msra.mxu0 0.0
    %763 = vmatprep.subr.mxu0 0.0
    %764 = vmatpush1.msra.mxu0 0.0
    %765 = vmatprep.mubr.f32.mxu0 0.0
    %v766 = vand.u32 %v599, 4294901760
    %767 = vmatmul.mubr.f32.gmra.mrb[0].mxu0 %v766
    %v768 = vpop.f32.mrb[0].mxu0
    %v769 = vadd.f32 %v678, %v768
    %v770 = vpop.f32.mrb[0].mxu0
    %771 = vmatprep.mubr.f32.mxu0 0.0
    %v772 = vand.u32 %v602, 4294901760
    %773 = vmatmul.mubr.f32.gmra.mrb[0].mxu0 %v772
    %v774 = vpop.f32.mrb[0].mxu0
    %v775 = vadd.f32 %v688, %v774
    %v776 = vpop.f32.mrb[0].mxu0
    %777 = vdwg.mxu0
    %778 = vmatprep.subr.mxu0 0.0
    %v779 = vand.u32 %v85, 4294901760
    %v780 = vsub.f32 %v85, %v779
    %781 = vmatpush1.msra.mxu0 %v780
    %782 = vmatprep.subr.mxu0 0.0
    %v783 = vand.u32 %v86, 4294901760
    %v784 = vsub.f32 %v86, %v783
    %785 = vmatpush1.msra.mxu0 %v784
    %786 = vmatprep.subr.mxu0 0.0
    %787 = vmatpush1.msra.mxu0 0.0
    %788 = vmatprep.subr.mxu0 0.0
    %789 = vmatpush1.msra.mxu0 0.0
    %790 = vmatprep.subr.mxu0 0.0
    %791 = vmatpush1.msra.mxu0 0.0
    %792 = vmatprep.subr.mxu0 0.0
    %793 = vmatpush1.msra.mxu0 0.0
    %794 = vmatprep.subr.mxu0 0.0
    %795 = vmatpush1.msra.mxu0 0.0
    %796 = vmatprep.subr.mxu0 0.0
    %797 = vmatpush1.msra.mxu0 0.0
    %798 = vmatprep.subr.mxu0 0.0
    %799 = vmatpush1.msra.mxu0 0.0
    %800 = vmatprep.subr.mxu0 0.0
    %801 = vmatpush1.msra.mxu0 0.0
    %802 = vmatprep.subr.mxu0 0.0
    %803 = vmatpush1.msra.mxu0 0.0
    %804 = vmatprep.subr.mxu0 0.0
    %805 = vmatpush1.msra.mxu0 0.0
    %806 = vmatprep.subr.mxu0 0.0
    %807 = vmatpush1.msra.mxu0 0.0
    %808 = vmatprep.subr.mxu0 0.0
    %809 = vmatpush1.msra.mxu0 0.0
    %810 = vmatprep.subr.mxu0 0.0
    %811 = vmatpush1.msra.mxu0 0.0
    %812 = vmatprep.subr.mxu0 0.0
    %813 = vmatpush1.msra.mxu0 0.0
    %814 = vmatprep.subr.mxu0 0.0
    %815 = vmatpush1.msra.mxu0 0.0
    %816 = vmatprep.subr.mxu0 0.0
    %817 = vmatpush1.msra.mxu0 0.0
    %818 = vmatprep.subr.mxu0 0.0
    %819 = vmatpush1.msra.mxu0 0.0
    %820 = vmatprep.subr.mxu0 0.0
    %821 = vmatpush1.msra.mxu0 0.0
    %822 = vmatprep.subr.mxu0 0.0
    %823 = vmatpush1.msra.mxu0 0.0
    %824 = vmatprep.subr.mxu0 0.0
    %825 = vmatpush1.msra.mxu0 0.0
    %826 = vmatprep.subr.mxu0 0.0
    %827 = vmatpush1.msra.mxu0 0.0
    %828 = vmatprep.subr.mxu0 0.0
    %829 = vmatpush1.msra.mxu0 0.0
    %830 = vmatprep.subr.mxu0 0.0
    %831 = vmatpush1.msra.mxu0 0.0
    %832 = vmatprep.subr.mxu0 0.0
    %833 = vmatpush1.msra.mxu0 0.0
    %834 = vmatprep.subr.mxu0 0.0
    %835 = vmatpush1.msra.mxu0 0.0
    %836 = vmatprep.subr.mxu0 0.0
    %837 = vmatpush1.msra.mxu0 0.0
    %838 = vmatprep.subr.mxu0 0.0
    %839 = vmatpush1.msra.mxu0 0.0
    %840 = vmatprep.subr.mxu0 0.0
    %841 = vmatpush1.msra.mxu0 0.0
    %842 = vmatprep.subr.mxu0 0.0
    %843 = vmatpush1.msra.mxu0 0.0
    %844 = vmatprep.subr.mxu0 0.0
    %845 = vmatpush1.msra.mxu0 0.0
    %846 = vmatprep.mubr.f32.mxu0 0.0
    %v847 = vand.u32 %v599, 4294901760
    %v848 = vsub.f32 %v599, %v847
    %849 = vmatmul.mubr.f32.gmra.mrb[0].mxu0 %v848
    %v850 = vpop.f32.mrb[0].mxu0
    %v851 = vadd.f32 %v769, %v850
    %v852 = vpop.f32.mrb[0].mxu0
    %853 = vmatprep.mubr.f32.mxu0 0.0
    %v854 = vand.u32 %v602, 4294901760
    %v855 = vsub.f32 %v602, %v854
    %856 = vmatmul.mubr.f32.gmra.mrb[0].mxu0 %v855
    %v857 = vpop.f32.mrb[0].mxu0
    %v858 = vadd.f32 %v775, %v857
    %v859 = vpop.f32.mrb[0].mxu0
    %860 = vdwg.mxu0
    %861 = vmatprep.subr.mxu0 0.0
    %v862 = vand.u32 %v85, 4294901760
    %863 = vmatpush1.msra.mxu0 %v862
    %864 = vmatprep.subr.mxu0 0.0
    %v865 = vand.u32 %v86, 4294901760
    %866 = vmatpush1.msra.mxu0 %v865
    %867 = vmatprep.subr.mxu0 0.0
    %868 = vmatpush1.msra.mxu0 0.0
    %869 = vmatprep.subr.mxu0 0.0
    %870 = vmatpush1.msra.mxu0 0.0
    %871 = vmatprep.subr.mxu0 0.0
    %872 = vmatpush1.msra.mxu0 0.0
    %873 = vmatprep.subr.mxu0 0.0
    %874 = vmatpush1.msra.mxu0 0.0
    %875 = vmatprep.subr.mxu0 0.0
    %876 = vmatpush1.msra.mxu0 0.0
    %877 = vmatprep.subr.mxu0 0.0
    %878 = vmatpush1.msra.mxu0 0.0
    %879 = vmatprep.subr.mxu0 0.0
    %880 = vmatpush1.msra.mxu0 0.0
    %881 = vmatprep.subr.mxu0 0.0
    %882 = vmatpush1.msra.mxu0 0.0
    %883 = vmatprep.subr.mxu0 0.0
    %884 = vmatpush1.msra.mxu0 0.0
    %885 = vmatprep.subr.mxu0 0.0
    %886 = vmatpush1.msra.mxu0 0.0
    %887 = vmatprep.subr.mxu0 0.0
    %888 = vmatpush1.msra.mxu0 0.0
    %889 = vmatprep.subr.mxu0 0.0
    %890 = vmatpush1.msra.mxu0 0.0
    %891 = vmatprep.subr.mxu0 0.0
    %892 = vmatpush1.msra.mxu0 0.0
    %893 = vmatprep.subr.mxu0 0.0
    %894 = vmatpush1.msra.mxu0 0.0
    %895 = vmatprep.subr.mxu0 0.0
    %896 = vmatpush1.msra.mxu0 0.0
    %897 = vmatprep.subr.mxu0 0.0
    %898 = vmatpush1.msra.mxu0 0.0
    %899 = vmatprep.subr.mxu0 0.0
    %900 = vmatpush1.msra.mxu0 0.0
    %901 = vmatprep.subr.mxu0 0.0
    %902 = vmatpush1.msra.mxu0 0.0
    %903 = vmatprep.subr.mxu0 0.0
    %904 = vmatpush1.msra.mxu0 0.0
    %905 = vmatprep.subr.mxu0 0.0
    %906 = vmatpush1.msra.mxu0 0.0
    %907 = vmatprep.subr.mxu0 0.0
    %908 = vmatpush1.msra.mxu0 0.0
    %909 = vmatprep.subr.mxu0 0.0
    %910 = vmatpush1.msra.mxu0 0.0
    %911 = vmatprep.subr.mxu0 0.0
    %912 = vmatpush1.msra.mxu0 0.0
    %913 = vmatprep.subr.mxu0 0.0
    %914 = vmatpush1.msra.mxu0 0.0
    %915 = vmatprep.subr.mxu0 0.0
    %916 = vmatpush1.msra.mxu0 0.0
    %917 = vmatprep.subr.mxu0 0.0
    %918 = vmatpush1.msra.mxu0 0.0
    %919 = vmatprep.subr.mxu0 0.0
    %920 = vmatpush1.msra.mxu0 0.0
    %921 = vmatprep.subr.mxu0 0.0
    %922 = vmatpush1.msra.mxu0 0.0
    %923 = vmatprep.subr.mxu0 0.0
    %924 = vmatpush1.msra.mxu0 0.0
    %925 = vmatprep.subr.mxu0 0.0
    %926 = vmatpush1.msra.mxu0 0.0
    %927 = vmatprep.mubr.f32.mxu0 0.0
    %v928 = vand.u32 %v599, 4294901760
    %v929 = vsub.f32 %v599, %v928
    %v930 = vand.u32 %v929, 4294901760
    %931 = vmatmul.mubr.f32.gmra.mrb[0].mxu0 %v930
    %v932 = vpop.f32.mrb[0].mxu0
    %v933 = vadd.f32 %v851, %v932
    %v934 = vpop.f32.mrb[0].mxu0
    %935 = vmatprep.mubr.f32.mxu0 0.0
    %v936 = vand.u32 %v602, 4294901760
    %v937 = vsub.f32 %v602, %v936
    %v938 = vand.u32 %v937, 4294901760
    %939 = vmatmul.mubr.f32.gmra.mrb[0].mxu0 %v938
    %v940 = vpop.f32.mrb[0].mxu0
    %v941 = vadd.f32 %v858, %v940
    %v942 = vpop.f32.mrb[0].mxu0
    %943 = vdwg.mxu0
    %944 = vmatprep.subr.mxu0 0.0
    %v945 = vand.u32 %v85, 4294901760
    %v946 = vsub.f32 %v85, %v945
    %v947 = vand.u32 %v946, 4294901760
    %948 = vmatpush1.msra.mxu0 %v947
    %949 = vmatprep.subr.mxu0 0.0
    %v950 = vand.u32 %v86, 4294901760
    %v951 = vsub.f32 %v86, %v950
    %v952 = vand.u32 %v951, 4294901760
    %953 = vmatpush1.msra.mxu0 %v952
    %954 = vmatprep.subr.mxu0 0.0
    %955 = vmatpush1.msra.mxu0 0.0
    %956 = vmatprep.subr.mxu0 0.0
    %957 = vmatpush1.msra.mxu0 0.0
    %958 = vmatprep.subr.mxu0 0.0
    %959 = vmatpush1.msra.mxu0 0.0
    %960 = vmatprep.subr.mxu0 0.0
    %961 = vmatpush1.msra.mxu0 0.0
    %962 = vmatprep.subr.mxu0 0.0
    %963 = vmatpush1.msra.mxu0 0.0
    %964 = vmatprep.subr.mxu0 0.0
    %965 = vmatpush1.msra.mxu0 0.0
    %966 = vmatprep.subr.mxu0 0.0
    %967 = vmatpush1.msra.mxu0 0.0
    %968 = vmatprep.subr.mxu0 0.0
    %969 = vmatpush1.msra.mxu0 0.0
    %970 = vmatprep.subr.mxu0 0.0
    %971 = vmatpush1.msra.mxu0 0.0
    %972 = vmatprep.subr.mxu0 0.0
    %973 = vmatpush1.msra.mxu0 0.0
    %974 = vmatprep.subr.mxu0 0.0
    %975 = vmatpush1.msra.mxu0 0.0
    %976 = vmatprep.subr.mxu0 0.0
    %977 = vmatpush1.msra.mxu0 0.0
    %978 = vmatprep.subr.mxu0 0.0
    %979 = vmatpush1.msra.mxu0 0.0
    %980 = vmatprep.subr.mxu0 0.0
    %981 = vmatpush1.msra.mxu0 0.0
    %982 = vmatprep.subr.mxu0 0.0
    %983 = vmatpush1.msra.mxu0 0.0
    %984 = vmatprep.subr.mxu0 0.0
    %985 = vmatpush1.msra.mxu0 0.0
    %986 = vmatprep.subr.mxu0 0.0
    %987 = vmatpush1.msra.mxu0 0.0
    %988 = vmatprep.subr.mxu0 0.0
    %989 = vmatpush1.msra.mxu0 0.0
    %990 = vmatprep.subr.mxu0 0.0
    %991 = vmatpush1.msra.mxu0 0.0
    %992 = vmatprep.subr.mxu0 0.0
    %993 = vmatpush1.msra.mxu0 0.0
    %994 = vmatprep.subr.mxu0 0.0
    %995 = vmatpush1.msra.mxu0 0.0
    %996 = vmatprep.subr.mxu0 0.0
    %997 = vmatpush1.msra.mxu0 0.0
    %998 = vmatprep.subr.mxu0 0.0
    %999 = vmatpush1.msra.mxu0 0.0
    %1000 = vmatprep.subr.mxu0 0.0
    %1001 = vmatpush1.msra.mxu0 0.0
    %1002 = vmatprep.subr.mxu0 0.0
    %1003 = vmatpush1.msra.mxu0 0.0
    %1004 = vmatprep.subr.mxu0 0.0
    %1005 = vmatpush1.msra.mxu0 0.0
    %1006 = vmatprep.subr.mxu0 0.0
    %1007 = vmatpush1.msra.mxu0 0.0
    %1008 = vmatprep.subr.mxu0 0.0
    %1009 = vmatpush1.msra.mxu0 0.0
    %1010 = vmatprep.subr.mxu0 0.0
    %1011 = vmatpush1.msra.mxu0 0.0
    %1012 = vmatprep.subr.mxu0 0.0
    %1013 = vmatpush1.msra.mxu0 0.0
    %1014 = vmatprep.mubr.f32.mxu0 0.0
    %v1015 = vand.u32 %v599, 4294901760
    %1016 = vmatmul.mubr.f32.gmra.mrb[0].mxu0 %v1015
    %v1017 = vpop.f32.mrb[0].mxu0
    %v1018 = vadd.f32 %v933, %v1017
    %v1019 = vpop.f32.mrb[0].mxu0
    %1020 = vmatprep.mubr.f32.mxu0 0.0
    %v1021 = vand.u32 %v602, 4294901760
    %1022 = vmatmul.mubr.f32.gmra.mrb[0].mxu0 %v1021
    %v1023 = vpop.f32.mrb[0].mxu0
    %v1024 = vadd.f32 %v941, %v1023
    %v1025 = vpop.f32.mrb[0].mxu0
    %1026 = vdwg.mxu0
    %1027 = vmatprep.subr.mxu0 0.0
    %v1028 = vand.u32 %v85, 4294901760
    %1029 = vmatpush1.msra.mxu0 %v1028
    %1030 = vmatprep.subr.mxu0 0.0
    %v1031 = vand.u32 %v86, 4294901760
    %1032 = vmatpush1.msra.mxu0 %v1031
    %1033 = vmatprep.subr.mxu0 0.0
    %1034 = vmatpush1.msra.mxu0 0.0
    %1035 = vmatprep.subr.mxu0 0.0
    %1036 = vmatpush1.msra.mxu0 0.0
    %1037 = vmatprep.subr.mxu0 0.0
    %1038 = vmatpush1.msra.mxu0 0.0
    %1039 = vmatprep.subr.mxu0 0.0
    %1040 = vmatpush1.msra.mxu0 0.0
    %1041 = vmatprep.subr.mxu0 0.0
    %1042 = vmatpush1.msra.mxu0 0.0
    %1043 = vmatprep.subr.mxu0 0.0
    %1044 = vmatpush1.msra.mxu0 0.0
    %1045 = vmatprep.subr.mxu0 0.0
    %1046 = vmatpush1.msra.mxu0 0.0
    %1047 = vmatprep.subr.mxu0 0.0
    %1048 = vmatpush1.msra.mxu0 0.0
    %1049 = vmatprep.subr.mxu0 0.0
    %1050 = vmatpush1.msra.mxu0 0.0
    %1051 = vmatprep.subr.mxu0 0.0
    %1052 = vmatpush1.msra.mxu0 0.0
    %1053 = vmatprep.subr.mxu0 0.0
    %1054 = vmatpush1.msra.mxu0 0.0
    %1055 = vmatprep.subr.mxu0 0.0
    %1056 = vmatpush1.msra.mxu0 0.0
    %1057 = vmatprep.subr.mxu0 0.0
    %1058 = vmatpush1.msra.mxu0 0.0
    %1059 = vmatprep.subr.mxu0 0.0
    %1060 = vmatpush1.msra.mxu0 0.0
    %1061 = vmatprep.subr.mxu0 0.0
    %1062 = vmatpush1.msra.mxu0 0.0
    %1063 = vmatprep.subr.mxu0 0.0
    %1064 = vmatpush1.msra.mxu0 0.0
    %1065 = vmatprep.subr.mxu0 0.0
    %1066 = vmatpush1.msra.mxu0 0.0
    %1067 = vmatprep.subr.mxu0 0.0
    %1068 = vmatpush1.msra.mxu0 0.0
    %1069 = vmatprep.subr.mxu0 0.0
    %1070 = vmatpush1.msra.mxu0 0.0
    %1071 = vmatprep.subr.mxu0 0.0
    %1072 = vmatpush1.msra.mxu0 0.0
    %1073 = vmatprep.subr.mxu0 0.0
    %1074 = vmatpush1.msra.mxu0 0.0
    %1075 = vmatprep.subr.mxu0 0.0
    %1076 = vmatpush1.msra.mxu0 0.0
    %1077 = vmatprep.subr.mxu0 0.0
    %1078 = vmatpush1.msra.mxu0 0.0
    %1079 = vmatprep.subr.mxu0 0.0
    %1080 = vmatpush1.msra.mxu0 0.0
    %1081 = vmatprep.subr.mxu0 0.0
    %1082 = vmatpush1.msra.mxu0 0.0
    %1083 = vmatprep.subr.mxu0 0.0
    %1084 = vmatpush1.msra.mxu0 0.0
    %1085 = vmatprep.subr.mxu0 0.0
    %1086 = vmatpush1.msra.mxu0 0.0
    %1087 = vmatprep.subr.mxu0 0.0
    %1088 = vmatpush1.msra.mxu0 0.0
    %1089 = vmatprep.subr.mxu0 0.0
    %1090 = vmatpush1.msra.mxu0 0.0
    %1091 = vmatprep.subr.mxu0 0.0
    %1092 = vmatpush1.msra.mxu0 0.0
    %1093 = vmatprep.mubr.f32.mxu0 0.0
    %v1094 = vand.u32 %v599, 4294901760
    %1095 = vmatmul.mubr.f32.gmra.mrb[0].mxu0 %v1094
    %v1096 = vpop.f32.mrb[0].mxu0
    %v1097 = vadd.f32 %v1018, %v1096
    %v1098 = vpop.f32.mrb[0].mxu0
    %1099 = vmatprep.mubr.f32.mxu0 0.0
    %v1100 = vand.u32 %v602, 4294901760
    %1101 = vmatmul.mubr.f32.gmra.mrb[0].mxu0 %v1100
    %v1102 = vpop.f32.mrb[0].mxu0
    %v1103 = vadd.f32 %v1024, %v1102
    %v1104 = vpop.f32.mrb[0].mxu0
    %1105 = vdwg.mxu0
    %v1106 = vld [vmem:[%s7] sm:$0x1]
    %v1108 = vlaneseq
    %v1109 = vshrl.u32 %v1108, 7
    %v1110 = vsub.s32 0, %v1109
    %v1111 = vrot.slane %v1106, %v1110
    %v1113 = vadd.f32 %v1097, %v1111
    %v1114 = vadd.f32 %v1103, %v1111
    %v1115 = vld [vmem:[%s6] sm:$0xff]
    %v1116 = vld [vmem:[%s6 + $0x8] sm:$0xff]
    %v1117 = vld [vmem:[%s6 + $0x10] sm:$0xff]
    %v1118 = vld [vmem:[%s6 + $0x18] sm:$0xff]
    %v1119 = vlaneseq
    %v1120 = vand.u32 %v1119, 127
    %vm1121 = vcmp.ge.s32.totalorder %v1120, 64
    %vm1122 = vcmp.lt.s32.totalorder %v1120, 96
    %vm1123 = vmand %vm1121, %vm1122
    %v1124 = vld [vmem:[%s2] sm:$0x3]
    %v1125 = vld [vmem:[%s3] sm:$0x3]
    %vm1126 = vcmask 261120
    %v1128 = vsel %vm1126, %v1124, 0
    %1130 = vmatprep.subr.mxu0 0.0
    %v1131 = vand.u32 %v1115, 4294901760
    %1132 = vmatpush1.msra.mxu0 %v1131
    %1133 = vmatprep.subr.mxu0 0.0
    %v1134 = vand.u32 %v1116, 4294901760
    %1135 = vmatpush1.msra.mxu0 %v1134
    %1136 = vmatprep.subr.mxu0 0.0
    %v1137 = vand.u32 %v1117, 4294901760
    %1138 = vmatpush1.msra.mxu0 %v1137
    %1139 = vmatprep.subr.mxu0 0.0
    %v1140 = vand.u32 %v1118, 4294901760
    %1141 = vmatpush1.msra.mxu0 %v1140
    %1142 = vmatprep.subr.mxu0 0.0
    %1143 = vmatpush1.msra.mxu0 0.0
    %1144 = vmatprep.subr.mxu0 0.0
    %1145 = vmatpush1.msra.mxu0 0.0
    %1146 = vmatprep.subr.mxu0 0.0
    %1147 = vmatpush1.msra.mxu0 0.0
    %1148 = vmatprep.subr.mxu0 0.0
    %1149 = vmatpush1.msra.mxu0 0.0
    %1150 = vmatprep.subr.mxu0 0.0
    %1151 = vmatpush1.msra.mxu0 0.0
    %1152 = vmatprep.subr.mxu0 0.0
    %1153 = vmatpush1.msra.mxu0 0.0
    %1154 = vmatprep.subr.mxu0 0.0
    %1155 = vmatpush1.msra.mxu0 0.0
    %1156 = vmatprep.subr.mxu0 0.0
    %1157 = vmatpush1.msra.mxu0 0.0
    %1158 = vmatprep.subr.mxu0 0.0
    %1159 = vmatpush1.msra.mxu0 0.0
    %1160 = vmatprep.subr.mxu0 0.0
    %1161 = vmatpush1.msra.mxu0 0.0
    %1162 = vmatprep.subr.mxu0 0.0
    %1163 = vmatpush1.msra.mxu0 0.0
    %1164 = vmatprep.subr.mxu0 0.0
    %1165 = vmatpush1.msra.mxu0 0.0
    %1166 = vmatprep.subr.mxu0 0.0
    %1167 = vmatpush1.msra.mxu0 0.0
    %1168 = vmatprep.subr.mxu0 0.0
    %1169 = vmatpush1.msra.mxu0 0.0
    %1170 = vmatprep.subr.mxu0 0.0
    %1171 = vmatpush1.msra.mxu0 0.0
    %1172 = vmatprep.subr.mxu0 0.0
    %1173 = vmatpush1.msra.mxu0 0.0
    %1174 = vmatprep.subr.mxu0 0.0
    %1175 = vmatpush1.msra.mxu0 0.0
    %1176 = vmatprep.subr.mxu0 0.0
    %1177 = vmatpush1.msra.mxu0 0.0
    %1178 = vmatprep.subr.mxu0 0.0
    %1179 = vmatpush1.msra.mxu0 0.0
    %1180 = vmatprep.subr.mxu0 0.0
    %1181 = vmatpush1.msra.mxu0 0.0
    %1182 = vmatprep.subr.mxu0 0.0
    %1183 = vmatpush1.msra.mxu0 0.0
    %1184 = vmatprep.subr.mxu0 0.0
    %1185 = vmatpush1.msra.mxu0 0.0
    %1186 = vmatprep.subr.mxu0 0.0
    %1187 = vmatpush1.msra.mxu0 0.0
    %1188 = vmatprep.subr.mxu0 0.0
    %1189 = vmatpush1.msra.mxu0 0.0
    %1190 = vmatprep.subr.mxu0 0.0
    %1191 = vmatpush1.msra.mxu0 0.0
    %1192 = vmatprep.subr.mxu0 0.0
    %1193 = vmatpush1.msra.mxu0 0.0
    %1194 = vmatprep.subr.mxu0 0.0
    %1195 = vmatpush1.msra.mxu0 0.0
    %1196 = vmatprep.subr.mxu0 0.0
    %1197 = vmatpush1.msra.mxu0 0.0
    %1198 = vmatprep.mubr.f32.mxu0 0.0
    %v1199 = vand.u32 %v1128, 4294901760
    %v1200 = vsub.f32 %v1128, %v1199
    %v1201 = vand.u32 %v1200, 4294901760
    %v1202 = vsub.f32 %v1200, %v1201
    %v1203 = vand.u32 %v1202, 4294901760
    %1204 = vmatmul.mubr.f32.gmra.mrb[0].mxu0 %v1203
    %v1205 = vpop.f32.mrb[0].mxu0
    %v1206 = vadd.f32 0.0, %v1205
    %v1207 = vpop.f32.mrb[0].mxu0
    %1208 = vdwg.mxu0
    %1209 = vmatprep.subr.mxu0 0.0
    %v1210 = vand.u32 %v1115, 4294901760
    %v1211 = vsub.f32 %v1115, %v1210
    %v1212 = vand.u32 %v1211, 4294901760
    %v1213 = vsub.f32 %v1211, %v1212
    %v1214 = vand.u32 %v1213, 4294901760
    %1215 = vmatpush1.msra.mxu0 %v1214
    %1216 = vmatprep.subr.mxu0 0.0
    %v1217 = vand.u32 %v1116, 4294901760
    %v1218 = vsub.f32 %v1116, %v1217
    %v1219 = vand.u32 %v1218, 4294901760
    %v1220 = vsub.f32 %v1218, %v1219
    %v1221 = vand.u32 %v1220, 4294901760
    %1222 = vmatpush1.msra.mxu0 %v1221
    %1223 = vmatprep.subr.mxu0 0.0
    %v1224 = vand.u32 %v1117, 4294901760
    %v1225 = vsub.f32 %v1117, %v1224
    %v1226 = vand.u32 %v1225, 4294901760
    %v1227 = vsub.f32 %v1225, %v1226
    %v1228 = vand.u32 %v1227, 4294901760
    %1229 = vmatpush1.msra.mxu0 %v1228
    %1230 = vmatprep.subr.mxu0 0.0
    %v1231 = vand.u32 %v1118, 4294901760
    %v1232 = vsub.f32 %v1118, %v1231
    %v1233 = vand.u32 %v1232, 4294901760
    %v1234 = vsub.f32 %v1232, %v1233
    %v1235 = vand.u32 %v1234, 4294901760
    %1236 = vmatpush1.msra.mxu0 %v1235
    %1237 = vmatprep.subr.mxu0 0.0
    %1238 = vmatpush1.msra.mxu0 0.0
    %1239 = vmatprep.subr.mxu0 0.0
    %1240 = vmatpush1.msra.mxu0 0.0
    %1241 = vmatprep.subr.mxu0 0.0
    %1242 = vmatpush1.msra.mxu0 0.0
    %1243 = vmatprep.subr.mxu0 0.0
    %1244 = vmatpush1.msra.mxu0 0.0
    %1245 = vmatprep.subr.mxu0 0.0
    %1246 = vmatpush1.msra.mxu0 0.0
    %1247 = vmatprep.subr.mxu0 0.0
    %1248 = vmatpush1.msra.mxu0 0.0
    %1249 = vmatprep.subr.mxu0 0.0
    %1250 = vmatpush1.msra.mxu0 0.0
    %1251 = vmatprep.subr.mxu0 0.0
    %1252 = vmatpush1.msra.mxu0 0.0
    %1253 = vmatprep.subr.mxu0 0.0
    %1254 = vmatpush1.msra.mxu0 0.0
    %1255 = vmatprep.subr.mxu0 0.0
    %1256 = vmatpush1.msra.mxu0 0.0
    %1257 = vmatprep.subr.mxu0 0.0
    %1258 = vmatpush1.msra.mxu0 0.0
    %1259 = vmatprep.subr.mxu0 0.0
    %1260 = vmatpush1.msra.mxu0 0.0
    %1261 = vmatprep.subr.mxu0 0.0
    %1262 = vmatpush1.msra.mxu0 0.0
    %1263 = vmatprep.subr.mxu0 0.0
    %1264 = vmatpush1.msra.mxu0 0.0
    %1265 = vmatprep.subr.mxu0 0.0
    %1266 = vmatpush1.msra.mxu0 0.0
    %1267 = vmatprep.subr.mxu0 0.0
    %1268 = vmatpush1.msra.mxu0 0.0
    %1269 = vmatprep.subr.mxu0 0.0
    %1270 = vmatpush1.msra.mxu0 0.0
    %1271 = vmatprep.subr.mxu0 0.0
    %1272 = vmatpush1.msra.mxu0 0.0
    %1273 = vmatprep.subr.mxu0 0.0
    %1274 = vmatpush1.msra.mxu0 0.0
    %1275 = vmatprep.subr.mxu0 0.0
    %1276 = vmatpush1.msra.mxu0 0.0
    %1277 = vmatprep.subr.mxu0 0.0
    %1278 = vmatpush1.msra.mxu0 0.0
    %1279 = vmatprep.subr.mxu0 0.0
    %1280 = vmatpush1.msra.mxu0 0.0
    %1281 = vmatprep.subr.mxu0 0.0
    %1282 = vmatpush1.msra.mxu0 0.0
    %1283 = vmatprep.subr.mxu0 0.0
    %1284 = vmatpush1.msra.mxu0 0.0
    %1285 = vmatprep.subr.mxu0 0.0
    %1286 = vmatpush1.msra.mxu0 0.0
    %1287 = vmatprep.subr.mxu0 0.0
    %1288 = vmatpush1.msra.mxu0 0.0
    %1289 = vmatprep.subr.mxu0 0.0
    %1290 = vmatpush1.msra.mxu0 0.0
    %1291 = vmatprep.subr.mxu0 0.0
    %1292 = vmatpush1.msra.mxu0 0.0
    %1293 = vmatprep.mubr.f32.mxu0 0.0
    %v1294 = vand.u32 %v1128, 4294901760
    %1295 = vmatmul.mubr.f32.gmra.mrb[0].mxu0 %v1294
    %v1296 = vpop.f32.mrb[0].mxu0
    %v1297 = vadd.f32 %v1206, %v1296
    %v1298 = vpop.f32.mrb[0].mxu0
    %1299 = vdwg.mxu0
    %1300 = vmatprep.subr.mxu0 0.0
    %v1301 = vand.u32 %v1115, 4294901760
    %v1302 = vsub.f32 %v1115, %v1301
    %1303 = vmatpush1.msra.mxu0 %v1302
    %1304 = vmatprep.subr.mxu0 0.0
    %v1305 = vand.u32 %v1116, 4294901760
    %v1306 = vsub.f32 %v1116, %v1305
    %1307 = vmatpush1.msra.mxu0 %v1306
    %1308 = vmatprep.subr.mxu0 0.0
    %v1309 = vand.u32 %v1117, 4294901760
    %v1310 = vsub.f32 %v1117, %v1309
    %1311 = vmatpush1.msra.mxu0 %v1310
    %1312 = vmatprep.subr.mxu0 0.0
    %v1313 = vand.u32 %v1118, 4294901760
    %v1314 = vsub.f32 %v1118, %v1313
    %1315 = vmatpush1.msra.mxu0 %v1314
    %1316 = vmatprep.subr.mxu0 0.0
    %1317 = vmatpush1.msra.mxu0 0.0
    %1318 = vmatprep.subr.mxu0 0.0
    %1319 = vmatpush1.msra.mxu0 0.0
    %1320 = vmatprep.subr.mxu0 0.0
    %1321 = vmatpush1.msra.mxu0 0.0
    %1322 = vmatprep.subr.mxu0 0.0
    %1323 = vmatpush1.msra.mxu0 0.0
    %1324 = vmatprep.subr.mxu0 0.0
    %1325 = vmatpush1.msra.mxu0 0.0
    %1326 = vmatprep.subr.mxu0 0.0
    %1327 = vmatpush1.msra.mxu0 0.0
    %1328 = vmatprep.subr.mxu0 0.0
    %1329 = vmatpush1.msra.mxu0 0.0
    %1330 = vmatprep.subr.mxu0 0.0
    %1331 = vmatpush1.msra.mxu0 0.0
    %1332 = vmatprep.subr.mxu0 0.0
    %1333 = vmatpush1.msra.mxu0 0.0
    %1334 = vmatprep.subr.mxu0 0.0
    %1335 = vmatpush1.msra.mxu0 0.0
    %1336 = vmatprep.subr.mxu0 0.0
    %1337 = vmatpush1.msra.mxu0 0.0
    %1338 = vmatprep.subr.mxu0 0.0
    %1339 = vmatpush1.msra.mxu0 0.0
    %1340 = vmatprep.subr.mxu0 0.0
    %1341 = vmatpush1.msra.mxu0 0.0
    %1342 = vmatprep.subr.mxu0 0.0
    %1343 = vmatpush1.msra.mxu0 0.0
    %1344 = vmatprep.subr.mxu0 0.0
    %1345 = vmatpush1.msra.mxu0 0.0
    %1346 = vmatprep.subr.mxu0 0.0
    %1347 = vmatpush1.msra.mxu0 0.0
    %1348 = vmatprep.subr.mxu0 0.0
    %1349 = vmatpush1.msra.mxu0 0.0
    %1350 = vmatprep.subr.mxu0 0.0
    %1351 = vmatpush1.msra.mxu0 0.0
    %1352 = vmatprep.subr.mxu0 0.0
    %1353 = vmatpush1.msra.mxu0 0.0
    %1354 = vmatprep.subr.mxu0 0.0
    %1355 = vmatpush1.msra.mxu0 0.0
    %1356 = vmatprep.subr.mxu0 0.0
    %1357 = vmatpush1.msra.mxu0 0.0
    %1358 = vmatprep.subr.mxu0 0.0
    %1359 = vmatpush1.msra.mxu0 0.0
    %1360 = vmatprep.subr.mxu0 0.0
    %1361 = vmatpush1.msra.mxu0 0.0
    %1362 = vmatprep.subr.mxu0 0.0
    %1363 = vmatpush1.msra.mxu0 0.0
    %1364 = vmatprep.subr.mxu0 0.0
    %1365 = vmatpush1.msra.mxu0 0.0
    %1366 = vmatprep.subr.mxu0 0.0
    %1367 = vmatpush1.msra.mxu0 0.0
    %1368 = vmatprep.subr.mxu0 0.0
    %1369 = vmatpush1.msra.mxu0 0.0
    %1370 = vmatprep.subr.mxu0 0.0
    %1371 = vmatpush1.msra.mxu0 0.0
    %1372 = vmatprep.mubr.f32.mxu0 0.0
    %v1373 = vand.u32 %v1128, 4294901760
    %v1374 = vsub.f32 %v1128, %v1373
    %1375 = vmatmul.mubr.f32.gmra.mrb[0].mxu0 %v1374
    %v1376 = vpop.f32.mrb[0].mxu0
    %v1377 = vadd.f32 %v1297, %v1376
    %v1378 = vpop.f32.mrb[0].mxu0
    %1379 = vdwg.mxu0
    %1380 = vmatprep.subr.mxu0 0.0
    %v1381 = vand.u32 %v1115, 4294901760
    %1382 = vmatpush1.msra.mxu0 %v1381
    %1383 = vmatprep.subr.mxu0 0.0
    %v1384 = vand.u32 %v1116, 4294901760
    %1385 = vmatpush1.msra.mxu0 %v1384
    %1386 = vmatprep.subr.mxu0 0.0
    %v1387 = vand.u32 %v1117, 4294901760
    %1388 = vmatpush1.msra.mxu0 %v1387
    %1389 = vmatprep.subr.mxu0 0.0
    %v1390 = vand.u32 %v1118, 4294901760
    %1391 = vmatpush1.msra.mxu0 %v1390
    %1392 = vmatprep.subr.mxu0 0.0
    %1393 = vmatpush1.msra.mxu0 0.0
    %1394 = vmatprep.subr.mxu0 0.0
    %1395 = vmatpush1.msra.mxu0 0.0
    %1396 = vmatprep.subr.mxu0 0.0
    %1397 = vmatpush1.msra.mxu0 0.0
    %1398 = vmatprep.subr.mxu0 0.0
    %1399 = vmatpush1.msra.mxu0 0.0
    %1400 = vmatprep.subr.mxu0 0.0
    %1401 = vmatpush1.msra.mxu0 0.0
    %1402 = vmatprep.subr.mxu0 0.0
    %1403 = vmatpush1.msra.mxu0 0.0
    %1404 = vmatprep.subr.mxu0 0.0
    %1405 = vmatpush1.msra.mxu0 0.0
    %1406 = vmatprep.subr.mxu0 0.0
    %1407 = vmatpush1.msra.mxu0 0.0
    %1408 = vmatprep.subr.mxu0 0.0
    %1409 = vmatpush1.msra.mxu0 0.0
    %1410 = vmatprep.subr.mxu0 0.0
    %1411 = vmatpush1.msra.mxu0 0.0
    %1412 = vmatprep.subr.mxu0 0.0
    %1413 = vmatpush1.msra.mxu0 0.0
    %1414 = vmatprep.subr.mxu0 0.0
    %1415 = vmatpush1.msra.mxu0 0.0
    %1416 = vmatprep.subr.mxu0 0.0
    %1417 = vmatpush1.msra.mxu0 0.0
    %1418 = vmatprep.subr.mxu0 0.0
    %1419 = vmatpush1.msra.mxu0 0.0
    %1420 = vmatprep.subr.mxu0 0.0
    %1421 = vmatpush1.msra.mxu0 0.0
    %1422 = vmatprep.subr.mxu0 0.0
    %1423 = vmatpush1.msra.mxu0 0.0
    %1424 = vmatprep.subr.mxu0 0.0
    %1425 = vmatpush1.msra.mxu0 0.0
    %1426 = vmatprep.subr.mxu0 0.0
    %1427 = vmatpush1.msra.mxu0 0.0
    %1428 = vmatprep.subr.mxu0 0.0
    %1429 = vmatpush1.msra.mxu0 0.0
    %1430 = vmatprep.subr.mxu0 0.0
    %1431 = vmatpush1.msra.mxu0 0.0
    %1432 = vmatprep.subr.mxu0 0.0
    %1433 = vmatpush1.msra.mxu0 0.0
    %1434 = vmatprep.subr.mxu0 0.0
    %1435 = vmatpush1.msra.mxu0 0.0
    %1436 = vmatprep.subr.mxu0 0.0
    %1437 = vmatpush1.msra.mxu0 0.0
    %1438 = vmatprep.subr.mxu0 0.0
    %1439 = vmatpush1.msra.mxu0 0.0
    %1440 = vmatprep.subr.mxu0 0.0
    %1441 = vmatpush1.msra.mxu0 0.0
    %1442 = vmatprep.subr.mxu0 0.0
    %1443 = vmatpush1.msra.mxu0 0.0
    %1444 = vmatprep.subr.mxu0 0.0
    %1445 = vmatpush1.msra.mxu0 0.0
    %1446 = vmatprep.subr.mxu0 0.0
    %1447 = vmatpush1.msra.mxu0 0.0
    %1448 = vmatprep.mubr.f32.mxu0 0.0
    %v1449 = vand.u32 %v1128, 4294901760
    %v1450 = vsub.f32 %v1128, %v1449
    %v1451 = vand.u32 %v1450, 4294901760
    %1452 = vmatmul.mubr.f32.gmra.mrb[0].mxu0 %v1451
    %v1453 = vpop.f32.mrb[0].mxu0
    %v1454 = vadd.f32 %v1377, %v1453
    %v1455 = vpop.f32.mrb[0].mxu0
    %1456 = vdwg.mxu0
    %1457 = vmatprep.subr.mxu0 0.0
    %v1458 = vand.u32 %v1115, 4294901760
    %v1459 = vsub.f32 %v1115, %v1458
    %v1460 = vand.u32 %v1459, 4294901760
    %1461 = vmatpush1.msra.mxu0 %v1460
    %1462 = vmatprep.subr.mxu0 0.0
    %v1463 = vand.u32 %v1116, 4294901760
    %v1464 = vsub.f32 %v1116, %v1463
    %v1465 = vand.u32 %v1464, 4294901760
    %1466 = vmatpush1.msra.mxu0 %v1465
    %1467 = vmatprep.subr.mxu0 0.0
    %v1468 = vand.u32 %v1117, 4294901760
    %v1469 = vsub.f32 %v1117, %v1468
    %v1470 = vand.u32 %v1469, 4294901760
    %1471 = vmatpush1.msra.mxu0 %v1470
    %1472 = vmatprep.subr.mxu0 0.0
    %v1473 = vand.u32 %v1118, 4294901760
    %v1474 = vsub.f32 %v1118, %v1473
    %v1475 = vand.u32 %v1474, 4294901760
    %1476 = vmatpush1.msra.mxu0 %v1475
    %1477 = vmatprep.subr.mxu0 0.0
    %1478 = vmatpush1.msra.mxu0 0.0
    %1479 = vmatprep.subr.mxu0 0.0
    %1480 = vmatpush1.msra.mxu0 0.0
    %1481 = vmatprep.subr.mxu0 0.0
    %1482 = vmatpush1.msra.mxu0 0.0
    %1483 = vmatprep.subr.mxu0 0.0
    %1484 = vmatpush1.msra.mxu0 0.0
    %1485 = vmatprep.subr.mxu0 0.0
    %1486 = vmatpush1.msra.mxu0 0.0
    %1487 = vmatprep.subr.mxu0 0.0
    %1488 = vmatpush1.msra.mxu0 0.0
    %1489 = vmatprep.subr.mxu0 0.0
    %1490 = vmatpush1.msra.mxu0 0.0
    %1491 = vmatprep.subr.mxu0 0.0
    %1492 = vmatpush1.msra.mxu0 0.0
    %1493 = vmatprep.subr.mxu0 0.0
    %1494 = vmatpush1.msra.mxu0 0.0
    %1495 = vmatprep.subr.mxu0 0.0
    %1496 = vmatpush1.msra.mxu0 0.0
    %1497 = vmatprep.subr.mxu0 0.0
    %1498 = vmatpush1.msra.mxu0 0.0
    %1499 = vmatprep.subr.mxu0 0.0
    %1500 = vmatpush1.msra.mxu0 0.0
    %1501 = vmatprep.subr.mxu0 0.0
    %1502 = vmatpush1.msra.mxu0 0.0
    %1503 = vmatprep.subr.mxu0 0.0
    %1504 = vmatpush1.msra.mxu0 0.0
    %1505 = vmatprep.subr.mxu0 0.0
    %1506 = vmatpush1.msra.mxu0 0.0
    %1507 = vmatprep.subr.mxu0 0.0
    %1508 = vmatpush1.msra.mxu0 0.0
    %1509 = vmatprep.subr.mxu0 0.0
    %1510 = vmatpush1.msra.mxu0 0.0
    %1511 = vmatprep.subr.mxu0 0.0
    %1512 = vmatpush1.msra.mxu0 0.0
    %1513 = vmatprep.subr.mxu0 0.0
    %1514 = vmatpush1.msra.mxu0 0.0
    %1515 = vmatprep.subr.mxu0 0.0
    %1516 = vmatpush1.msra.mxu0 0.0
    %1517 = vmatprep.subr.mxu0 0.0
    %1518 = vmatpush1.msra.mxu0 0.0
    %1519 = vmatprep.subr.mxu0 0.0
    %1520 = vmatpush1.msra.mxu0 0.0
    %1521 = vmatprep.subr.mxu0 0.0
    %1522 = vmatpush1.msra.mxu0 0.0
    %1523 = vmatprep.subr.mxu0 0.0
    %1524 = vmatpush1.msra.mxu0 0.0
    %1525 = vmatprep.subr.mxu0 0.0
    %1526 = vmatpush1.msra.mxu0 0.0
    %1527 = vmatprep.subr.mxu0 0.0
    %1528 = vmatpush1.msra.mxu0 0.0
    %1529 = vmatprep.subr.mxu0 0.0
    %1530 = vmatpush1.msra.mxu0 0.0
    %1531 = vmatprep.subr.mxu0 0.0
    %1532 = vmatpush1.msra.mxu0 0.0
    %1533 = vmatprep.mubr.f32.mxu0 0.0
    %v1534 = vand.u32 %v1128, 4294901760
    %1535 = vmatmul.mubr.f32.gmra.mrb[0].mxu0 %v1534
    %v1536 = vpop.f32.mrb[0].mxu0
    %v1537 = vadd.f32 %v1454, %v1536
    %v1538 = vpop.f32.mrb[0].mxu0
    %1539 = vdwg.mxu0
    %1540 = vmatprep.subr.mxu0 0.0
    %v1541 = vand.u32 %v1115, 4294901760
    %1542 = vmatpush1.msra.mxu0 %v1541
    %1543 = vmatprep.subr.mxu0 0.0
    %v1544 = vand.u32 %v1116, 4294901760
    %1545 = vmatpush1.msra.mxu0 %v1544
    %1546 = vmatprep.subr.mxu0 0.0
    %v1547 = vand.u32 %v1117, 4294901760
    %1548 = vmatpush1.msra.mxu0 %v1547
    %1549 = vmatprep.subr.mxu0 0.0
    %v1550 = vand.u32 %v1118, 4294901760
    %1551 = vmatpush1.msra.mxu0 %v1550
    %1552 = vmatprep.subr.mxu0 0.0
    %1553 = vmatpush1.msra.mxu0 0.0
    %1554 = vmatprep.subr.mxu0 0.0
    %1555 = vmatpush1.msra.mxu0 0.0
    %1556 = vmatprep.subr.mxu0 0.0
    %1557 = vmatpush1.msra.mxu0 0.0
    %1558 = vmatprep.subr.mxu0 0.0
    %1559 = vmatpush1.msra.mxu0 0.0
    %1560 = vmatprep.subr.mxu0 0.0
    %1561 = vmatpush1.msra.mxu0 0.0
    %1562 = vmatprep.subr.mxu0 0.0
    %1563 = vmatpush1.msra.mxu0 0.0
    %1564 = vmatprep.subr.mxu0 0.0
    %1565 = vmatpush1.msra.mxu0 0.0
    %1566 = vmatprep.subr.mxu0 0.0
    %1567 = vmatpush1.msra.mxu0 0.0
    %1568 = vmatprep.subr.mxu0 0.0
    %1569 = vmatpush1.msra.mxu0 0.0
    %1570 = vmatprep.subr.mxu0 0.0
    %1571 = vmatpush1.msra.mxu0 0.0
    %1572 = vmatprep.subr.mxu0 0.0
    %1573 = vmatpush1.msra.mxu0 0.0
    %1574 = vmatprep.subr.mxu0 0.0
    %1575 = vmatpush1.msra.mxu0 0.0
    %1576 = vmatprep.subr.mxu0 0.0
    %1577 = vmatpush1.msra.mxu0 0.0
    %1578 = vmatprep.subr.mxu0 0.0
    %1579 = vmatpush1.msra.mxu0 0.0
    %1580 = vmatprep.subr.mxu0 0.0
    %1581 = vmatpush1.msra.mxu0 0.0
    %1582 = vmatprep.subr.mxu0 0.0
    %1583 = vmatpush1.msra.mxu0 0.0
    %1584 = vmatprep.subr.mxu0 0.0
    %1585 = vmatpush1.msra.mxu0 0.0
    %1586 = vmatprep.subr.mxu0 0.0
    %1587 = vmatpush1.msra.mxu0 0.0
    %1588 = vmatprep.subr.mxu0 0.0
    %1589 = vmatpush1.msra.mxu0 0.0
    %1590 = vmatprep.subr.mxu0 0.0
    %1591 = vmatpush1.msra.mxu0 0.0
    %1592 = vmatprep.subr.mxu0 0.0
    %1593 = vmatpush1.msra.mxu0 0.0
    %1594 = vmatprep.subr.mxu0 0.0
    %1595 = vmatpush1.msra.mxu0 0.0
    %1596 = vmatprep.subr.mxu0 0.0
    %1597 = vmatpush1.msra.mxu0 0.0
    %1598 = vmatprep.subr.mxu0 0.0
    %1599 = vmatpush1.msra.mxu0 0.0
    %1600 = vmatprep.subr.mxu0 0.0
    %1601 = vmatpush1.msra.mxu0 0.0
    %1602 = vmatprep.subr.mxu0 0.0
    %1603 = vmatpush1.msra.mxu0 0.0
    %1604 = vmatprep.subr.mxu0 0.0
    %1605 = vmatpush1.msra.mxu0 0.0
    %1606 = vmatprep.subr.mxu0 0.0
    %1607 = vmatpush1.msra.mxu0 0.0
    %1608 = vmatprep.mubr.f32.mxu0 0.0
    %v1609 = vand.u32 %v1128, 4294901760
    %1610 = vmatmul.mubr.f32.gmra.mrb[0].mxu0 %v1609
    %v1611 = vpop.f32.mrb[0].mxu0
    %v1612 = vadd.f32 %v1537, %v1611
    %v1613 = vpop.f32.mrb[0].mxu0
    %1614 = vdwg.mxu0
    %v1616 = vrot.slane %v1612, 1
    %v1619 = vadd.f32 %v1113, %v1612
    %v1620 = vadd.f32 %v1114, %v1616
    %v1621 = vmul.f32 %v1619, 0.5
    %v1622 = vmul.f32 %v1620, 0.5
    %v1625 = vrot.slane %v1620, 7
    %vm1626 = vcmask 1041409
    %v1627 = vsel %vm1626, %v1625, %v1619
    %v1631 = vrot.slane %v1622, 7
    %v1632 = vsel %vm1626, %v1631, %v1621
    %v1634 = vsel %vm1123, %v1627, %v1632
    %v1635 = vtanh.pop %v1634
    %v1636 = vadd.f32 %v1635, 1.0
    %v1637 = vmul.f32 %v1636, 0.5
    %v1638 = vsel %vm1123, %v1635, %v1637
    %1640 = vrot.lane.b32.xlu0 %v1125, 32
    %v1641 = vpop.permute.xlu0 %1640
    %v1643 = vmul.f32 %v1638, %v1641
    %1645 = vrot.lane.b32.xlu0 %v1638, 64
    %v1646 = vpop.permute.xlu0 %1645
    %v1648 = vmul.f32 %v1638, %v1646
    %1650 = vrot.lane.b32.xlu0 %v1648, 32
    %v1651 = vpop.permute.xlu0 %1650
    %v1653 = vadd.f32 %v1643, %v1651
    %v1654 = vtanh.pop %v1653
    %1656 = vrot.lane.b32.xlu0 %v1654, 64
    %v1657 = vpop.permute.xlu0 %1656
    %v1659 = vmul.f32 %v1638, %v1657
    %1661 = vrot.lane.b32.xlu0 %v1659, 32
    %v1662 = vpop.permute.xlu0 %1661
    %v1663 = vsel %vm1126, %v1662, 0
    %1665 = vmatprep.subr.mxu0 0.0
    %v1666 = vand.u32 %v1115, 4294901760
    %1667 = vmatpush1.msra.mxu0 %v1666
    %1668 = vmatprep.subr.mxu0 0.0
    %v1669 = vand.u32 %v1116, 4294901760
    %1670 = vmatpush1.msra.mxu0 %v1669
    %1671 = vmatprep.subr.mxu0 0.0
    %v1672 = vand.u32 %v1117, 4294901760
    %1673 = vmatpush1.msra.mxu0 %v1672
    %1674 = vmatprep.subr.mxu0 0.0
    %v1675 = vand.u32 %v1118, 4294901760
    %1676 = vmatpush1.msra.mxu0 %v1675
    %1677 = vmatprep.subr.mxu0 0.0
    %1678 = vmatpush1.msra.mxu0 0.0
    %1679 = vmatprep.subr.mxu0 0.0
    %1680 = vmatpush1.msra.mxu0 0.0
    %1681 = vmatprep.subr.mxu0 0.0
    %1682 = vmatpush1.msra.mxu0 0.0
    %1683 = vmatprep.subr.mxu0 0.0
    %1684 = vmatpush1.msra.mxu0 0.0
    %1685 = vmatprep.subr.mxu0 0.0
    %1686 = vmatpush1.msra.mxu0 0.0
    %1687 = vmatprep.subr.mxu0 0.0
    %1688 = vmatpush1.msra.mxu0 0.0
    %1689 = vmatprep.subr.mxu0 0.0
    %1690 = vmatpush1.msra.mxu0 0.0
    %1691 = vmatprep.subr.mxu0 0.0
    %1692 = vmatpush1.msra.mxu0 0.0
    %1693 = vmatprep.subr.mxu0 0.0
    %1694 = vmatpush1.msra.mxu0 0.0
    %1695 = vmatprep.subr.mxu0 0.0
    %1696 = vmatpush1.msra.mxu0 0.0
    %1697 = vmatprep.subr.mxu0 0.0
    %1698 = vmatpush1.msra.mxu0 0.0
    %1699 = vmatprep.subr.mxu0 0.0
    %1700 = vmatpush1.msra.mxu0 0.0
    %1701 = vmatprep.subr.mxu0 0.0
    %1702 = vmatpush1.msra.mxu0 0.0
    %1703 = vmatprep.subr.mxu0 0.0
    %1704 = vmatpush1.msra.mxu0 0.0
    %1705 = vmatprep.subr.mxu0 0.0
    %1706 = vmatpush1.msra.mxu0 0.0
    %1707 = vmatprep.subr.mxu0 0.0
    %1708 = vmatpush1.msra.mxu0 0.0
    %1709 = vmatprep.subr.mxu0 0.0
    %1710 = vmatpush1.msra.mxu0 0.0
    %1711 = vmatprep.subr.mxu0 0.0
    %1712 = vmatpush1.msra.mxu0 0.0
    %1713 = vmatprep.subr.mxu0 0.0
    %1714 = vmatpush1.msra.mxu0 0.0
    %1715 = vmatprep.subr.mxu0 0.0
    %1716 = vmatpush1.msra.mxu0 0.0
    %1717 = vmatprep.subr.mxu0 0.0
    %1718 = vmatpush1.msra.mxu0 0.0
    %1719 = vmatprep.subr.mxu0 0.0
    %1720 = vmatpush1.msra.mxu0 0.0
    %1721 = vmatprep.subr.mxu0 0.0
    %1722 = vmatpush1.msra.mxu0 0.0
    %1723 = vmatprep.subr.mxu0 0.0
    %1724 = vmatpush1.msra.mxu0 0.0
    %1725 = vmatprep.subr.mxu0 0.0
    %1726 = vmatpush1.msra.mxu0 0.0
    %1727 = vmatprep.subr.mxu0 0.0
    %1728 = vmatpush1.msra.mxu0 0.0
    %1729 = vmatprep.subr.mxu0 0.0
    %1730 = vmatpush1.msra.mxu0 0.0
    %1731 = vmatprep.subr.mxu0 0.0
    %1732 = vmatpush1.msra.mxu0 0.0
    %1733 = vmatprep.mubr.f32.mxu0 0.0
    %v1734 = vand.u32 %v1663, 4294901760
    %v1735 = vsub.f32 %v1663, %v1734
    %v1736 = vand.u32 %v1735, 4294901760
    %v1737 = vsub.f32 %v1735, %v1736
    %v1738 = vand.u32 %v1737, 4294901760
    %1739 = vmatmul.mubr.f32.gmra.mrb[0].mxu0 %v1738
    %v1740 = vpop.f32.mrb[0].mxu0
    %v1741 = vadd.f32 0.0, %v1740
    %v1742 = vpop.f32.mrb[0].mxu0
    %1743 = vdwg.mxu0
    %1744 = vmatprep.subr.mxu0 0.0
    %v1745 = vand.u32 %v1115, 4294901760
    %v1746 = vsub.f32 %v1115, %v1745
    %v1747 = vand.u32 %v1746, 4294901760
    %v1748 = vsub.f32 %v1746, %v1747
    %v1749 = vand.u32 %v1748, 4294901760
    %1750 = vmatpush1.msra.mxu0 %v1749
    %1751 = vmatprep.subr.mxu0 0.0
    %v1752 = vand.u32 %v1116, 4294901760
    %v1753 = vsub.f32 %v1116, %v1752
    %v1754 = vand.u32 %v1753, 4294901760
    %v1755 = vsub.f32 %v1753, %v1754
    %v1756 = vand.u32 %v1755, 4294901760
    %1757 = vmatpush1.msra.mxu0 %v1756
    %1758 = vmatprep.subr.mxu0 0.0
    %v1759 = vand.u32 %v1117, 4294901760
    %v1760 = vsub.f32 %v1117, %v1759
    %v1761 = vand.u32 %v1760, 4294901760
    %v1762 = vsub.f32 %v1760, %v1761
    %v1763 = vand.u32 %v1762, 4294901760
    %1764 = vmatpush1.msra.mxu0 %v1763
    %1765 = vmatprep.subr.mxu0 0.0
    %v1766 = vand.u32 %v1118, 4294901760
    %v1767 = vsub.f32 %v1118, %v1766
    %v1768 = vand.u32 %v1767, 4294901760
    %v1769 = vsub.f32 %v1767, %v1768
    %v1770 = vand.u32 %v1769, 4294901760
    %1771 = vmatpush1.msra.mxu0 %v1770
    %1772 = vmatprep.subr.mxu0 0.0
    %1773 = vmatpush1.msra.mxu0 0.0
    %1774 = vmatprep.subr.mxu0 0.0
    %1775 = vmatpush1.msra.mxu0 0.0
    %1776 = vmatprep.subr.mxu0 0.0
    %1777 = vmatpush1.msra.mxu0 0.0
    %1778 = vmatprep.subr.mxu0 0.0
    %1779 = vmatpush1.msra.mxu0 0.0
    %1780 = vmatprep.subr.mxu0 0.0
    %1781 = vmatpush1.msra.mxu0 0.0
    %1782 = vmatprep.subr.mxu0 0.0
    %1783 = vmatpush1.msra.mxu0 0.0
    %1784 = vmatprep.subr.mxu0 0.0
    %1785 = vmatpush1.msra.mxu0 0.0
    %1786 = vmatprep.subr.mxu0 0.0
    %1787 = vmatpush1.msra.mxu0 0.0
    %1788 = vmatprep.subr.mxu0 0.0
    %1789 = vmatpush1.msra.mxu0 0.0
    %1790 = vmatprep.subr.mxu0 0.0
    %1791 = vmatpush1.msra.mxu0 0.0
    %1792 = vmatprep.subr.mxu0 0.0
    %1793 = vmatpush1.msra.mxu0 0.0
    %1794 = vmatprep.subr.mxu0 0.0
    %1795 = vmatpush1.msra.mxu0 0.0
    %1796 = vmatprep.subr.mxu0 0.0
    %1797 = vmatpush1.msra.mxu0 0.0
    %1798 = vmatprep.subr.mxu0 0.0
    %1799 = vmatpush1.msra.mxu0 0.0
    %1800 = vmatprep.subr.mxu0 0.0
    %1801 = vmatpush1.msra.mxu0 0.0
    %1802 = vmatprep.subr.mxu0 0.0
    %1803 = vmatpush1.msra.mxu0 0.0
    %1804 = vmatprep.subr.mxu0 0.0
    %1805 = vmatpush1.msra.mxu0 0.0
    %1806 = vmatprep.subr.mxu0 0.0
    %1807 = vmatpush1.msra.mxu0 0.0
    %1808 = vmatprep.subr.mxu0 0.0
    %1809 = vmatpush1.msra.mxu0 0.0
    %1810 = vmatprep.subr.mxu0 0.0
    %1811 = vmatpush1.msra.mxu0 0.0
    %1812 = vmatprep.subr.mxu0 0.0
    %1813 = vmatpush1.msra.mxu0 0.0
    %1814 = vmatprep.subr.mxu0 0.0
    %1815 = vmatpush1.msra.mxu0 0.0
    %1816 = vmatprep.subr.mxu0 0.0
    %1817 = vmatpush1.msra.mxu0 0.0
    %1818 = vmatprep.subr.mxu0 0.0
    %1819 = vmatpush1.msra.mxu0 0.0
    %1820 = vmatprep.subr.mxu0 0.0
    %1821 = vmatpush1.msra.mxu0 0.0
    %1822 = vmatprep.subr.mxu0 0.0
    %1823 = vmatpush1.msra.mxu0 0.0
    %1824 = vmatprep.subr.mxu0 0.0
    %1825 = vmatpush1.msra.mxu0 0.0
    %1826 = vmatprep.subr.mxu0 0.0
    %1827 = vmatpush1.msra.mxu0 0.0
    %1828 = vmatprep.mubr.f32.mxu0 0.0
    %v1829 = vand.u32 %v1663, 4294901760
    %1830 = vmatmul.mubr.f32.gmra.mrb[0].mxu0 %v1829
    %v1831 = vpop.f32.mrb[0].mxu0
    %v1832 = vadd.f32 %v1741, %v1831
    %v1833 = vpop.f32.mrb[0].mxu0
    %1834 = vdwg.mxu0
    %1835 = vmatprep.subr.mxu0 0.0
    %v1836 = vand.u32 %v1115, 4294901760
    %v1837 = vsub.f32 %v1115, %v1836
    %1838 = vmatpush1.msra.mxu0 %v1837
    %1839 = vmatprep.subr.mxu0 0.0
    %v1840 = vand.u32 %v1116, 4294901760
    %v1841 = vsub.f32 %v1116, %v1840
    %1842 = vmatpush1.msra.mxu0 %v1841
    %1843 = vmatprep.subr.mxu0 0.0
    %v1844 = vand.u32 %v1117, 4294901760
    %v1845 = vsub.f32 %v1117, %v1844
    %1846 = vmatpush1.msra.mxu0 %v1845
    %1847 = vmatprep.subr.mxu0 0.0
    %v1848 = vand.u32 %v1118, 4294901760
    %v1849 = vsub.f32 %v1118, %v1848
    %1850 = vmatpush1.msra.mxu0 %v1849
    %1851 = vmatprep.subr.mxu0 0.0
    %1852 = vmatpush1.msra.mxu0 0.0
    %1853 = vmatprep.subr.mxu0 0.0
    %1854 = vmatpush1.msra.mxu0 0.0
    %1855 = vmatprep.subr.mxu0 0.0
    %1856 = vmatpush1.msra.mxu0 0.0
    %1857 = vmatprep.subr.mxu0 0.0
    %1858 = vmatpush1.msra.mxu0 0.0
    %1859 = vmatprep.subr.mxu0 0.0
    %1860 = vmatpush1.msra.mxu0 0.0
    %1861 = vmatprep.subr.mxu0 0.0
    %1862 = vmatpush1.msra.mxu0 0.0
    %1863 = vmatprep.subr.mxu0 0.0
    %1864 = vmatpush1.msra.mxu0 0.0
    %1865 = vmatprep.subr.mxu0 0.0
    %1866 = vmatpush1.msra.mxu0 0.0
    %1867 = vmatprep.subr.mxu0 0.0
    %1868 = vmatpush1.msra.mxu0 0.0
    %1869 = vmatprep.subr.mxu0 0.0
    %1870 = vmatpush1.msra.mxu0 0.0
    %1871 = vmatprep.subr.mxu0 0.0
    %1872 = vmatpush1.msra.mxu0 0.0
    %1873 = vmatprep.subr.mxu0 0.0
    %1874 = vmatpush1.msra.mxu0 0.0
    %1875 = vmatprep.subr.mxu0 0.0
    %1876 = vmatpush1.msra.mxu0 0.0
    %1877 = vmatprep.subr.mxu0 0.0
    %1878 = vmatpush1.msra.mxu0 0.0
    %1879 = vmatprep.subr.mxu0 0.0
    %1880 = vmatpush1.msra.mxu0 0.0
    %1881 = vmatprep.subr.mxu0 0.0
    %1882 = vmatpush1.msra.mxu0 0.0
    %1883 = vmatprep.subr.mxu0 0.0
    %1884 = vmatpush1.msra.mxu0 0.0
    %1885 = vmatprep.subr.mxu0 0.0
    %1886 = vmatpush1.msra.mxu0 0.0
    %1887 = vmatprep.subr.mxu0 0.0
    %1888 = vmatpush1.msra.mxu0 0.0
    %1889 = vmatprep.subr.mxu0 0.0
    %1890 = vmatpush1.msra.mxu0 0.0
    %1891 = vmatprep.subr.mxu0 0.0
    %1892 = vmatpush1.msra.mxu0 0.0
    %1893 = vmatprep.subr.mxu0 0.0
    %1894 = vmatpush1.msra.mxu0 0.0
    %1895 = vmatprep.subr.mxu0 0.0
    %1896 = vmatpush1.msra.mxu0 0.0
    %1897 = vmatprep.subr.mxu0 0.0
    %1898 = vmatpush1.msra.mxu0 0.0
    %1899 = vmatprep.subr.mxu0 0.0
    %1900 = vmatpush1.msra.mxu0 0.0
    %1901 = vmatprep.subr.mxu0 0.0
    %1902 = vmatpush1.msra.mxu0 0.0
    %1903 = vmatprep.subr.mxu0 0.0
    %1904 = vmatpush1.msra.mxu0 0.0
    %1905 = vmatprep.subr.mxu0 0.0
    %1906 = vmatpush1.msra.mxu0 0.0
    %1907 = vmatprep.mubr.f32.mxu0 0.0
    %v1908 = vand.u32 %v1663, 4294901760
    %v1909 = vsub.f32 %v1663, %v1908
    %1910 = vmatmul.mubr.f32.gmra.mrb[0].mxu0 %v1909
    %v1911 = vpop.f32.mrb[0].mxu0
    %v1912 = vadd.f32 %v1832, %v1911
    %v1913 = vpop.f32.mrb[0].mxu0
    %1914 = vdwg.mxu0
    %1915 = vmatprep.subr.mxu0 0.0
    %v1916 = vand.u32 %v1115, 4294901760
    %1917 = vmatpush1.msra.mxu0 %v1916
    %1918 = vmatprep.subr.mxu0 0.0
    %v1919 = vand.u32 %v1116, 4294901760
    %1920 = vmatpush1.msra.mxu0 %v1919
    %1921 = vmatprep.subr.mxu0 0.0
    %v1922 = vand.u32 %v1117, 4294901760
    %1923 = vmatpush1.msra.mxu0 %v1922
    %1924 = vmatprep.subr.mxu0 0.0
    %v1925 = vand.u32 %v1118, 4294901760
    %1926 = vmatpush1.msra.mxu0 %v1925
    %1927 = vmatprep.subr.mxu0 0.0
    %1928 = vmatpush1.msra.mxu0 0.0
    %1929 = vmatprep.subr.mxu0 0.0
    %1930 = vmatpush1.msra.mxu0 0.0
    %1931 = vmatprep.subr.mxu0 0.0
    %1932 = vmatpush1.msra.mxu0 0.0
    %1933 = vmatprep.subr.mxu0 0.0
    %1934 = vmatpush1.msra.mxu0 0.0
    %1935 = vmatprep.subr.mxu0 0.0
    %1936 = vmatpush1.msra.mxu0 0.0
    %1937 = vmatprep.subr.mxu0 0.0
    %1938 = vmatpush1.msra.mxu0 0.0
    %1939 = vmatprep.subr.mxu0 0.0
    %1940 = vmatpush1.msra.mxu0 0.0
    %1941 = vmatprep.subr.mxu0 0.0
    %1942 = vmatpush1.msra.mxu0 0.0
    %1943 = vmatprep.subr.mxu0 0.0
    %1944 = vmatpush1.msra.mxu0 0.0
    %1945 = vmatprep.subr.mxu0 0.0
    %1946 = vmatpush1.msra.mxu0 0.0
    %1947 = vmatprep.subr.mxu0 0.0
    %1948 = vmatpush1.msra.mxu0 0.0
    %1949 = vmatprep.subr.mxu0 0.0
    %1950 = vmatpush1.msra.mxu0 0.0
    %1951 = vmatprep.subr.mxu0 0.0
    %1952 = vmatpush1.msra.mxu0 0.0
    %1953 = vmatprep.subr.mxu0 0.0
    %1954 = vmatpush1.msra.mxu0 0.0
    %1955 = vmatprep.subr.mxu0 0.0
    %1956 = vmatpush1.msra.mxu0 0.0
    %1957 = vmatprep.subr.mxu0 0.0
    %1958 = vmatpush1.msra.mxu0 0.0
    %1959 = vmatprep.subr.mxu0 0.0
    %1960 = vmatpush1.msra.mxu0 0.0
    %1961 = vmatprep.subr.mxu0 0.0
    %1962 = vmatpush1.msra.mxu0 0.0
    %1963 = vmatprep.subr.mxu0 0.0
    %1964 = vmatpush1.msra.mxu0 0.0
    %1965 = vmatprep.subr.mxu0 0.0
    %1966 = vmatpush1.msra.mxu0 0.0
    %1967 = vmatprep.subr.mxu0 0.0
    %1968 = vmatpush1.msra.mxu0 0.0
    %1969 = vmatprep.subr.mxu0 0.0
    %1970 = vmatpush1.msra.mxu0 0.0
    %1971 = vmatprep.subr.mxu0 0.0
    %1972 = vmatpush1.msra.mxu0 0.0
    %1973 = vmatprep.subr.mxu0 0.0
    %1974 = vmatpush1.msra.mxu0 0.0
    %1975 = vmatprep.subr.mxu0 0.0
    %1976 = vmatpush1.msra.mxu0 0.0
    %1977 = vmatprep.subr.mxu0 0.0
    %1978 = vmatpush1.msra.mxu0 0.0
    %1979 = vmatprep.subr.mxu0 0.0
    %1980 = vmatpush1.msra.mxu0 0.0
    %1981 = vmatprep.subr.mxu0 0.0
    %1982 = vmatpush1.msra.mxu0 0.0
    %1983 = vmatprep.mubr.f32.mxu0 0.0
    %v1984 = vand.u32 %v1663, 4294901760
    %v1985 = vsub.f32 %v1663, %v1984
    %v1986 = vand.u32 %v1985, 4294901760
    %1987 = vmatmul.mubr.f32.gmra.mrb[0].mxu0 %v1986
    %v1988 = vpop.f32.mrb[0].mxu0
    %v1989 = vadd.f32 %v1912, %v1988
    %v1990 = vpop.f32.mrb[0].mxu0
    %1991 = vdwg.mxu0
    %1992 = vmatprep.subr.mxu0 0.0
    %v1993 = vand.u32 %v1115, 4294901760
    %v1994 = vsub.f32 %v1115, %v1993
    %v1995 = vand.u32 %v1994, 4294901760
    %1996 = vmatpush1.msra.mxu0 %v1995
    %1997 = vmatprep.subr.mxu0 0.0
    %v1998 = vand.u32 %v1116, 4294901760
    %v1999 = vsub.f32 %v1116, %v1998
    %v2000 = vand.u32 %v1999, 4294901760
    %2001 = vmatpush1.msra.mxu0 %v2000
    %2002 = vmatprep.subr.mxu0 0.0
    %v2003 = vand.u32 %v1117, 4294901760
    %v2004 = vsub.f32 %v1117, %v2003
    %v2005 = vand.u32 %v2004, 4294901760
    %2006 = vmatpush1.msra.mxu0 %v2005
    %2007 = vmatprep.subr.mxu0 0.0
    %v2008 = vand.u32 %v1118, 4294901760
    %v2009 = vsub.f32 %v1118, %v2008
    %v2010 = vand.u32 %v2009, 4294901760
    %2011 = vmatpush1.msra.mxu0 %v2010
    %2012 = vmatprep.subr.mxu0 0.0
    %2013 = vmatpush1.msra.mxu0 0.0
    %2014 = vmatprep.subr.mxu0 0.0
    %2015 = vmatpush1.msra.mxu0 0.0
    %2016 = vmatprep.subr.mxu0 0.0
    %2017 = vmatpush1.msra.mxu0 0.0
    %2018 = vmatprep.subr.mxu0 0.0
    %2019 = vmatpush1.msra.mxu0 0.0
    %2020 = vmatprep.subr.mxu0 0.0
    %2021 = vmatpush1.msra.mxu0 0.0
    %2022 = vmatprep.subr.mxu0 0.0
    %2023 = vmatpush1.msra.mxu0 0.0
    %2024 = vmatprep.subr.mxu0 0.0
    %2025 = vmatpush1.msra.mxu0 0.0
    %2026 = vmatprep.subr.mxu0 0.0
    %2027 = vmatpush1.msra.mxu0 0.0
    %2028 = vmatprep.subr.mxu0 0.0
    %2029 = vmatpush1.msra.mxu0 0.0
    %2030 = vmatprep.subr.mxu0 0.0
    %2031 = vmatpush1.msra.mxu0 0.0
    %2032 = vmatprep.subr.mxu0 0.0
    %2033 = vmatpush1.msra.mxu0 0.0
    %2034 = vmatprep.subr.mxu0 0.0
    %2035 = vmatpush1.msra.mxu0 0.0
    %2036 = vmatprep.subr.mxu0 0.0
    %2037 = vmatpush1.msra.mxu0 0.0
    %2038 = vmatprep.subr.mxu0 0.0
    %2039 = vmatpush1.msra.mxu0 0.0
    %2040 = vmatprep.subr.mxu0 0.0
    %2041 = vmatpush1.msra.mxu0 0.0
    %2042 = vmatprep.subr.mxu0 0.0
    %2043 = vmatpush1.msra.mxu0 0.0
    %2044 = vmatprep.subr.mxu0 0.0
    %2045 = vmatpush1.msra.mxu0 0.0
    %2046 = vmatprep.subr.mxu0 0.0
    %2047 = vmatpush1.msra.mxu0 0.0
    %2048 = vmatprep.subr.mxu0 0.0
    %2049 = vmatpush1.msra.mxu0 0.0
    %2050 = vmatprep.subr.mxu0 0.0
    %2051 = vmatpush1.msra.mxu0 0.0
    %2052 = vmatprep.subr.mxu0 0.0
    %2053 = vmatpush1.msra.mxu0 0.0
    %2054 = vmatprep.subr.mxu0 0.0
    %2055 = vmatpush1.msra.mxu0 0.0
    %2056 = vmatprep.subr.mxu0 0.0
    %2057 = vmatpush1.msra.mxu0 0.0
    %2058 = vmatprep.subr.mxu0 0.0
    %2059 = vmatpush1.msra.mxu0 0.0
    %2060 = vmatprep.subr.mxu0 0.0
    %2061 = vmatpush1.msra.mxu0 0.0
    %2062 = vmatprep.subr.mxu0 0.0
    %2063 = vmatpush1.msra.mxu0 0.0
    %2064 = vmatprep.subr.mxu0 0.0
    %2065 = vmatpush1.msra.mxu0 0.0
    %2066 = vmatprep.subr.mxu0 0.0
    %2067 = vmatpush1.msra.mxu0 0.0
    %2068 = vmatprep.mubr.f32.mxu0 0.0
    %v2069 = vand.u32 %v1663, 4294901760
    %2070 = vmatmul.mubr.f32.gmra.mrb[0].mxu0 %v2069
    %v2071 = vpop.f32.mrb[0].mxu0
    %v2072 = vadd.f32 %v1989, %v2071
    %v2073 = vpop.f32.mrb[0].mxu0
    %2074 = vdwg.mxu0
    %2075 = vmatprep.subr.mxu0 0.0
    %v2076 = vand.u32 %v1115, 4294901760
    %2077 = vmatpush1.msra.mxu0 %v2076
    %2078 = vmatprep.subr.mxu0 0.0
    %v2079 = vand.u32 %v1116, 4294901760
    %2080 = vmatpush1.msra.mxu0 %v2079
    %2081 = vmatprep.subr.mxu0 0.0
    %v2082 = vand.u32 %v1117, 4294901760
    %2083 = vmatpush1.msra.mxu0 %v2082
    %2084 = vmatprep.subr.mxu0 0.0
    %v2085 = vand.u32 %v1118, 4294901760
    %2086 = vmatpush1.msra.mxu0 %v2085
    %2087 = vmatprep.subr.mxu0 0.0
    %2088 = vmatpush1.msra.mxu0 0.0
    %2089 = vmatprep.subr.mxu0 0.0
    %2090 = vmatpush1.msra.mxu0 0.0
    %2091 = vmatprep.subr.mxu0 0.0
    %2092 = vmatpush1.msra.mxu0 0.0
    %2093 = vmatprep.subr.mxu0 0.0
    %2094 = vmatpush1.msra.mxu0 0.0
    %2095 = vmatprep.subr.mxu0 0.0
    %2096 = vmatpush1.msra.mxu0 0.0
    %2097 = vmatprep.subr.mxu0 0.0
    %2098 = vmatpush1.msra.mxu0 0.0
    %2099 = vmatprep.subr.mxu0 0.0
    %2100 = vmatpush1.msra.mxu0 0.0
    %2101 = vmatprep.subr.mxu0 0.0
    %2102 = vmatpush1.msra.mxu0 0.0
    %2103 = vmatprep.subr.mxu0 0.0
    %2104 = vmatpush1.msra.mxu0 0.0
    %2105 = vmatprep.subr.mxu0 0.0
    %2106 = vmatpush1.msra.mxu0 0.0
    %2107 = vmatprep.subr.mxu0 0.0
    %2108 = vmatpush1.msra.mxu0 0.0
    %2109 = vmatprep.subr.mxu0 0.0
    %2110 = vmatpush1.msra.mxu0 0.0
    %2111 = vmatprep.subr.mxu0 0.0
    %2112 = vmatpush1.msra.mxu0 0.0
    %2113 = vmatprep.subr.mxu0 0.0
    %2114 = vmatpush1.msra.mxu0 0.0
    %2115 = vmatprep.subr.mxu0 0.0
    %2116 = vmatpush1.msra.mxu0 0.0
    %2117 = vmatprep.subr.mxu0 0.0
    %2118 = vmatpush1.msra.mxu0 0.0
    %2119 = vmatprep.subr.mxu0 0.0
    %2120 = vmatpush1.msra.mxu0 0.0
    %2121 = vmatprep.subr.mxu0 0.0
    %2122 = vmatpush1.msra.mxu0 0.0
    %2123 = vmatprep.subr.mxu0 0.0
    %2124 = vmatpush1.msra.mxu0 0.0
    %2125 = vmatprep.subr.mxu0 0.0
    %2126 = vmatpush1.msra.mxu0 0.0
    %2127 = vmatprep.subr.mxu0 0.0
    %2128 = vmatpush1.msra.mxu0 0.0
    %2129 = vmatprep.subr.mxu0 0.0
    %2130 = vmatpush1.msra.mxu0 0.0
    %2131 = vmatprep.subr.mxu0 0.0
    %2132 = vmatpush1.msra.mxu0 0.0
    %2133 = vmatprep.subr.mxu0 0.0
    %2134 = vmatpush1.msra.mxu0 0.0
    %2135 = vmatprep.subr.mxu0 0.0
    %2136 = vmatpush1.msra.mxu0 0.0
    %2137 = vmatprep.subr.mxu0 0.0
    %2138 = vmatpush1.msra.mxu0 0.0
    %2139 = vmatprep.subr.mxu0 0.0
    %2140 = vmatpush1.msra.mxu0 0.0
    %2141 = vmatprep.subr.mxu0 0.0
    %2142 = vmatpush1.msra.mxu0 0.0
    %2143 = vmatprep.mubr.f32.mxu0 0.0
    %v2144 = vand.u32 %v1663, 4294901760
    %2145 = vmatmul.mubr.f32.gmra.mrb[0].mxu0 %v2144
    %v2146 = vpop.f32.mrb[0].mxu0
    %v2147 = vadd.f32 %v2072, %v2146
    %v2148 = vpop.f32.mrb[0].mxu0
    %2149 = vdwg.mxu0
    %v2151 = vrot.slane %v2147, 7
    %v2154 = vadd.f32 %v1113, %v2151
    %v2155 = vadd.f32 %v1114, %v2147
    %v2156 = vmul.f32 %v2154, 0.5
    %v2157 = vmul.f32 %v2155, 0.5
    %v2160 = vrot.slane %v2154, 1
    %v2161 = vsel %vm1626, %v2155, %v2160
    %v2165 = vrot.slane %v2156, 1
    %v2166 = vsel %vm1626, %v2157, %v2165
    %v2168 = vsel %vm1123, %v2161, %v2166
    %v2169 = vtanh.pop %v2168
    %v2170 = vadd.f32 %v2169, 1.0
    %v2171 = vmul.f32 %v2170, 0.5
    %v2172 = vsel %vm1123, %v2169, %v2171
    %v2173 = vmul.f32 %v2172, %v1653
    %2175 = vrot.lane.b32.xlu0 %v2172, 64
    %v2176 = vpop.permute.xlu0 %2175
    %v2178 = vmul.f32 %v2172, %v2176
    %2180 = vrot.lane.b32.xlu0 %v2178, 32
    %v2181 = vpop.permute.xlu0 %2180
    %v2183 = vadd.f32 %v2173, %v2181
    %v2184 = vtanh.pop %v2183
    %2186 = vrot.lane.b32.xlu0 %v2184, 64
    %v2187 = vpop.permute.xlu0 %2186
    %v2189 = vmul.f32 %v2172, %v2187
    %2191 = vrot.lane.b32.xlu0 %v2189, 32
    %v2192 = vpop.permute.xlu0 %2191
    %v2193 = vsel %vm1126, %v2192, 0
    %2195 = vmatprep.subr.mxu0 0.0
    %v2196 = vand.u32 %v1115, 4294901760
    %2197 = vmatpush1.msra.mxu0 %v2196
    %2198 = vmatprep.subr.mxu0 0.0
    %v2199 = vand.u32 %v1116, 4294901760
    %2200 = vmatpush1.msra.mxu0 %v2199
    %2201 = vmatprep.subr.mxu0 0.0
    %v2202 = vand.u32 %v1117, 4294901760
    %2203 = vmatpush1.msra.mxu0 %v2202
    %2204 = vmatprep.subr.mxu0 0.0
    %v2205 = vand.u32 %v1118, 4294901760
    %2206 = vmatpush1.msra.mxu0 %v2205
    %2207 = vmatprep.subr.mxu0 0.0
    %2208 = vmatpush1.msra.mxu0 0.0
    %2209 = vmatprep.subr.mxu0 0.0
    %2210 = vmatpush1.msra.mxu0 0.0
    %2211 = vmatprep.subr.mxu0 0.0
    %2212 = vmatpush1.msra.mxu0 0.0
    %2213 = vmatprep.subr.mxu0 0.0
    %2214 = vmatpush1.msra.mxu0 0.0
    %2215 = vmatprep.subr.mxu0 0.0
    %2216 = vmatpush1.msra.mxu0 0.0
    %2217 = vmatprep.subr.mxu0 0.0
    %2218 = vmatpush1.msra.mxu0 0.0
    %2219 = vmatprep.subr.mxu0 0.0
    %2220 = vmatpush1.msra.mxu0 0.0
    %2221 = vmatprep.subr.mxu0 0.0
    %2222 = vmatpush1.msra.mxu0 0.0
    %2223 = vmatprep.subr.mxu0 0.0
    %2224 = vmatpush1.msra.mxu0 0.0
    %2225 = vmatprep.subr.mxu0 0.0
    %2226 = vmatpush1.msra.mxu0 0.0
    %2227 = vmatprep.subr.mxu0 0.0
    %2228 = vmatpush1.msra.mxu0 0.0
    %2229 = vmatprep.subr.mxu0 0.0
    %2230 = vmatpush1.msra.mxu0 0.0
    %2231 = vmatprep.subr.mxu0 0.0
    %2232 = vmatpush1.msra.mxu0 0.0
    %2233 = vmatprep.subr.mxu0 0.0
    %2234 = vmatpush1.msra.mxu0 0.0
    %2235 = vmatprep.subr.mxu0 0.0
    %2236 = vmatpush1.msra.mxu0 0.0
    %2237 = vmatprep.subr.mxu0 0.0
    %2238 = vmatpush1.msra.mxu0 0.0
    %2239 = vmatprep.subr.mxu0 0.0
    %2240 = vmatpush1.msra.mxu0 0.0
    %2241 = vmatprep.subr.mxu0 0.0
    %2242 = vmatpush1.msra.mxu0 0.0
    %2243 = vmatprep.subr.mxu0 0.0
    %2244 = vmatpush1.msra.mxu0 0.0
    %2245 = vmatprep.subr.mxu0 0.0
    %2246 = vmatpush1.msra.mxu0 0.0
    %2247 = vmatprep.subr.mxu0 0.0
    %2248 = vmatpush1.msra.mxu0 0.0
    %2249 = vmatprep.subr.mxu0 0.0
    %2250 = vmatpush1.msra.mxu0 0.0
    %2251 = vmatprep.subr.mxu0 0.0
    %2252 = vmatpush1.msra.mxu0 0.0
    %2253 = vmatprep.subr.mxu0 0.0
    %2254 = vmatpush1.msra.mxu0 0.0
    %2255 = vmatprep.subr.mxu0 0.0
    %2256 = vmatpush1.msra.mxu0 0.0
    %2257 = vmatprep.subr.mxu0 0.0
    %2258 = vmatpush1.msra.mxu0 0.0
    %2259 = vmatprep.subr.mxu0 0.0
    %2260 = vmatpush1.msra.mxu0 0.0
    %2261 = vmatprep.subr.mxu0 0.0
    %2262 = vmatpush1.msra.mxu0 0.0
    %2263 = vmatprep.mubr.f32.mxu0 0.0
    %v2264 = vand.u32 %v2193, 4294901760
    %v2265 = vsub.f32 %v2193, %v2264
    %v2266 = vand.u32 %v2265, 4294901760
    %v2267 = vsub.f32 %v2265, %v2266
    %v2268 = vand.u32 %v2267, 4294901760
    %2269 = vmatmul.mubr.f32.gmra.mrb[0].mxu0 %v2268
    %v2270 = vpop.f32.mrb[0].mxu0
    %v2271 = vadd.f32 0.0, %v2270
    %v2272 = vpop.f32.mrb[0].mxu0
    %2273 = vdwg.mxu0
    %2274 = vmatprep.subr.mxu0 0.0
    %v2275 = vand.u32 %v1115, 4294901760
    %v2276 = vsub.f32 %v1115, %v2275
    %v2277 = vand.u32 %v2276, 4294901760
    %v2278 = vsub.f32 %v2276, %v2277
    %v2279 = vand.u32 %v2278, 4294901760
    %2280 = vmatpush1.msra.mxu0 %v2279
    %2281 = vmatprep.subr.mxu0 0.0
    %v2282 = vand.u32 %v1116, 4294901760
    %v2283 = vsub.f32 %v1116, %v2282
    %v2284 = vand.u32 %v2283, 4294901760
    %v2285 = vsub.f32 %v2283, %v2284
    %v2286 = vand.u32 %v2285, 4294901760
    %2287 = vmatpush1.msra.mxu0 %v2286
    %2288 = vmatprep.subr.mxu0 0.0
    %v2289 = vand.u32 %v1117, 4294901760
    %v2290 = vsub.f32 %v1117, %v2289
    %v2291 = vand.u32 %v2290, 4294901760
    %v2292 = vsub.f32 %v2290, %v2291
    %v2293 = vand.u32 %v2292, 4294901760
    %2294 = vmatpush1.msra.mxu0 %v2293
    %2295 = vmatprep.subr.mxu0 0.0
    %v2296 = vand.u32 %v1118, 4294901760
    %v2297 = vsub.f32 %v1118, %v2296
    %v2298 = vand.u32 %v2297, 4294901760
    %v2299 = vsub.f32 %v2297, %v2298
    %v2300 = vand.u32 %v2299, 4294901760
    %2301 = vmatpush1.msra.mxu0 %v2300
    %2302 = vmatprep.subr.mxu0 0.0
    %2303 = vmatpush1.msra.mxu0 0.0
    %2304 = vmatprep.subr.mxu0 0.0
    %2305 = vmatpush1.msra.mxu0 0.0
    %2306 = vmatprep.subr.mxu0 0.0
    %2307 = vmatpush1.msra.mxu0 0.0
    %2308 = vmatprep.subr.mxu0 0.0
    %2309 = vmatpush1.msra.mxu0 0.0
    %2310 = vmatprep.subr.mxu0 0.0
    %2311 = vmatpush1.msra.mxu0 0.0
    %2312 = vmatprep.subr.mxu0 0.0
    %2313 = vmatpush1.msra.mxu0 0.0
    %2314 = vmatprep.subr.mxu0 0.0
    %2315 = vmatpush1.msra.mxu0 0.0
    %2316 = vmatprep.subr.mxu0 0.0
    %2317 = vmatpush1.msra.mxu0 0.0
    %2318 = vmatprep.subr.mxu0 0.0
    %2319 = vmatpush1.msra.mxu0 0.0
    %2320 = vmatprep.subr.mxu0 0.0
    %2321 = vmatpush1.msra.mxu0 0.0
    %2322 = vmatprep.subr.mxu0 0.0
    %2323 = vmatpush1.msra.mxu0 0.0
    %2324 = vmatprep.subr.mxu0 0.0
    %2325 = vmatpush1.msra.mxu0 0.0
    %2326 = vmatprep.subr.mxu0 0.0
    %2327 = vmatpush1.msra.mxu0 0.0
    %2328 = vmatprep.subr.mxu0 0.0
    %2329 = vmatpush1.msra.mxu0 0.0
    %2330 = vmatprep.subr.mxu0 0.0
    %2331 = vmatpush1.msra.mxu0 0.0
    %2332 = vmatprep.subr.mxu0 0.0
    %2333 = vmatpush1.msra.mxu0 0.0
    %2334 = vmatprep.subr.mxu0 0.0
    %2335 = vmatpush1.msra.mxu0 0.0
    %2336 = vmatprep.subr.mxu0 0.0
    %2337 = vmatpush1.msra.mxu0 0.0
    %2338 = vmatprep.subr.mxu0 0.0
    %2339 = vmatpush1.msra.mxu0 0.0
    %2340 = vmatprep.subr.mxu0 0.0
    %2341 = vmatpush1.msra.mxu0 0.0
    %2342 = vmatprep.subr.mxu0 0.0
    %2343 = vmatpush1.msra.mxu0 0.0
    %2344 = vmatprep.subr.mxu0 0.0
    %2345 = vmatpush1.msra.mxu0 0.0
    %2346 = vmatprep.subr.mxu0 0.0
    %2347 = vmatpush1.msra.mxu0 0.0
    %2348 = vmatprep.subr.mxu0 0.0
    %2349 = vmatpush1.msra.mxu0 0.0
    %2350 = vmatprep.subr.mxu0 0.0
    %2351 = vmatpush1.msra.mxu0 0.0
    %2352 = vmatprep.subr.mxu0 0.0
    %2353 = vmatpush1.msra.mxu0 0.0
    %2354 = vmatprep.subr.mxu0 0.0
    %2355 = vmatpush1.msra.mxu0 0.0
    %2356 = vmatprep.subr.mxu0 0.0
    %2357 = vmatpush1.msra.mxu0 0.0
    %2358 = vmatprep.mubr.f32.mxu0 0.0
    %v2359 = vand.u32 %v2193, 4294901760
    %2360 = vmatmul.mubr.f32.gmra.mrb[0].mxu0 %v2359
    %v2361 = vpop.f32.mrb[0].mxu0
    %v2362 = vadd.f32 %v2271, %v2361
    %v2363 = vpop.f32.mrb[0].mxu0
    %2364 = vdwg.mxu0
    %2365 = vmatprep.subr.mxu0 0.0
    %v2366 = vand.u32 %v1115, 4294901760
    %v2367 = vsub.f32 %v1115, %v2366
    %2368 = vmatpush1.msra.mxu0 %v2367
    %2369 = vmatprep.subr.mxu0 0.0
    %v2370 = vand.u32 %v1116, 4294901760
    %v2371 = vsub.f32 %v1116, %v2370
    %2372 = vmatpush1.msra.mxu0 %v2371
    %2373 = vmatprep.subr.mxu0 0.0
    %v2374 = vand.u32 %v1117, 4294901760
    %v2375 = vsub.f32 %v1117, %v2374
    %2376 = vmatpush1.msra.mxu0 %v2375
    %2377 = vmatprep.subr.mxu0 0.0
    %v2378 = vand.u32 %v1118, 4294901760
    %v2379 = vsub.f32 %v1118, %v2378
    %2380 = vmatpush1.msra.mxu0 %v2379
    %2381 = vmatprep.subr.mxu0 0.0
    %2382 = vmatpush1.msra.mxu0 0.0
    %2383 = vmatprep.subr.mxu0 0.0
    %2384 = vmatpush1.msra.mxu0 0.0
    %2385 = vmatprep.subr.mxu0 0.0
    %2386 = vmatpush1.msra.mxu0 0.0
    %2387 = vmatprep.subr.mxu0 0.0
    %2388 = vmatpush1.msra.mxu0 0.0
    %2389 = vmatprep.subr.mxu0 0.0
    %2390 = vmatpush1.msra.mxu0 0.0
    %2391 = vmatprep.subr.mxu0 0.0
    %2392 = vmatpush1.msra.mxu0 0.0
    %2393 = vmatprep.subr.mxu0 0.0
    %2394 = vmatpush1.msra.mxu0 0.0
    %2395 = vmatprep.subr.mxu0 0.0
    %2396 = vmatpush1.msra.mxu0 0.0
    %2397 = vmatprep.subr.mxu0 0.0
    %2398 = vmatpush1.msra.mxu0 0.0
    %2399 = vmatprep.subr.mxu0 0.0
    %2400 = vmatpush1.msra.mxu0 0.0
    %2401 = vmatprep.subr.mxu0 0.0
    %2402 = vmatpush1.msra.mxu0 0.0
    %2403 = vmatprep.subr.mxu0 0.0
    %2404 = vmatpush1.msra.mxu0 0.0
    %2405 = vmatprep.subr.mxu0 0.0
    %2406 = vmatpush1.msra.mxu0 0.0
    %2407 = vmatprep.subr.mxu0 0.0
    %2408 = vmatpush1.msra.mxu0 0.0
    %2409 = vmatprep.subr.mxu0 0.0
    %2410 = vmatpush1.msra.mxu0 0.0
    %2411 = vmatprep.subr.mxu0 0.0
    %2412 = vmatpush1.msra.mxu0 0.0
    %2413 = vmatprep.subr.mxu0 0.0
    %2414 = vmatpush1.msra.mxu0 0.0
    %2415 = vmatprep.subr.mxu0 0.0
    %2416 = vmatpush1.msra.mxu0 0.0
    %2417 = vmatprep.subr.mxu0 0.0
    %2418 = vmatpush1.msra.mxu0 0.0
    %2419 = vmatprep.subr.mxu0 0.0
    %2420 = vmatpush1.msra.mxu0 0.0
    %2421 = vmatprep.subr.mxu0 0.0
    %2422 = vmatpush1.msra.mxu0 0.0
    %2423 = vmatprep.subr.mxu0 0.0
    %2424 = vmatpush1.msra.mxu0 0.0
    %2425 = vmatprep.subr.mxu0 0.0
    %2426 = vmatpush1.msra.mxu0 0.0
    %2427 = vmatprep.subr.mxu0 0.0
    %2428 = vmatpush1.msra.mxu0 0.0
    %2429 = vmatprep.subr.mxu0 0.0
    %2430 = vmatpush1.msra.mxu0 0.0
    %2431 = vmatprep.subr.mxu0 0.0
    %2432 = vmatpush1.msra.mxu0 0.0
    %2433 = vmatprep.subr.mxu0 0.0
    %2434 = vmatpush1.msra.mxu0 0.0
    %2435 = vmatprep.subr.mxu0 0.0
    %2436 = vmatpush1.msra.mxu0 0.0
    %2437 = vmatprep.mubr.f32.mxu0 0.0
    %v2438 = vand.u32 %v2193, 4294901760
    %v2439 = vsub.f32 %v2193, %v2438
    %2440 = vmatmul.mubr.f32.gmra.mrb[0].mxu0 %v2439
    %v2441 = vpop.f32.mrb[0].mxu0
    %v2442 = vadd.f32 %v2362, %v2441
    %v2443 = vpop.f32.mrb[0].mxu0
    %2444 = vdwg.mxu0
    %2445 = vmatprep.subr.mxu0 0.0
    %v2446 = vand.u32 %v1115, 4294901760
    %2447 = vmatpush1.msra.mxu0 %v2446
    %2448 = vmatprep.subr.mxu0 0.0
    %v2449 = vand.u32 %v1116, 4294901760
    %2450 = vmatpush1.msra.mxu0 %v2449
    %2451 = vmatprep.subr.mxu0 0.0
    %v2452 = vand.u32 %v1117, 4294901760
    %2453 = vmatpush1.msra.mxu0 %v2452
    %2454 = vmatprep.subr.mxu0 0.0
    %v2455 = vand.u32 %v1118, 4294901760
    %2456 = vmatpush1.msra.mxu0 %v2455
    %2457 = vmatprep.subr.mxu0 0.0
    %2458 = vmatpush1.msra.mxu0 0.0
    %2459 = vmatprep.subr.mxu0 0.0
    %2460 = vmatpush1.msra.mxu0 0.0
    %2461 = vmatprep.subr.mxu0 0.0
    %2462 = vmatpush1.msra.mxu0 0.0
    %2463 = vmatprep.subr.mxu0 0.0
    %2464 = vmatpush1.msra.mxu0 0.0
    %2465 = vmatprep.subr.mxu0 0.0
    %2466 = vmatpush1.msra.mxu0 0.0
    %2467 = vmatprep.subr.mxu0 0.0
    %2468 = vmatpush1.msra.mxu0 0.0
    %2469 = vmatprep.subr.mxu0 0.0
    %2470 = vmatpush1.msra.mxu0 0.0
    %2471 = vmatprep.subr.mxu0 0.0
    %2472 = vmatpush1.msra.mxu0 0.0
    %2473 = vmatprep.subr.mxu0 0.0
    %2474 = vmatpush1.msra.mxu0 0.0
    %2475 = vmatprep.subr.mxu0 0.0
    %2476 = vmatpush1.msra.mxu0 0.0
    %2477 = vmatprep.subr.mxu0 0.0
    %2478 = vmatpush1.msra.mxu0 0.0
    %2479 = vmatprep.subr.mxu0 0.0
    %2480 = vmatpush1.msra.mxu0 0.0
    %2481 = vmatprep.subr.mxu0 0.0
    %2482 = vmatpush1.msra.mxu0 0.0
    %2483 = vmatprep.subr.mxu0 0.0
    %2484 = vmatpush1.msra.mxu0 0.0
    %2485 = vmatprep.subr.mxu0 0.0
    %2486 = vmatpush1.msra.mxu0 0.0
    %2487 = vmatprep.subr.mxu0 0.0
    %2488 = vmatpush1.msra.mxu0 0.0
    %2489 = vmatprep.subr.mxu0 0.0
    %2490 = vmatpush1.msra.mxu0 0.0
    %2491 = vmatprep.subr.mxu0 0.0
    %2492 = vmatpush1.msra.mxu0 0.0
    %2493 = vmatprep.subr.mxu0 0.0
    %2494 = vmatpush1.msra.mxu0 0.0
    %2495 = vmatprep.subr.mxu0 0.0
    %2496 = vmatpush1.msra.mxu0 0.0
    %2497 = vmatprep.subr.mxu0 0.0
    %2498 = vmatpush1.msra.mxu0 0.0
    %2499 = vmatprep.subr.mxu0 0.0
    %2500 = vmatpush1.msra.mxu0 0.0
    %2501 = vmatprep.subr.mxu0 0.0
    %2502 = vmatpush1.msra.mxu0 0.0
    %2503 = vmatprep.subr.mxu0 0.0
    %2504 = vmatpush1.msra.mxu0 0.0
    %2505 = vmatprep.subr.mxu0 0.0
    %2506 = vmatpush1.msra.mxu0 0.0
    %2507 = vmatprep.subr.mxu0 0.0
    %2508 = vmatpush1.msra.mxu0 0.0
    %2509 = vmatprep.subr.mxu0 0.0
    %2510 = vmatpush1.msra.mxu0 0.0
    %2511 = vmatprep.subr.mxu0 0.0
    %2512 = vmatpush1.msra.mxu0 0.0
    %2513 = vmatprep.mubr.f32.mxu0 0.0
    %v2514 = vand.u32 %v2193, 4294901760
    %v2515 = vsub.f32 %v2193, %v2514
    %v2516 = vand.u32 %v2515, 4294901760
    %2517 = vmatmul.mubr.f32.gmra.mrb[0].mxu0 %v2516
    %v2518 = vpop.f32.mrb[0].mxu0
    %v2519 = vadd.f32 %v2442, %v2518
    %v2520 = vpop.f32.mrb[0].mxu0
    %2521 = vdwg.mxu0
    %2522 = vmatprep.subr.mxu0 0.0
    %v2523 = vand.u32 %v1115, 4294901760
    %v2524 = vsub.f32 %v1115, %v2523
    %v2525 = vand.u32 %v2524, 4294901760
    %2526 = vmatpush1.msra.mxu0 %v2525
    %2527 = vmatprep.subr.mxu0 0.0
    %v2528 = vand.u32 %v1116, 4294901760
    %v2529 = vsub.f32 %v1116, %v2528
    %v2530 = vand.u32 %v2529, 4294901760
    %2531 = vmatpush1.msra.mxu0 %v2530
    %2532 = vmatprep.subr.mxu0 0.0
    %v2533 = vand.u32 %v1117, 4294901760
    %v2534 = vsub.f32 %v1117, %v2533
    %v2535 = vand.u32 %v2534, 4294901760
    %2536 = vmatpush1.msra.mxu0 %v2535
    %2537 = vmatprep.subr.mxu0 0.0
    %v2538 = vand.u32 %v1118, 4294901760
    %v2539 = vsub.f32 %v1118, %v2538
    %v2540 = vand.u32 %v2539, 4294901760
    %2541 = vmatpush1.msra.mxu0 %v2540
    %2542 = vmatprep.subr.mxu0 0.0
    %2543 = vmatpush1.msra.mxu0 0.0
    %2544 = vmatprep.subr.mxu0 0.0
    %2545 = vmatpush1.msra.mxu0 0.0
    %2546 = vmatprep.subr.mxu0 0.0
    %2547 = vmatpush1.msra.mxu0 0.0
    %2548 = vmatprep.subr.mxu0 0.0
    %2549 = vmatpush1.msra.mxu0 0.0
    %2550 = vmatprep.subr.mxu0 0.0
    %2551 = vmatpush1.msra.mxu0 0.0
    %2552 = vmatprep.subr.mxu0 0.0
    %2553 = vmatpush1.msra.mxu0 0.0
    %2554 = vmatprep.subr.mxu0 0.0
    %2555 = vmatpush1.msra.mxu0 0.0
    %2556 = vmatprep.subr.mxu0 0.0
    %2557 = vmatpush1.msra.mxu0 0.0
    %2558 = vmatprep.subr.mxu0 0.0
    %2559 = vmatpush1.msra.mxu0 0.0
    %2560 = vmatprep.subr.mxu0 0.0
    %2561 = vmatpush1.msra.mxu0 0.0
    %2562 = vmatprep.subr.mxu0 0.0
    %2563 = vmatpush1.msra.mxu0 0.0
    %2564 = vmatprep.subr.mxu0 0.0
    %2565 = vmatpush1.msra.mxu0 0.0
    %2566 = vmatprep.subr.mxu0 0.0
    %2567 = vmatpush1.msra.mxu0 0.0
    %2568 = vmatprep.subr.mxu0 0.0
    %2569 = vmatpush1.msra.mxu0 0.0
    %2570 = vmatprep.subr.mxu0 0.0
    %2571 = vmatpush1.msra.mxu0 0.0
    %2572 = vmatprep.subr.mxu0 0.0
    %2573 = vmatpush1.msra.mxu0 0.0
    %2574 = vmatprep.subr.mxu0 0.0
    %2575 = vmatpush1.msra.mxu0 0.0
    %2576 = vmatprep.subr.mxu0 0.0
    %2577 = vmatpush1.msra.mxu0 0.0
    %2578 = vmatprep.subr.mxu0 0.0
    %2579 = vmatpush1.msra.mxu0 0.0
    %2580 = vmatprep.subr.mxu0 0.0
    %2581 = vmatpush1.msra.mxu0 0.0
    %2582 = vmatprep.subr.mxu0 0.0
    %2583 = vmatpush1.msra.mxu0 0.0
    %2584 = vmatprep.subr.mxu0 0.0
    %2585 = vmatpush1.msra.mxu0 0.0
    %2586 = vmatprep.subr.mxu0 0.0
    %2587 = vmatpush1.msra.mxu0 0.0
    %2588 = vmatprep.subr.mxu0 0.0
    %2589 = vmatpush1.msra.mxu0 0.0
    %2590 = vmatprep.subr.mxu0 0.0
    %2591 = vmatpush1.msra.mxu0 0.0
    %2592 = vmatprep.subr.mxu0 0.0
    %2593 = vmatpush1.msra.mxu0 0.0
    %2594 = vmatprep.subr.mxu0 0.0
    %2595 = vmatpush1.msra.mxu0 0.0
    %2596 = vmatprep.subr.mxu0 0.0
    %2597 = vmatpush1.msra.mxu0 0.0
    %2598 = vmatprep.mubr.f32.mxu0 0.0
    %v2599 = vand.u32 %v2193, 4294901760
    %2600 = vmatmul.mubr.f32.gmra.mrb[0].mxu0 %v2599
    %v2601 = vpop.f32.mrb[0].mxu0
    %v2602 = vadd.f32 %v2519, %v2601
    %v2603 = vpop.f32.mrb[0].mxu0
    %2604 = vdwg.mxu0
    %2605 = vmatprep.subr.mxu0 0.0
    %v2606 = vand.u32 %v1115, 4294901760
    %2607 = vmatpush1.msra.mxu0 %v2606
    %2608 = vmatprep.subr.mxu0 0.0
    %v2609 = vand.u32 %v1116, 4294901760
    %2610 = vmatpush1.msra.mxu0 %v2609
    %2611 = vmatprep.subr.mxu0 0.0
    %v2612 = vand.u32 %v1117, 4294901760
    %2613 = vmatpush1.msra.mxu0 %v2612
    %2614 = vmatprep.subr.mxu0 0.0
    %v2615 = vand.u32 %v1118, 4294901760
    %2616 = vmatpush1.msra.mxu0 %v2615
    %2617 = vmatprep.subr.mxu0 0.0
    %2618 = vmatpush1.msra.mxu0 0.0
    %2619 = vmatprep.subr.mxu0 0.0
    %2620 = vmatpush1.msra.mxu0 0.0
    %2621 = vmatprep.subr.mxu0 0.0
    %2622 = vmatpush1.msra.mxu0 0.0
    %2623 = vmatprep.subr.mxu0 0.0
    %2624 = vmatpush1.msra.mxu0 0.0
    %2625 = vmatprep.subr.mxu0 0.0
    %2626 = vmatpush1.msra.mxu0 0.0
    %2627 = vmatprep.subr.mxu0 0.0
    %2628 = vmatpush1.msra.mxu0 0.0
    %2629 = vmatprep.subr.mxu0 0.0
    %2630 = vmatpush1.msra.mxu0 0.0
    %2631 = vmatprep.subr.mxu0 0.0
    %2632 = vmatpush1.msra.mxu0 0.0
    %2633 = vmatprep.subr.mxu0 0.0
    %2634 = vmatpush1.msra.mxu0 0.0
    %2635 = vmatprep.subr.mxu0 0.0
    %2636 = vmatpush1.msra.mxu0 0.0
    %2637 = vmatprep.subr.mxu0 0.0
    %2638 = vmatpush1.msra.mxu0 0.0
    %2639 = vmatprep.subr.mxu0 0.0
    %2640 = vmatpush1.msra.mxu0 0.0
    %2641 = vmatprep.subr.mxu0 0.0
    %2642 = vmatpush1.msra.mxu0 0.0
    %2643 = vmatprep.subr.mxu0 0.0
    %2644 = vmatpush1.msra.mxu0 0.0
    %2645 = vmatprep.subr.mxu0 0.0
    %2646 = vmatpush1.msra.mxu0 0.0
    %2647 = vmatprep.subr.mxu0 0.0
    %2648 = vmatpush1.msra.mxu0 0.0
    %2649 = vmatprep.subr.mxu0 0.0
    %2650 = vmatpush1.msra.mxu0 0.0
    %2651 = vmatprep.subr.mxu0 0.0
    %2652 = vmatpush1.msra.mxu0 0.0
    %2653 = vmatprep.subr.mxu0 0.0
    %2654 = vmatpush1.msra.mxu0 0.0
    %2655 = vmatprep.subr.mxu0 0.0
    %2656 = vmatpush1.msra.mxu0 0.0
    %2657 = vmatprep.subr.mxu0 0.0
    %2658 = vmatpush1.msra.mxu0 0.0
    %2659 = vmatprep.subr.mxu0 0.0
    %2660 = vmatpush1.msra.mxu0 0.0
    %2661 = vmatprep.subr.mxu0 0.0
    %2662 = vmatpush1.msra.mxu0 0.0
    %2663 = vmatprep.subr.mxu0 0.0
    %2664 = vmatpush1.msra.mxu0 0.0
    %2665 = vmatprep.subr.mxu0 0.0
    %2666 = vmatpush1.msra.mxu0 0.0
    %2667 = vmatprep.subr.mxu0 0.0
    %2668 = vmatpush1.msra.mxu0 0.0
    %2669 = vmatprep.subr.mxu0 0.0
    %2670 = vmatpush1.msra.mxu0 0.0
    %2671 = vmatprep.subr.mxu0 0.0
    %2672 = vmatpush1.msra.mxu0 0.0
    %2673 = vmatprep.mubr.f32.mxu0 0.0
    %v2674 = vand.u32 %v2193, 4294901760
    %2675 = vmatmul.mubr.f32.gmra.mrb[0].mxu0 %v2674
    %v2676 = vpop.f32.mrb[0].mxu0
    %v2677 = vadd.f32 %v2602, %v2676
    %v2678 = vpop.f32.mrb[0].mxu0
    %2679 = vdwg.mxu0
    %v2681 = vrot.slane %v2677, 6
    %v2682 = vrot.slane %v2677, 7
    %v2685 = vadd.f32 %v1113, %v2681
    %v2686 = vadd.f32 %v1114, %v2682
    %v2687 = vmul.f32 %v2685, 0.5
    %v2688 = vmul.f32 %v2686, 0.5
    %v2691 = vrot.slane %v2685, 2
    %v2692 = vrot.slane %v2686, 1
    %v2693 = vsel %vm1626, %v2692, %v2691
    %v2697 = vrot.slane %v2687, 2
    %v2698 = vrot.slane %v2688, 1
    %v2699 = vsel %vm1626, %v2698, %v2697
    %v2701 = vsel %vm1123, %v2693, %v2699
    %v2702 = vtanh.pop %v2701
    %v2703 = vadd.f32 %v2702, 1.0
    %v2704 = vmul.f32 %v2703, 0.5
    %v2705 = vsel %vm1123, %v2702, %v2704
    %v2706 = vmul.f32 %v2705, %v2183
    %2708 = vrot.lane.b32.xlu0 %v2705, 64
    %v2709 = vpop.permute.xlu0 %2708
    %v2711 = vmul.f32 %v2705, %v2709
    %2713 = vrot.lane.b32.xlu0 %v2711, 32
    %v2714 = vpop.permute.xlu0 %2713
    %v2716 = vadd.f32 %v2706, %v2714
    %v2717 = vtanh.pop %v2716
    %2719 = vrot.lane.b32.xlu0 %v2717, 64
    %v2720 = vpop.permute.xlu0 %2719
    %v2722 = vmul.f32 %v2705, %v2720
    %2724 = vrot.lane.b32.xlu0 %v2722, 32
    %v2725 = vpop.permute.xlu0 %2724
    %v2726 = vsel %vm1126, %v2725, 0
    %2728 = vmatprep.subr.mxu0 0.0
    %v2729 = vand.u32 %v1115, 4294901760
    %2730 = vmatpush1.msra.mxu0 %v2729
    %2731 = vmatprep.subr.mxu0 0.0
    %v2732 = vand.u32 %v1116, 4294901760
    %2733 = vmatpush1.msra.mxu0 %v2732
    %2734 = vmatprep.subr.mxu0 0.0
    %v2735 = vand.u32 %v1117, 4294901760
    %2736 = vmatpush1.msra.mxu0 %v2735
    %2737 = vmatprep.subr.mxu0 0.0
    %v2738 = vand.u32 %v1118, 4294901760
    %2739 = vmatpush1.msra.mxu0 %v2738
    %2740 = vmatprep.subr.mxu0 0.0
    %2741 = vmatpush1.msra.mxu0 0.0
    %2742 = vmatprep.subr.mxu0 0.0
    %2743 = vmatpush1.msra.mxu0 0.0
    %2744 = vmatprep.subr.mxu0 0.0
    %2745 = vmatpush1.msra.mxu0 0.0
    %2746 = vmatprep.subr.mxu0 0.0
    %2747 = vmatpush1.msra.mxu0 0.0
    %2748 = vmatprep.subr.mxu0 0.0
    %2749 = vmatpush1.msra.mxu0 0.0
    %2750 = vmatprep.subr.mxu0 0.0
    %2751 = vmatpush1.msra.mxu0 0.0
    %2752 = vmatprep.subr.mxu0 0.0
    %2753 = vmatpush1.msra.mxu0 0.0
    %2754 = vmatprep.subr.mxu0 0.0
    %2755 = vmatpush1.msra.mxu0 0.0
    %2756 = vmatprep.subr.mxu0 0.0
    %2757 = vmatpush1.msra.mxu0 0.0
    %2758 = vmatprep.subr.mxu0 0.0
    %2759 = vmatpush1.msra.mxu0 0.0
    %2760 = vmatprep.subr.mxu0 0.0
    %2761 = vmatpush1.msra.mxu0 0.0
    %2762 = vmatprep.subr.mxu0 0.0
    %2763 = vmatpush1.msra.mxu0 0.0
    %2764 = vmatprep.subr.mxu0 0.0
    %2765 = vmatpush1.msra.mxu0 0.0
    %2766 = vmatprep.subr.mxu0 0.0
    %2767 = vmatpush1.msra.mxu0 0.0
    %2768 = vmatprep.subr.mxu0 0.0
    %2769 = vmatpush1.msra.mxu0 0.0
    %2770 = vmatprep.subr.mxu0 0.0
    %2771 = vmatpush1.msra.mxu0 0.0
    %2772 = vmatprep.subr.mxu0 0.0
    %2773 = vmatpush1.msra.mxu0 0.0
    %2774 = vmatprep.subr.mxu0 0.0
    %2775 = vmatpush1.msra.mxu0 0.0
    %2776 = vmatprep.subr.mxu0 0.0
    %2777 = vmatpush1.msra.mxu0 0.0
    %2778 = vmatprep.subr.mxu0 0.0
    %2779 = vmatpush1.msra.mxu0 0.0
    %2780 = vmatprep.subr.mxu0 0.0
    %2781 = vmatpush1.msra.mxu0 0.0
    %2782 = vmatprep.subr.mxu0 0.0
    %2783 = vmatpush1.msra.mxu0 0.0
    %2784 = vmatprep.subr.mxu0 0.0
    %2785 = vmatpush1.msra.mxu0 0.0
    %2786 = vmatprep.subr.mxu0 0.0
    %2787 = vmatpush1.msra.mxu0 0.0
    %2788 = vmatprep.subr.mxu0 0.0
    %2789 = vmatpush1.msra.mxu0 0.0
    %2790 = vmatprep.subr.mxu0 0.0
    %2791 = vmatpush1.msra.mxu0 0.0
    %2792 = vmatprep.subr.mxu0 0.0
    %2793 = vmatpush1.msra.mxu0 0.0
    %2794 = vmatprep.subr.mxu0 0.0
    %2795 = vmatpush1.msra.mxu0 0.0
    %2796 = vmatprep.mubr.f32.mxu0 0.0
    %v2797 = vand.u32 %v2726, 4294901760
    %v2798 = vsub.f32 %v2726, %v2797
    %v2799 = vand.u32 %v2798, 4294901760
    %v2800 = vsub.f32 %v2798, %v2799
    %v2801 = vand.u32 %v2800, 4294901760
    %2802 = vmatmul.mubr.f32.gmra.mrb[0].mxu0 %v2801
    %v2803 = vpop.f32.mrb[0].mxu0
    %v2804 = vadd.f32 0.0, %v2803
    %v2805 = vpop.f32.mrb[0].mxu0
    %2806 = vdwg.mxu0
    %2807 = vmatprep.subr.mxu0 0.0
    %v2808 = vand.u32 %v1115, 4294901760
    %v2809 = vsub.f32 %v1115, %v2808
    %v2810 = vand.u32 %v2809, 4294901760
    %v2811 = vsub.f32 %v2809, %v2810
    %v2812 = vand.u32 %v2811, 4294901760
    %2813 = vmatpush1.msra.mxu0 %v2812
    %2814 = vmatprep.subr.mxu0 0.0
    %v2815 = vand.u32 %v1116, 4294901760
    %v2816 = vsub.f32 %v1116, %v2815
    %v2817 = vand.u32 %v2816, 4294901760
    %v2818 = vsub.f32 %v2816, %v2817
    %v2819 = vand.u32 %v2818, 4294901760
    %2820 = vmatpush1.msra.mxu0 %v2819
    %2821 = vmatprep.subr.mxu0 0.0
    %v2822 = vand.u32 %v1117, 4294901760
    %v2823 = vsub.f32 %v1117, %v2822
    %v2824 = vand.u32 %v2823, 4294901760
    %v2825 = vsub.f32 %v2823, %v2824
    %v2826 = vand.u32 %v2825, 4294901760
    %2827 = vmatpush1.msra.mxu0 %v2826
    %2828 = vmatprep.subr.mxu0 0.0
    %v2829 = vand.u32 %v1118, 4294901760
    %v2830 = vsub.f32 %v1118, %v2829
    %v2831 = vand.u32 %v2830, 4294901760
    %v2832 = vsub.f32 %v2830, %v2831
    %v2833 = vand.u32 %v2832, 4294901760
    %2834 = vmatpush1.msra.mxu0 %v2833
    %2835 = vmatprep.subr.mxu0 0.0
    %2836 = vmatpush1.msra.mxu0 0.0
    %2837 = vmatprep.subr.mxu0 0.0
    %2838 = vmatpush1.msra.mxu0 0.0
    %2839 = vmatprep.subr.mxu0 0.0
    %2840 = vmatpush1.msra.mxu0 0.0
    %2841 = vmatprep.subr.mxu0 0.0
    %2842 = vmatpush1.msra.mxu0 0.0
    %2843 = vmatprep.subr.mxu0 0.0
    %2844 = vmatpush1.msra.mxu0 0.0
    %2845 = vmatprep.subr.mxu0 0.0
    %2846 = vmatpush1.msra.mxu0 0.0
    %2847 = vmatprep.subr.mxu0 0.0
    %2848 = vmatpush1.msra.mxu0 0.0
    %2849 = vmatprep.subr.mxu0 0.0
    %2850 = vmatpush1.msra.mxu0 0.0
    %2851 = vmatprep.subr.mxu0 0.0
    %2852 = vmatpush1.msra.mxu0 0.0
    %2853 = vmatprep.subr.mxu0 0.0
    %2854 = vmatpush1.msra.mxu0 0.0
    %2855 = vmatprep.subr.mxu0 0.0
    %2856 = vmatpush1.msra.mxu0 0.0
    %2857 = vmatprep.subr.mxu0 0.0
    %2858 = vmatpush1.msra.mxu0 0.0
    %2859 = vmatprep.subr.mxu0 0.0
    %2860 = vmatpush1.msra.mxu0 0.0
    %2861 = vmatprep.subr.mxu0 0.0
    %2862 = vmatpush1.msra.mxu0 0.0
    %2863 = vmatprep.subr.mxu0 0.0
    %2864 = vmatpush1.msra.mxu0 0.0
    %2865 = vmatprep.subr.mxu0 0.0
    %2866 = vmatpush1.msra.mxu0 0.0
    %2867 = vmatprep.subr.mxu0 0.0
    %2868 = vmatpush1.msra.mxu0 0.0
    %2869 = vmatprep.subr.mxu0 0.0
    %2870 = vmatpush1.msra.mxu0 0.0
    %2871 = vmatprep.subr.mxu0 0.0
    %2872 = vmatpush1.msra.mxu0 0.0
    %2873 = vmatprep.subr.mxu0 0.0
    %2874 = vmatpush1.msra.mxu0 0.0
    %2875 = vmatprep.subr.mxu0 0.0
    %2876 = vmatpush1.msra.mxu0 0.0
    %2877 = vmatprep.subr.mxu0 0.0
    %2878 = vmatpush1.msra.mxu0 0.0
    %2879 = vmatprep.subr.mxu0 0.0
    %2880 = vmatpush1.msra.mxu0 0.0
    %2881 = vmatprep.subr.mxu0 0.0
    %2882 = vmatpush1.msra.mxu0 0.0
    %2883 = vmatprep.subr.mxu0 0.0
    %2884 = vmatpush1.msra.mxu0 0.0
    %2885 = vmatprep.subr.mxu0 0.0
    %2886 = vmatpush1.msra.mxu0 0.0
    %2887 = vmatprep.subr.mxu0 0.0
    %2888 = vmatpush1.msra.mxu0 0.0
    %2889 = vmatprep.subr.mxu0 0.0
    %2890 = vmatpush1.msra.mxu0 0.0
    %2891 = vmatprep.mubr.f32.mxu0 0.0
    %v2892 = vand.u32 %v2726, 4294901760
    %2893 = vmatmul.mubr.f32.gmra.mrb[0].mxu0 %v2892
    %v2894 = vpop.f32.mrb[0].mxu0
    %v2895 = vadd.f32 %v2804, %v2894
    %v2896 = vpop.f32.mrb[0].mxu0
    %2897 = vdwg.mxu0
    %2898 = vmatprep.subr.mxu0 0.0
    %v2899 = vand.u32 %v1115, 4294901760
    %v2900 = vsub.f32 %v1115, %v2899
    %2901 = vmatpush1.msra.mxu0 %v2900
    %2902 = vmatprep.subr.mxu0 0.0
    %v2903 = vand.u32 %v1116, 4294901760
    %v2904 = vsub.f32 %v1116, %v2903
    %2905 = vmatpush1.msra.mxu0 %v2904
    %2906 = vmatprep.subr.mxu0 0.0
    %v2907 = vand.u32 %v1117, 4294901760
    %v2908 = vsub.f32 %v1117, %v2907
    %2909 = vmatpush1.msra.mxu0 %v2908
    %2910 = vmatprep.subr.mxu0 0.0
    %v2911 = vand.u32 %v1118, 4294901760
    %v2912 = vsub.f32 %v1118, %v2911
    %2913 = vmatpush1.msra.mxu0 %v2912
    %2914 = vmatprep.subr.mxu0 0.0
    %2915 = vmatpush1.msra.mxu0 0.0
    %2916 = vmatprep.subr.mxu0 0.0
    %2917 = vmatpush1.msra.mxu0 0.0
    %2918 = vmatprep.subr.mxu0 0.0
    %2919 = vmatpush1.msra.mxu0 0.0
    %2920 = vmatprep.subr.mxu0 0.0
    %2921 = vmatpush1.msra.mxu0 0.0
    %2922 = vmatprep.subr.mxu0 0.0
    %2923 = vmatpush1.msra.mxu0 0.0
    %2924 = vmatprep.subr.mxu0 0.0
    %2925 = vmatpush1.msra.mxu0 0.0
    %2926 = vmatprep.subr.mxu0 0.0
    %2927 = vmatpush1.msra.mxu0 0.0
    %2928 = vmatprep.subr.mxu0 0.0
    %2929 = vmatpush1.msra.mxu0 0.0
    %2930 = vmatprep.subr.mxu0 0.0
    %2931 = vmatpush1.msra.mxu0 0.0
    %2932 = vmatprep.subr.mxu0 0.0
    %2933 = vmatpush1.msra.mxu0 0.0
    %2934 = vmatprep.subr.mxu0 0.0
    %2935 = vmatpush1.msra.mxu0 0.0
    %2936 = vmatprep.subr.mxu0 0.0
    %2937 = vmatpush1.msra.mxu0 0.0
    %2938 = vmatprep.subr.mxu0 0.0
    %2939 = vmatpush1.msra.mxu0 0.0
    %2940 = vmatprep.subr.mxu0 0.0
    %2941 = vmatpush1.msra.mxu0 0.0
    %2942 = vmatprep.subr.mxu0 0.0
    %2943 = vmatpush1.msra.mxu0 0.0
    %2944 = vmatprep.subr.mxu0 0.0
    %2945 = vmatpush1.msra.mxu0 0.0
    %2946 = vmatprep.subr.mxu0 0.0
    %2947 = vmatpush1.msra.mxu0 0.0
    %2948 = vmatprep.subr.mxu0 0.0
    %2949 = vmatpush1.msra.mxu0 0.0
    %2950 = vmatprep.subr.mxu0 0.0
    %2951 = vmatpush1.msra.mxu0 0.0
    %2952 = vmatprep.subr.mxu0 0.0
    %2953 = vmatpush1.msra.mxu0 0.0
    %2954 = vmatprep.subr.mxu0 0.0
    %2955 = vmatpush1.msra.mxu0 0.0
    %2956 = vmatprep.subr.mxu0 0.0
    %2957 = vmatpush1.msra.mxu0 0.0
    %2958 = vmatprep.subr.mxu0 0.0
    %2959 = vmatpush1.msra.mxu0 0.0
    %2960 = vmatprep.subr.mxu0 0.0
    %2961 = vmatpush1.msra.mxu0 0.0
    %2962 = vmatprep.subr.mxu0 0.0
    %2963 = vmatpush1.msra.mxu0 0.0
    %2964 = vmatprep.subr.mxu0 0.0
    %2965 = vmatpush1.msra.mxu0 0.0
    %2966 = vmatprep.subr.mxu0 0.0
    %2967 = vmatpush1.msra.mxu0 0.0
    %2968 = vmatprep.subr.mxu0 0.0
    %2969 = vmatpush1.msra.mxu0 0.0
    %2970 = vmatprep.mubr.f32.mxu0 0.0
    %v2971 = vand.u32 %v2726, 4294901760
    %v2972 = vsub.f32 %v2726, %v2971
    %2973 = vmatmul.mubr.f32.gmra.mrb[0].mxu0 %v2972
    %v2974 = vpop.f32.mrb[0].mxu0
    %v2975 = vadd.f32 %v2895, %v2974
    %v2976 = vpop.f32.mrb[0].mxu0
    %2977 = vdwg.mxu0
    %2978 = vmatprep.subr.mxu0 0.0
    %v2979 = vand.u32 %v1115, 4294901760
    %2980 = vmatpush1.msra.mxu0 %v2979
    %2981 = vmatprep.subr.mxu0 0.0
    %v2982 = vand.u32 %v1116, 4294901760
    %2983 = vmatpush1.msra.mxu0 %v2982
    %2984 = vmatprep.subr.mxu0 0.0
    %v2985 = vand.u32 %v1117, 4294901760
    %2986 = vmatpush1.msra.mxu0 %v2985
    %2987 = vmatprep.subr.mxu0 0.0
    %v2988 = vand.u32 %v1118, 4294901760
    %2989 = vmatpush1.msra.mxu0 %v2988
    %2990 = vmatprep.subr.mxu0 0.0
    %2991 = vmatpush1.msra.mxu0 0.0
    %2992 = vmatprep.subr.mxu0 0.0
    %2993 = vmatpush1.msra.mxu0 0.0
    %2994 = vmatprep.subr.mxu0 0.0
    %2995 = vmatpush1.msra.mxu0 0.0
    %2996 = vmatprep.subr.mxu0 0.0
    %2997 = vmatpush1.msra.mxu0 0.0
    %2998 = vmatprep.subr.mxu0 0.0
    %2999 = vmatpush1.msra.mxu0 0.0
    %3000 = vmatprep.subr.mxu0 0.0
    %3001 = vmatpush1.msra.mxu0 0.0
    %3002 = vmatprep.subr.mxu0 0.0
    %3003 = vmatpush1.msra.mxu0 0.0
    %3004 = vmatprep.subr.mxu0 0.0
    %3005 = vmatpush1.msra.mxu0 0.0
    %3006 = vmatprep.subr.mxu0 0.0
    %3007 = vmatpush1.msra.mxu0 0.0
    %3008 = vmatprep.subr.mxu0 0.0
    %3009 = vmatpush1.msra.mxu0 0.0
    %3010 = vmatprep.subr.mxu0 0.0
    %3011 = vmatpush1.msra.mxu0 0.0
    %3012 = vmatprep.subr.mxu0 0.0
    %3013 = vmatpush1.msra.mxu0 0.0
    %3014 = vmatprep.subr.mxu0 0.0
    %3015 = vmatpush1.msra.mxu0 0.0
    %3016 = vmatprep.subr.mxu0 0.0
    %3017 = vmatpush1.msra.mxu0 0.0
    %3018 = vmatprep.subr.mxu0 0.0
    %3019 = vmatpush1.msra.mxu0 0.0
    %3020 = vmatprep.subr.mxu0 0.0
    %3021 = vmatpush1.msra.mxu0 0.0
    %3022 = vmatprep.subr.mxu0 0.0
    %3023 = vmatpush1.msra.mxu0 0.0
    %3024 = vmatprep.subr.mxu0 0.0
    %3025 = vmatpush1.msra.mxu0 0.0
    %3026 = vmatprep.subr.mxu0 0.0
    %3027 = vmatpush1.msra.mxu0 0.0
    %3028 = vmatprep.subr.mxu0 0.0
    %3029 = vmatpush1.msra.mxu0 0.0
    %3030 = vmatprep.subr.mxu0 0.0
    %3031 = vmatpush1.msra.mxu0 0.0
    %3032 = vmatprep.subr.mxu0 0.0
    %3033 = vmatpush1.msra.mxu0 0.0
    %3034 = vmatprep.subr.mxu0 0.0
    %3035 = vmatpush1.msra.mxu0 0.0
    %3036 = vmatprep.subr.mxu0 0.0
    %3037 = vmatpush1.msra.mxu0 0.0
    %3038 = vmatprep.subr.mxu0 0.0
    %3039 = vmatpush1.msra.mxu0 0.0
    %3040 = vmatprep.subr.mxu0 0.0
    %3041 = vmatpush1.msra.mxu0 0.0
    %3042 = vmatprep.subr.mxu0 0.0
    %3043 = vmatpush1.msra.mxu0 0.0
    %3044 = vmatprep.subr.mxu0 0.0
    %3045 = vmatpush1.msra.mxu0 0.0
    %3046 = vmatprep.mubr.f32.mxu0 0.0
    %v3047 = vand.u32 %v2726, 4294901760
    %v3048 = vsub.f32 %v2726, %v3047
    %v3049 = vand.u32 %v3048, 4294901760
    %3050 = vmatmul.mubr.f32.gmra.mrb[0].mxu0 %v3049
    %v3051 = vpop.f32.mrb[0].mxu0
    %v3052 = vadd.f32 %v2975, %v3051
    %v3053 = vpop.f32.mrb[0].mxu0
    %3054 = vdwg.mxu0
    %3055 = vmatprep.subr.mxu0 0.0
    %v3056 = vand.u32 %v1115, 4294901760
    %v3057 = vsub.f32 %v1115, %v3056
    %v3058 = vand.u32 %v3057, 4294901760
    %3059 = vmatpush1.msra.mxu0 %v3058
    %3060 = vmatprep.subr.mxu0 0.0
    %v3061 = vand.u32 %v1116, 4294901760
    %v3062 = vsub.f32 %v1116, %v3061
    %v3063 = vand.u32 %v3062, 4294901760
    %3064 = vmatpush1.msra.mxu0 %v3063
    %3065 = vmatprep.subr.mxu0 0.0
    %v3066 = vand.u32 %v1117, 4294901760
    %v3067 = vsub.f32 %v1117, %v3066
    %v3068 = vand.u32 %v3067, 4294901760
    %3069 = vmatpush1.msra.mxu0 %v3068
    %3070 = vmatprep.subr.mxu0 0.0
    %v3071 = vand.u32 %v1118, 4294901760
    %v3072 = vsub.f32 %v1118, %v3071
    %v3073 = vand.u32 %v3072, 4294901760
    %3074 = vmatpush1.msra.mxu0 %v3073
    %3075 = vmatprep.subr.mxu0 0.0
    %3076 = vmatpush1.msra.mxu0 0.0
    %3077 = vmatprep.subr.mxu0 0.0
    %3078 = vmatpush1.msra.mxu0 0.0
    %3079 = vmatprep.subr.mxu0 0.0
    %3080 = vmatpush1.msra.mxu0 0.0
    %3081 = vmatprep.subr.mxu0 0.0
    %3082 = vmatpush1.msra.mxu0 0.0
    %3083 = vmatprep.subr.mxu0 0.0
    %3084 = vmatpush1.msra.mxu0 0.0
    %3085 = vmatprep.subr.mxu0 0.0
    %3086 = vmatpush1.msra.mxu0 0.0
    %3087 = vmatprep.subr.mxu0 0.0
    %3088 = vmatpush1.msra.mxu0 0.0
    %3089 = vmatprep.subr.mxu0 0.0
    %3090 = vmatpush1.msra.mxu0 0.0
    %3091 = vmatprep.subr.mxu0 0.0
    %3092 = vmatpush1.msra.mxu0 0.0
    %3093 = vmatprep.subr.mxu0 0.0
    %3094 = vmatpush1.msra.mxu0 0.0
    %3095 = vmatprep.subr.mxu0 0.0
    %3096 = vmatpush1.msra.mxu0 0.0
    %3097 = vmatprep.subr.mxu0 0.0
    %3098 = vmatpush1.msra.mxu0 0.0
    %3099 = vmatprep.subr.mxu0 0.0
    %3100 = vmatpush1.msra.mxu0 0.0
    %3101 = vmatprep.subr.mxu0 0.0
    %3102 = vmatpush1.msra.mxu0 0.0
    %3103 = vmatprep.subr.mxu0 0.0
    %3104 = vmatpush1.msra.mxu0 0.0
    %3105 = vmatprep.subr.mxu0 0.0
    %3106 = vmatpush1.msra.mxu0 0.0
    %3107 = vmatprep.subr.mxu0 0.0
    %3108 = vmatpush1.msra.mxu0 0.0
    %3109 = vmatprep.subr.mxu0 0.0
    %3110 = vmatpush1.msra.mxu0 0.0
    %3111 = vmatprep.subr.mxu0 0.0
    %3112 = vmatpush1.msra.mxu0 0.0
    %3113 = vmatprep.subr.mxu0 0.0
    %3114 = vmatpush1.msra.mxu0 0.0
    %3115 = vmatprep.subr.mxu0 0.0
    %3116 = vmatpush1.msra.mxu0 0.0
    %3117 = vmatprep.subr.mxu0 0.0
    %3118 = vmatpush1.msra.mxu0 0.0
    %3119 = vmatprep.subr.mxu0 0.0
    %3120 = vmatpush1.msra.mxu0 0.0
    %3121 = vmatprep.subr.mxu0 0.0
    %3122 = vmatpush1.msra.mxu0 0.0
    %3123 = vmatprep.subr.mxu0 0.0
    %3124 = vmatpush1.msra.mxu0 0.0
    %3125 = vmatprep.subr.mxu0 0.0
    %3126 = vmatpush1.msra.mxu0 0.0
    %3127 = vmatprep.subr.mxu0 0.0
    %3128 = vmatpush1.msra.mxu0 0.0
    %3129 = vmatprep.subr.mxu0 0.0
    %3130 = vmatpush1.msra.mxu0 0.0
    %3131 = vmatprep.mubr.f32.mxu0 0.0
    %v3132 = vand.u32 %v2726, 4294901760
    %3133 = vmatmul.mubr.f32.gmra.mrb[0].mxu0 %v3132
    %v3134 = vpop.f32.mrb[0].mxu0
    %v3135 = vadd.f32 %v3052, %v3134
    %v3136 = vpop.f32.mrb[0].mxu0
    %3137 = vdwg.mxu0
    %3138 = vmatprep.subr.mxu0 0.0
    %v3139 = vand.u32 %v1115, 4294901760
    %3140 = vmatpush1.msra.mxu0 %v3139
    %3141 = vmatprep.subr.mxu0 0.0
    %v3142 = vand.u32 %v1116, 4294901760
    %3143 = vmatpush1.msra.mxu0 %v3142
    %3144 = vmatprep.subr.mxu0 0.0
    %v3145 = vand.u32 %v1117, 4294901760
    %3146 = vmatpush1.msra.mxu0 %v3145
    %3147 = vmatprep.subr.mxu0 0.0
    %v3148 = vand.u32 %v1118, 4294901760
    %3149 = vmatpush1.msra.mxu0 %v3148
    %3150 = vmatprep.subr.mxu0 0.0
    %3151 = vmatpush1.msra.mxu0 0.0
    %3152 = vmatprep.subr.mxu0 0.0
    %3153 = vmatpush1.msra.mxu0 0.0
    %3154 = vmatprep.subr.mxu0 0.0
    %3155 = vmatpush1.msra.mxu0 0.0
    %3156 = vmatprep.subr.mxu0 0.0
    %3157 = vmatpush1.msra.mxu0 0.0
    %3158 = vmatprep.subr.mxu0 0.0
    %3159 = vmatpush1.msra.mxu0 0.0
    %3160 = vmatprep.subr.mxu0 0.0
    %3161 = vmatpush1.msra.mxu0 0.0
    %3162 = vmatprep.subr.mxu0 0.0
    %3163 = vmatpush1.msra.mxu0 0.0
    %3164 = vmatprep.subr.mxu0 0.0
    %3165 = vmatpush1.msra.mxu0 0.0
    %3166 = vmatprep.subr.mxu0 0.0
    %3167 = vmatpush1.msra.mxu0 0.0
    %3168 = vmatprep.subr.mxu0 0.0
    %3169 = vmatpush1.msra.mxu0 0.0
    %3170 = vmatprep.subr.mxu0 0.0
    %3171 = vmatpush1.msra.mxu0 0.0
    %3172 = vmatprep.subr.mxu0 0.0
    %3173 = vmatpush1.msra.mxu0 0.0
    %3174 = vmatprep.subr.mxu0 0.0
    %3175 = vmatpush1.msra.mxu0 0.0
    %3176 = vmatprep.subr.mxu0 0.0
    %3177 = vmatpush1.msra.mxu0 0.0
    %3178 = vmatprep.subr.mxu0 0.0
    %3179 = vmatpush1.msra.mxu0 0.0
    %3180 = vmatprep.subr.mxu0 0.0
    %3181 = vmatpush1.msra.mxu0 0.0
    %3182 = vmatprep.subr.mxu0 0.0
    %3183 = vmatpush1.msra.mxu0 0.0
    %3184 = vmatprep.subr.mxu0 0.0
    %3185 = vmatpush1.msra.mxu0 0.0
    %3186 = vmatprep.subr.mxu0 0.0
    %3187 = vmatpush1.msra.mxu0 0.0
    %3188 = vmatprep.subr.mxu0 0.0
    %3189 = vmatpush1.msra.mxu0 0.0
    %3190 = vmatprep.subr.mxu0 0.0
    %3191 = vmatpush1.msra.mxu0 0.0
    %3192 = vmatprep.subr.mxu0 0.0
    %3193 = vmatpush1.msra.mxu0 0.0
    %3194 = vmatprep.subr.mxu0 0.0
    %3195 = vmatpush1.msra.mxu0 0.0
    %3196 = vmatprep.subr.mxu0 0.0
    %3197 = vmatpush1.msra.mxu0 0.0
    %3198 = vmatprep.subr.mxu0 0.0
    %3199 = vmatpush1.msra.mxu0 0.0
    %3200 = vmatprep.subr.mxu0 0.0
    %3201 = vmatpush1.msra.mxu0 0.0
    %3202 = vmatprep.subr.mxu0 0.0
    %3203 = vmatpush1.msra.mxu0 0.0
    %3204 = vmatprep.subr.mxu0 0.0
    %3205 = vmatpush1.msra.mxu0 0.0
    %3206 = vmatprep.mubr.f32.mxu0 0.0
    %v3207 = vand.u32 %v2726, 4294901760
    %3208 = vmatmul.mubr.f32.gmra.mrb[0].mxu0 %v3207
    %v3209 = vpop.f32.mrb[0].mxu0
    %v3210 = vadd.f32 %v3135, %v3209
    %v3211 = vpop.f32.mrb[0].mxu0
    %3212 = vdwg.mxu0
    %v3214 = vrot.slane %v3210, 5
    %v3215 = vrot.slane %v3210, 6
    %v3218 = vadd.f32 %v1113, %v3214
    %v3219 = vadd.f32 %v1114, %v3215
    %v3220 = vmul.f32 %v3218, 0.5
    %v3221 = vmul.f32 %v3219, 0.5
    %v3224 = vrot.slane %v3218, 3
    %v3225 = vrot.slane %v3219, 2
    %v3226 = vsel %vm1626, %v3225, %v3224
    %v3230 = vrot.slane %v3220, 3
    %v3231 = vrot.slane %v3221, 2
    %v3232 = vsel %vm1626, %v3231, %v3230
    %v3234 = vsel %vm1123, %v3226, %v3232
    %v3235 = vtanh.pop %v3234
    %v3236 = vadd.f32 %v3235, 1.0
    %v3237 = vmul.f32 %v3236, 0.5
    %v3238 = vsel %vm1123, %v3235, %v3237
    %v3239 = vmul.f32 %v3238, %v2716
    %3241 = vrot.lane.b32.xlu0 %v3238, 64
    %v3242 = vpop.permute.xlu0 %3241
    %v3244 = vmul.f32 %v3238, %v3242
    %3246 = vrot.lane.b32.xlu0 %v3244, 32
    %v3247 = vpop.permute.xlu0 %3246
    %v3249 = vadd.f32 %v3239, %v3247
    %v3250 = vtanh.pop %v3249
    %3252 = vrot.lane.b32.xlu0 %v3250, 64
    %v3253 = vpop.permute.xlu0 %3252
    %v3255 = vmul.f32 %v3238, %v3253
    %3257 = vrot.lane.b32.xlu0 %v3255, 32
    %v3258 = vpop.permute.xlu0 %3257
    %v3259 = vsel %vm1126, %v3258, 0
    %3261 = vmatprep.subr.mxu0 0.0
    %v3262 = vand.u32 %v1115, 4294901760
    %3263 = vmatpush1.msra.mxu0 %v3262
    %3264 = vmatprep.subr.mxu0 0.0
    %v3265 = vand.u32 %v1116, 4294901760
    %3266 = vmatpush1.msra.mxu0 %v3265
    %3267 = vmatprep.subr.mxu0 0.0
    %v3268 = vand.u32 %v1117, 4294901760
    %3269 = vmatpush1.msra.mxu0 %v3268
    %3270 = vmatprep.subr.mxu0 0.0
    %v3271 = vand.u32 %v1118, 4294901760
    %3272 = vmatpush1.msra.mxu0 %v3271
    %3273 = vmatprep.subr.mxu0 0.0
    %3274 = vmatpush1.msra.mxu0 0.0
    %3275 = vmatprep.subr.mxu0 0.0
    %3276 = vmatpush1.msra.mxu0 0.0
    %3277 = vmatprep.subr.mxu0 0.0
    %3278 = vmatpush1.msra.mxu0 0.0
    %3279 = vmatprep.subr.mxu0 0.0
    %3280 = vmatpush1.msra.mxu0 0.0
    %3281 = vmatprep.subr.mxu0 0.0
    %3282 = vmatpush1.msra.mxu0 0.0
    %3283 = vmatprep.subr.mxu0 0.0
    %3284 = vmatpush1.msra.mxu0 0.0
    %3285 = vmatprep.subr.mxu0 0.0
    %3286 = vmatpush1.msra.mxu0 0.0
    %3287 = vmatprep.subr.mxu0 0.0
    %3288 = vmatpush1.msra.mxu0 0.0
    %3289 = vmatprep.subr.mxu0 0.0
    %3290 = vmatpush1.msra.mxu0 0.0
    %3291 = vmatprep.subr.mxu0 0.0
    %3292 = vmatpush1.msra.mxu0 0.0
    %3293 = vmatprep.subr.mxu0 0.0
    %3294 = vmatpush1.msra.mxu0 0.0
    %3295 = vmatprep.subr.mxu0 0.0
    %3296 = vmatpush1.msra.mxu0 0.0
    %3297 = vmatprep.subr.mxu0 0.0
    %3298 = vmatpush1.msra.mxu0 0.0
    %3299 = vmatprep.subr.mxu0 0.0
    %3300 = vmatpush1.msra.mxu0 0.0
    %3301 = vmatprep.subr.mxu0 0.0
    %3302 = vmatpush1.msra.mxu0 0.0
    %3303 = vmatprep.subr.mxu0 0.0
    %3304 = vmatpush1.msra.mxu0 0.0
    %3305 = vmatprep.subr.mxu0 0.0
    %3306 = vmatpush1.msra.mxu0 0.0
    %3307 = vmatprep.subr.mxu0 0.0
    %3308 = vmatpush1.msra.mxu0 0.0
    %3309 = vmatprep.subr.mxu0 0.0
    %3310 = vmatpush1.msra.mxu0 0.0
    %3311 = vmatprep.subr.mxu0 0.0
    %3312 = vmatpush1.msra.mxu0 0.0
    %3313 = vmatprep.subr.mxu0 0.0
    %3314 = vmatpush1.msra.mxu0 0.0
    %3315 = vmatprep.subr.mxu0 0.0
    %3316 = vmatpush1.msra.mxu0 0.0
    %3317 = vmatprep.subr.mxu0 0.0
    %3318 = vmatpush1.msra.mxu0 0.0
    %3319 = vmatprep.subr.mxu0 0.0
    %3320 = vmatpush1.msra.mxu0 0.0
    %3321 = vmatprep.subr.mxu0 0.0
    %3322 = vmatpush1.msra.mxu0 0.0
    %3323 = vmatprep.subr.mxu0 0.0
    %3324 = vmatpush1.msra.mxu0 0.0
    %3325 = vmatprep.subr.mxu0 0.0
    %3326 = vmatpush1.msra.mxu0 0.0
    %3327 = vmatprep.subr.mxu0 0.0
    %3328 = vmatpush1.msra.mxu0 0.0
    %3329 = vmatprep.mubr.f32.mxu0 0.0
    %v3330 = vand.u32 %v3259, 4294901760
    %v3331 = vsub.f32 %v3259, %v3330
    %v3332 = vand.u32 %v3331, 4294901760
    %v3333 = vsub.f32 %v3331, %v3332
    %v3334 = vand.u32 %v3333, 4294901760
    %3335 = vmatmul.mubr.f32.gmra.mrb[0].mxu0 %v3334
    %v3336 = vpop.f32.mrb[0].mxu0
    %v3337 = vadd.f32 0.0, %v3336
    %v3338 = vpop.f32.mrb[0].mxu0
    %3339 = vdwg.mxu0
    %3340 = vmatprep.subr.mxu0 0.0
    %v3341 = vand.u32 %v1115, 4294901760
    %v3342 = vsub.f32 %v1115, %v3341
    %v3343 = vand.u32 %v3342, 4294901760
    %v3344 = vsub.f32 %v3342, %v3343
    %v3345 = vand.u32 %v3344, 4294901760
    %3346 = vmatpush1.msra.mxu0 %v3345
    %3347 = vmatprep.subr.mxu0 0.0
    %v3348 = vand.u32 %v1116, 4294901760
    %v3349 = vsub.f32 %v1116, %v3348
    %v3350 = vand.u32 %v3349, 4294901760
    %v3351 = vsub.f32 %v3349, %v3350
    %v3352 = vand.u32 %v3351, 4294901760
    %3353 = vmatpush1.msra.mxu0 %v3352
    %3354 = vmatprep.subr.mxu0 0.0
    %v3355 = vand.u32 %v1117, 4294901760
    %v3356 = vsub.f32 %v1117, %v3355
    %v3357 = vand.u32 %v3356, 4294901760
    %v3358 = vsub.f32 %v3356, %v3357
    %v3359 = vand.u32 %v3358, 4294901760
    %3360 = vmatpush1.msra.mxu0 %v3359
    %3361 = vmatprep.subr.mxu0 0.0
    %v3362 = vand.u32 %v1118, 4294901760
    %v3363 = vsub.f32 %v1118, %v3362
    %v3364 = vand.u32 %v3363, 4294901760
    %v3365 = vsub.f32 %v3363, %v3364
    %v3366 = vand.u32 %v3365, 4294901760
    %3367 = vmatpush1.msra.mxu0 %v3366
    %3368 = vmatprep.subr.mxu0 0.0
    %3369 = vmatpush1.msra.mxu0 0.0
    %3370 = vmatprep.subr.mxu0 0.0
    %3371 = vmatpush1.msra.mxu0 0.0
    %3372 = vmatprep.subr.mxu0 0.0
    %3373 = vmatpush1.msra.mxu0 0.0
    %3374 = vmatprep.subr.mxu0 0.0
    %3375 = vmatpush1.msra.mxu0 0.0
    %3376 = vmatprep.subr.mxu0 0.0
    %3377 = vmatpush1.msra.mxu0 0.0
    %3378 = vmatprep.subr.mxu0 0.0
    %3379 = vmatpush1.msra.mxu0 0.0
    %3380 = vmatprep.subr.mxu0 0.0
    %3381 = vmatpush1.msra.mxu0 0.0
    %3382 = vmatprep.subr.mxu0 0.0
    %3383 = vmatpush1.msra.mxu0 0.0
    %3384 = vmatprep.subr.mxu0 0.0
    %3385 = vmatpush1.msra.mxu0 0.0
    %3386 = vmatprep.subr.mxu0 0.0
    %3387 = vmatpush1.msra.mxu0 0.0
    %3388 = vmatprep.subr.mxu0 0.0
    %3389 = vmatpush1.msra.mxu0 0.0
    %3390 = vmatprep.subr.mxu0 0.0
    %3391 = vmatpush1.msra.mxu0 0.0
    %3392 = vmatprep.subr.mxu0 0.0
    %3393 = vmatpush1.msra.mxu0 0.0
    %3394 = vmatprep.subr.mxu0 0.0
    %3395 = vmatpush1.msra.mxu0 0.0
    %3396 = vmatprep.subr.mxu0 0.0
    %3397 = vmatpush1.msra.mxu0 0.0
    %3398 = vmatprep.subr.mxu0 0.0
    %3399 = vmatpush1.msra.mxu0 0.0
    %3400 = vmatprep.subr.mxu0 0.0
    %3401 = vmatpush1.msra.mxu0 0.0
    %3402 = vmatprep.subr.mxu0 0.0
    %3403 = vmatpush1.msra.mxu0 0.0
    %3404 = vmatprep.subr.mxu0 0.0
    %3405 = vmatpush1.msra.mxu0 0.0
    %3406 = vmatprep.subr.mxu0 0.0
    %3407 = vmatpush1.msra.mxu0 0.0
    %3408 = vmatprep.subr.mxu0 0.0
    %3409 = vmatpush1.msra.mxu0 0.0
    %3410 = vmatprep.subr.mxu0 0.0
    %3411 = vmatpush1.msra.mxu0 0.0
    %3412 = vmatprep.subr.mxu0 0.0
    %3413 = vmatpush1.msra.mxu0 0.0
    %3414 = vmatprep.subr.mxu0 0.0
    %3415 = vmatpush1.msra.mxu0 0.0
    %3416 = vmatprep.subr.mxu0 0.0
    %3417 = vmatpush1.msra.mxu0 0.0
    %3418 = vmatprep.subr.mxu0 0.0
    %3419 = vmatpush1.msra.mxu0 0.0
    %3420 = vmatprep.subr.mxu0 0.0
    %3421 = vmatpush1.msra.mxu0 0.0
    %3422 = vmatprep.subr.mxu0 0.0
    %3423 = vmatpush1.msra.mxu0 0.0
    %3424 = vmatprep.mubr.f32.mxu0 0.0
    %v3425 = vand.u32 %v3259, 4294901760
    %3426 = vmatmul.mubr.f32.gmra.mrb[0].mxu0 %v3425
    %v3427 = vpop.f32.mrb[0].mxu0
    %v3428 = vadd.f32 %v3337, %v3427
    %v3429 = vpop.f32.mrb[0].mxu0
    %3430 = vdwg.mxu0
    %3431 = vmatprep.subr.mxu0 0.0
    %v3432 = vand.u32 %v1115, 4294901760
    %v3433 = vsub.f32 %v1115, %v3432
    %3434 = vmatpush1.msra.mxu0 %v3433
    %3435 = vmatprep.subr.mxu0 0.0
    %v3436 = vand.u32 %v1116, 4294901760
    %v3437 = vsub.f32 %v1116, %v3436
    %3438 = vmatpush1.msra.mxu0 %v3437
    %3439 = vmatprep.subr.mxu0 0.0
    %v3440 = vand.u32 %v1117, 4294901760
    %v3441 = vsub.f32 %v1117, %v3440
    %3442 = vmatpush1.msra.mxu0 %v3441
    %3443 = vmatprep.subr.mxu0 0.0
    %v3444 = vand.u32 %v1118, 4294901760
    %v3445 = vsub.f32 %v1118, %v3444
    %3446 = vmatpush1.msra.mxu0 %v3445
    %3447 = vmatprep.subr.mxu0 0.0
    %3448 = vmatpush1.msra.mxu0 0.0
    %3449 = vmatprep.subr.mxu0 0.0
    %3450 = vmatpush1.msra.mxu0 0.0
    %3451 = vmatprep.subr.mxu0 0.0
    %3452 = vmatpush1.msra.mxu0 0.0
    %3453 = vmatprep.subr.mxu0 0.0
    %3454 = vmatpush1.msra.mxu0 0.0
    %3455 = vmatprep.subr.mxu0 0.0
    %3456 = vmatpush1.msra.mxu0 0.0
    %3457 = vmatprep.subr.mxu0 0.0
    %3458 = vmatpush1.msra.mxu0 0.0
    %3459 = vmatprep.subr.mxu0 0.0
    %3460 = vmatpush1.msra.mxu0 0.0
    %3461 = vmatprep.subr.mxu0 0.0
    %3462 = vmatpush1.msra.mxu0 0.0
    %3463 = vmatprep.subr.mxu0 0.0
    %3464 = vmatpush1.msra.mxu0 0.0
    %3465 = vmatprep.subr.mxu0 0.0
    %3466 = vmatpush1.msra.mxu0 0.0
    %3467 = vmatprep.subr.mxu0 0.0
    %3468 = vmatpush1.msra.mxu0 0.0
    %3469 = vmatprep.subr.mxu0 0.0
    %3470 = vmatpush1.msra.mxu0 0.0
    %3471 = vmatprep.subr.mxu0 0.0
    %3472 = vmatpush1.msra.mxu0 0.0
    %3473 = vmatprep.subr.mxu0 0.0
    %3474 = vmatpush1.msra.mxu0 0.0
    %3475 = vmatprep.subr.mxu0 0.0
    %3476 = vmatpush1.msra.mxu0 0.0
    %3477 = vmatprep.subr.mxu0 0.0
    %3478 = vmatpush1.msra.mxu0 0.0
    %3479 = vmatprep.subr.mxu0 0.0
    %3480 = vmatpush1.msra.mxu0 0.0
    %3481 = vmatprep.subr.mxu0 0.0
    %3482 = vmatpush1.msra.mxu0 0.0
    %3483 = vmatprep.subr.mxu0 0.0
    %3484 = vmatpush1.msra.mxu0 0.0
    %3485 = vmatprep.subr.mxu0 0.0
    %3486 = vmatpush1.msra.mxu0 0.0
    %3487 = vmatprep.subr.mxu0 0.0
    %3488 = vmatpush1.msra.mxu0 0.0
    %3489 = vmatprep.subr.mxu0 0.0
    %3490 = vmatpush1.msra.mxu0 0.0
    %3491 = vmatprep.subr.mxu0 0.0
    %3492 = vmatpush1.msra.mxu0 0.0
    %3493 = vmatprep.subr.mxu0 0.0
    %3494 = vmatpush1.msra.mxu0 0.0
    %3495 = vmatprep.subr.mxu0 0.0
    %3496 = vmatpush1.msra.mxu0 0.0
    %3497 = vmatprep.subr.mxu0 0.0
    %3498 = vmatpush1.msra.mxu0 0.0
    %3499 = vmatprep.subr.mxu0 0.0
    %3500 = vmatpush1.msra.mxu0 0.0
    %3501 = vmatprep.subr.mxu0 0.0
    %3502 = vmatpush1.msra.mxu0 0.0
    %3503 = vmatprep.mubr.f32.mxu0 0.0
    %v3504 = vand.u32 %v3259, 4294901760
    %v3505 = vsub.f32 %v3259, %v3504
    %3506 = vmatmul.mubr.f32.gmra.mrb[0].mxu0 %v3505
    %v3507 = vpop.f32.mrb[0].mxu0
    %v3508 = vadd.f32 %v3428, %v3507
    %v3509 = vpop.f32.mrb[0].mxu0
    %3510 = vdwg.mxu0
    %3511 = vmatprep.subr.mxu0 0.0
    %v3512 = vand.u32 %v1115, 4294901760
    %3513 = vmatpush1.msra.mxu0 %v3512
    %3514 = vmatprep.subr.mxu0 0.0
    %v3515 = vand.u32 %v1116, 4294901760
    %3516 = vmatpush1.msra.mxu0 %v3515
    %3517 = vmatprep.subr.mxu0 0.0
    %v3518 = vand.u32 %v1117, 4294901760
    %3519 = vmatpush1.msra.mxu0 %v3518
    %3520 = vmatprep.subr.mxu0 0.0
    %v3521 = vand.u32 %v1118, 4294901760
    %3522 = vmatpush1.msra.mxu0 %v3521
    %3523 = vmatprep.subr.mxu0 0.0
    %3524 = vmatpush1.msra.mxu0 0.0
    %3525 = vmatprep.subr.mxu0 0.0
    %3526 = vmatpush1.msra.mxu0 0.0
    %3527 = vmatprep.subr.mxu0 0.0
    %3528 = vmatpush1.msra.mxu0 0.0
    %3529 = vmatprep.subr.mxu0 0.0
    %3530 = vmatpush1.msra.mxu0 0.0
    %3531 = vmatprep.subr.mxu0 0.0
    %3532 = vmatpush1.msra.mxu0 0.0
    %3533 = vmatprep.subr.mxu0 0.0
    %3534 = vmatpush1.msra.mxu0 0.0
    %3535 = vmatprep.subr.mxu0 0.0
    %3536 = vmatpush1.msra.mxu0 0.0
    %3537 = vmatprep.subr.mxu0 0.0
    %3538 = vmatpush1.msra.mxu0 0.0
    %3539 = vmatprep.subr.mxu0 0.0
    %3540 = vmatpush1.msra.mxu0 0.0
    %3541 = vmatprep.subr.mxu0 0.0
    %3542 = vmatpush1.msra.mxu0 0.0
    %3543 = vmatprep.subr.mxu0 0.0
    %3544 = vmatpush1.msra.mxu0 0.0
    %3545 = vmatprep.subr.mxu0 0.0
    %3546 = vmatpush1.msra.mxu0 0.0
    %3547 = vmatprep.subr.mxu0 0.0
    %3548 = vmatpush1.msra.mxu0 0.0
    %3549 = vmatprep.subr.mxu0 0.0
    %3550 = vmatpush1.msra.mxu0 0.0
    %3551 = vmatprep.subr.mxu0 0.0
    %3552 = vmatpush1.msra.mxu0 0.0
    %3553 = vmatprep.subr.mxu0 0.0
    %3554 = vmatpush1.msra.mxu0 0.0
    %3555 = vmatprep.subr.mxu0 0.0
    %3556 = vmatpush1.msra.mxu0 0.0
    %3557 = vmatprep.subr.mxu0 0.0
    %3558 = vmatpush1.msra.mxu0 0.0
    %3559 = vmatprep.subr.mxu0 0.0
    %3560 = vmatpush1.msra.mxu0 0.0
    %3561 = vmatprep.subr.mxu0 0.0
    %3562 = vmatpush1.msra.mxu0 0.0
    %3563 = vmatprep.subr.mxu0 0.0
    %3564 = vmatpush1.msra.mxu0 0.0
    %3565 = vmatprep.subr.mxu0 0.0
    %3566 = vmatpush1.msra.mxu0 0.0
    %3567 = vmatprep.subr.mxu0 0.0
    %3568 = vmatpush1.msra.mxu0 0.0
    %3569 = vmatprep.subr.mxu0 0.0
    %3570 = vmatpush1.msra.mxu0 0.0
    %3571 = vmatprep.subr.mxu0 0.0
    %3572 = vmatpush1.msra.mxu0 0.0
    %3573 = vmatprep.subr.mxu0 0.0
    %3574 = vmatpush1.msra.mxu0 0.0
    %3575 = vmatprep.subr.mxu0 0.0
    %3576 = vmatpush1.msra.mxu0 0.0
    %3577 = vmatprep.subr.mxu0 0.0
    %3578 = vmatpush1.msra.mxu0 0.0
    %3579 = vmatprep.mubr.f32.mxu0 0.0
    %v3580 = vand.u32 %v3259, 4294901760
    %v3581 = vsub.f32 %v3259, %v3580
    %v3582 = vand.u32 %v3581, 4294901760
    %3583 = vmatmul.mubr.f32.gmra.mrb[0].mxu0 %v3582
    %v3584 = vpop.f32.mrb[0].mxu0
    %v3585 = vadd.f32 %v3508, %v3584
    %v3586 = vpop.f32.mrb[0].mxu0
    %3587 = vdwg.mxu0
    %3588 = vmatprep.subr.mxu0 0.0
    %v3589 = vand.u32 %v1115, 4294901760
    %v3590 = vsub.f32 %v1115, %v3589
    %v3591 = vand.u32 %v3590, 4294901760
    %3592 = vmatpush1.msra.mxu0 %v3591
    %3593 = vmatprep.subr.mxu0 0.0
    %v3594 = vand.u32 %v1116, 4294901760
    %v3595 = vsub.f32 %v1116, %v3594
    %v3596 = vand.u32 %v3595, 4294901760
    %3597 = vmatpush1.msra.mxu0 %v3596
    %3598 = vmatprep.subr.mxu0 0.0
    %v3599 = vand.u32 %v1117, 4294901760
    %v3600 = vsub.f32 %v1117, %v3599
    %v3601 = vand.u32 %v3600, 4294901760
    %3602 = vmatpush1.msra.mxu0 %v3601
    %3603 = vmatprep.subr.mxu0 0.0
    %v3604 = vand.u32 %v1118, 4294901760
    %v3605 = vsub.f32 %v1118, %v3604
    %v3606 = vand.u32 %v3605, 4294901760
    %3607 = vmatpush1.msra.mxu0 %v3606
    %3608 = vmatprep.subr.mxu0 0.0
    %3609 = vmatpush1.msra.mxu0 0.0
    %3610 = vmatprep.subr.mxu0 0.0
    %3611 = vmatpush1.msra.mxu0 0.0
    %3612 = vmatprep.subr.mxu0 0.0
    %3613 = vmatpush1.msra.mxu0 0.0
    %3614 = vmatprep.subr.mxu0 0.0
    %3615 = vmatpush1.msra.mxu0 0.0
    %3616 = vmatprep.subr.mxu0 0.0
    %3617 = vmatpush1.msra.mxu0 0.0
    %3618 = vmatprep.subr.mxu0 0.0
    %3619 = vmatpush1.msra.mxu0 0.0
    %3620 = vmatprep.subr.mxu0 0.0
    %3621 = vmatpush1.msra.mxu0 0.0
    %3622 = vmatprep.subr.mxu0 0.0
    %3623 = vmatpush1.msra.mxu0 0.0
    %3624 = vmatprep.subr.mxu0 0.0
    %3625 = vmatpush1.msra.mxu0 0.0
    %3626 = vmatprep.subr.mxu0 0.0
    %3627 = vmatpush1.msra.mxu0 0.0
    %3628 = vmatprep.subr.mxu0 0.0
    %3629 = vmatpush1.msra.mxu0 0.0
    %3630 = vmatprep.subr.mxu0 0.0
    %3631 = vmatpush1.msra.mxu0 0.0
    %3632 = vmatprep.subr.mxu0 0.0
    %3633 = vmatpush1.msra.mxu0 0.0
    %3634 = vmatprep.subr.mxu0 0.0
    %3635 = vmatpush1.msra.mxu0 0.0
    %3636 = vmatprep.subr.mxu0 0.0
    %3637 = vmatpush1.msra.mxu0 0.0
    %3638 = vmatprep.subr.mxu0 0.0
    %3639 = vmatpush1.msra.mxu0 0.0
    %3640 = vmatprep.subr.mxu0 0.0
    %3641 = vmatpush1.msra.mxu0 0.0
    %3642 = vmatprep.subr.mxu0 0.0
    %3643 = vmatpush1.msra.mxu0 0.0
    %3644 = vmatprep.subr.mxu0 0.0
    %3645 = vmatpush1.msra.mxu0 0.0
    %3646 = vmatprep.subr.mxu0 0.0
    %3647 = vmatpush1.msra.mxu0 0.0
    %3648 = vmatprep.subr.mxu0 0.0
    %3649 = vmatpush1.msra.mxu0 0.0
    %3650 = vmatprep.subr.mxu0 0.0
    %3651 = vmatpush1.msra.mxu0 0.0
    %3652 = vmatprep.subr.mxu0 0.0
    %3653 = vmatpush1.msra.mxu0 0.0
    %3654 = vmatprep.subr.mxu0 0.0
    %3655 = vmatpush1.msra.mxu0 0.0
    %3656 = vmatprep.subr.mxu0 0.0
    %3657 = vmatpush1.msra.mxu0 0.0
    %3658 = vmatprep.subr.mxu0 0.0
    %3659 = vmatpush1.msra.mxu0 0.0
    %3660 = vmatprep.subr.mxu0 0.0
    %3661 = vmatpush1.msra.mxu0 0.0
    %3662 = vmatprep.subr.mxu0 0.0
    %3663 = vmatpush1.msra.mxu0 0.0
    %3664 = vmatprep.mubr.f32.mxu0 0.0
    %v3665 = vand.u32 %v3259, 4294901760
    %3666 = vmatmul.mubr.f32.gmra.mrb[0].mxu0 %v3665
    %v3667 = vpop.f32.mrb[0].mxu0
    %v3668 = vadd.f32 %v3585, %v3667
    %v3669 = vpop.f32.mrb[0].mxu0
    %3670 = vdwg.mxu0
    %3671 = vmatprep.subr.mxu0 0.0
    %v3672 = vand.u32 %v1115, 4294901760
    %3673 = vmatpush1.msra.mxu0 %v3672
    %3674 = vmatprep.subr.mxu0 0.0
    %v3675 = vand.u32 %v1116, 4294901760
    %3676 = vmatpush1.msra.mxu0 %v3675
    %3677 = vmatprep.subr.mxu0 0.0
    %v3678 = vand.u32 %v1117, 4294901760
    %3679 = vmatpush1.msra.mxu0 %v3678
    %3680 = vmatprep.subr.mxu0 0.0
    %v3681 = vand.u32 %v1118, 4294901760
    %3682 = vmatpush1.msra.mxu0 %v3681
    %3683 = vmatprep.subr.mxu0 0.0
    %3684 = vmatpush1.msra.mxu0 0.0
    %3685 = vmatprep.subr.mxu0 0.0
    %3686 = vmatpush1.msra.mxu0 0.0
    %3687 = vmatprep.subr.mxu0 0.0
    %3688 = vmatpush1.msra.mxu0 0.0
    %3689 = vmatprep.subr.mxu0 0.0
    %3690 = vmatpush1.msra.mxu0 0.0
    %3691 = vmatprep.subr.mxu0 0.0
    %3692 = vmatpush1.msra.mxu0 0.0
    %3693 = vmatprep.subr.mxu0 0.0
    %3694 = vmatpush1.msra.mxu0 0.0
    %3695 = vmatprep.subr.mxu0 0.0
    %3696 = vmatpush1.msra.mxu0 0.0
    %3697 = vmatprep.subr.mxu0 0.0
    %3698 = vmatpush1.msra.mxu0 0.0
    %3699 = vmatprep.subr.mxu0 0.0
    %3700 = vmatpush1.msra.mxu0 0.0
    %3701 = vmatprep.subr.mxu0 0.0
    %3702 = vmatpush1.msra.mxu0 0.0
    %3703 = vmatprep.subr.mxu0 0.0
    %3704 = vmatpush1.msra.mxu0 0.0
    %3705 = vmatprep.subr.mxu0 0.0
    %3706 = vmatpush1.msra.mxu0 0.0
    %3707 = vmatprep.subr.mxu0 0.0
    %3708 = vmatpush1.msra.mxu0 0.0
    %3709 = vmatprep.subr.mxu0 0.0
    %3710 = vmatpush1.msra.mxu0 0.0
    %3711 = vmatprep.subr.mxu0 0.0
    %3712 = vmatpush1.msra.mxu0 0.0
    %3713 = vmatprep.subr.mxu0 0.0
    %3714 = vmatpush1.msra.mxu0 0.0
    %3715 = vmatprep.subr.mxu0 0.0
    %3716 = vmatpush1.msra.mxu0 0.0
    %3717 = vmatprep.subr.mxu0 0.0
    %3718 = vmatpush1.msra.mxu0 0.0
    %3719 = vmatprep.subr.mxu0 0.0
    %3720 = vmatpush1.msra.mxu0 0.0
    %3721 = vmatprep.subr.mxu0 0.0
    %3722 = vmatpush1.msra.mxu0 0.0
    %3723 = vmatprep.subr.mxu0 0.0
    %3724 = vmatpush1.msra.mxu0 0.0
    %3725 = vmatprep.subr.mxu0 0.0
    %3726 = vmatpush1.msra.mxu0 0.0
    %3727 = vmatprep.subr.mxu0 0.0
    %3728 = vmatpush1.msra.mxu0 0.0
    %3729 = vmatprep.subr.mxu0 0.0
    %3730 = vmatpush1.msra.mxu0 0.0
    %3731 = vmatprep.subr.mxu0 0.0
    %3732 = vmatpush1.msra.mxu0 0.0
    %3733 = vmatprep.subr.mxu0 0.0
    %3734 = vmatpush1.msra.mxu0 0.0
    %3735 = vmatprep.subr.mxu0 0.0
    %3736 = vmatpush1.msra.mxu0 0.0
    %3737 = vmatprep.subr.mxu0 0.0
    %3738 = vmatpush1.msra.mxu0 0.0
    %3739 = vmatprep.mubr.f32.mxu0 0.0
    %v3740 = vand.u32 %v3259, 4294901760
    %3741 = vmatmul.mubr.f32.gmra.mrb[0].mxu0 %v3740
    %v3742 = vpop.f32.mrb[0].mxu0
    %v3743 = vadd.f32 %v3668, %v3742
    %v3744 = vpop.f32.mrb[0].mxu0
    %3745 = vdwg.mxu0
    %v3747 = vrot.slane %v3743, 4
    %v3748 = vrot.slane %v3743, 5
    %v3751 = vadd.f32 %v1113, %v3747
    %v3752 = vadd.f32 %v1114, %v3748
    %v3753 = vmul.f32 %v3751, 0.5
    %v3754 = vmul.f32 %v3752, 0.5
    %v3757 = vrot.slane %v3751, 4
    %v3758 = vrot.slane %v3752, 3
    %v3759 = vsel %vm1626, %v3758, %v3757
    %v3763 = vrot.slane %v3753, 4
    %v3764 = vrot.slane %v3754, 3
    %v3765 = vsel %vm1626, %v3764, %v3763
    %v3767 = vsel %vm1123, %v3759, %v3765
    %v3768 = vtanh.pop %v3767
    %v3769 = vadd.f32 %v3768, 1.0
    %v3770 = vmul.f32 %v3769, 0.5
    %v3771 = vsel %vm1123, %v3768, %v3770
    %v3772 = vmul.f32 %v3771, %v3249
    %3774 = vrot.lane.b32.xlu0 %v3771, 64
    %v3775 = vpop.permute.xlu0 %3774
    %v3777 = vmul.f32 %v3771, %v3775
    %3779 = vrot.lane.b32.xlu0 %v3777, 32
    %v3780 = vpop.permute.xlu0 %3779
    %v3782 = vadd.f32 %v3772, %v3780
    %v3783 = vtanh.pop %v3782
    %3785 = vrot.lane.b32.xlu0 %v3783, 64
    %v3786 = vpop.permute.xlu0 %3785
    %v3788 = vmul.f32 %v3771, %v3786
    %3790 = vrot.lane.b32.xlu0 %v3788, 32
    %v3791 = vpop.permute.xlu0 %3790
    %v3792 = vsel %vm1126, %v3791, 0
    %3794 = vmatprep.subr.mxu0 0.0
    %v3795 = vand.u32 %v1115, 4294901760
    %3796 = vmatpush1.msra.mxu0 %v3795
    %3797 = vmatprep.subr.mxu0 0.0
    %v3798 = vand.u32 %v1116, 4294901760
    %3799 = vmatpush1.msra.mxu0 %v3798
    %3800 = vmatprep.subr.mxu0 0.0
    %v3801 = vand.u32 %v1117, 4294901760
    %3802 = vmatpush1.msra.mxu0 %v3801
    %3803 = vmatprep.subr.mxu0 0.0
    %v3804 = vand.u32 %v1118, 4294901760
    %3805 = vmatpush1.msra.mxu0 %v3804
    %3806 = vmatprep.subr.mxu0 0.0
    %3807 = vmatpush1.msra.mxu0 0.0
    %3808 = vmatprep.subr.mxu0 0.0
    %3809 = vmatpush1.msra.mxu0 0.0
    %3810 = vmatprep.subr.mxu0 0.0
    %3811 = vmatpush1.msra.mxu0 0.0
    %3812 = vmatprep.subr.mxu0 0.0
    %3813 = vmatpush1.msra.mxu0 0.0
    %3814 = vmatprep.subr.mxu0 0.0
    %3815 = vmatpush1.msra.mxu0 0.0
    %3816 = vmatprep.subr.mxu0 0.0
    %3817 = vmatpush1.msra.mxu0 0.0
    %3818 = vmatprep.subr.mxu0 0.0
    %3819 = vmatpush1.msra.mxu0 0.0
    %3820 = vmatprep.subr.mxu0 0.0
    %3821 = vmatpush1.msra.mxu0 0.0
    %3822 = vmatprep.subr.mxu0 0.0
    %3823 = vmatpush1.msra.mxu0 0.0
    %3824 = vmatprep.subr.mxu0 0.0
    %3825 = vmatpush1.msra.mxu0 0.0
    %3826 = vmatprep.subr.mxu0 0.0
    %3827 = vmatpush1.msra.mxu0 0.0
    %3828 = vmatprep.subr.mxu0 0.0
    %3829 = vmatpush1.msra.mxu0 0.0
    %3830 = vmatprep.subr.mxu0 0.0
    %3831 = vmatpush1.msra.mxu0 0.0
    %3832 = vmatprep.subr.mxu0 0.0
    %3833 = vmatpush1.msra.mxu0 0.0
    %3834 = vmatprep.subr.mxu0 0.0
    %3835 = vmatpush1.msra.mxu0 0.0
    %3836 = vmatprep.subr.mxu0 0.0
    %3837 = vmatpush1.msra.mxu0 0.0
    %3838 = vmatprep.subr.mxu0 0.0
    %3839 = vmatpush1.msra.mxu0 0.0
    %3840 = vmatprep.subr.mxu0 0.0
    %3841 = vmatpush1.msra.mxu0 0.0
    %3842 = vmatprep.subr.mxu0 0.0
    %3843 = vmatpush1.msra.mxu0 0.0
    %3844 = vmatprep.subr.mxu0 0.0
    %3845 = vmatpush1.msra.mxu0 0.0
    %3846 = vmatprep.subr.mxu0 0.0
    %3847 = vmatpush1.msra.mxu0 0.0
    %3848 = vmatprep.subr.mxu0 0.0
    %3849 = vmatpush1.msra.mxu0 0.0
    %3850 = vmatprep.subr.mxu0 0.0
    %3851 = vmatpush1.msra.mxu0 0.0
    %3852 = vmatprep.subr.mxu0 0.0
    %3853 = vmatpush1.msra.mxu0 0.0
    %3854 = vmatprep.subr.mxu0 0.0
    %3855 = vmatpush1.msra.mxu0 0.0
    %3856 = vmatprep.subr.mxu0 0.0
    %3857 = vmatpush1.msra.mxu0 0.0
    %3858 = vmatprep.subr.mxu0 0.0
    %3859 = vmatpush1.msra.mxu0 0.0
    %3860 = vmatprep.subr.mxu0 0.0
    %3861 = vmatpush1.msra.mxu0 0.0
    %3862 = vmatprep.mubr.f32.mxu0 0.0
    %v3863 = vand.u32 %v3792, 4294901760
    %v3864 = vsub.f32 %v3792, %v3863
    %v3865 = vand.u32 %v3864, 4294901760
    %v3866 = vsub.f32 %v3864, %v3865
    %v3867 = vand.u32 %v3866, 4294901760
    %3868 = vmatmul.mubr.f32.gmra.mrb[0].mxu0 %v3867
    %v3869 = vpop.f32.mrb[0].mxu0
    %v3870 = vadd.f32 0.0, %v3869
    %v3871 = vpop.f32.mrb[0].mxu0
    %3872 = vdwg.mxu0
    %3873 = vmatprep.subr.mxu0 0.0
    %v3874 = vand.u32 %v1115, 4294901760
    %v3875 = vsub.f32 %v1115, %v3874
    %v3876 = vand.u32 %v3875, 4294901760
    %v3877 = vsub.f32 %v3875, %v3876
    %v3878 = vand.u32 %v3877, 4294901760
    %3879 = vmatpush1.msra.mxu0 %v3878
    %3880 = vmatprep.subr.mxu0 0.0
    %v3881 = vand.u32 %v1116, 4294901760
    %v3882 = vsub.f32 %v1116, %v3881
    %v3883 = vand.u32 %v3882, 4294901760
    %v3884 = vsub.f32 %v3882, %v3883
    %v3885 = vand.u32 %v3884, 4294901760
    %3886 = vmatpush1.msra.mxu0 %v3885
    %3887 = vmatprep.subr.mxu0 0.0
    %v3888 = vand.u32 %v1117, 4294901760
    %v3889 = vsub.f32 %v1117, %v3888
    %v3890 = vand.u32 %v3889, 4294901760
    %v3891 = vsub.f32 %v3889, %v3890
    %v3892 = vand.u32 %v3891, 4294901760
    %3893 = vmatpush1.msra.mxu0 %v3892
    %3894 = vmatprep.subr.mxu0 0.0
    %v3895 = vand.u32 %v1118, 4294901760
    %v3896 = vsub.f32 %v1118, %v3895
    %v3897 = vand.u32 %v3896, 4294901760
    %v3898 = vsub.f32 %v3896, %v3897
    %v3899 = vand.u32 %v3898, 4294901760
    %3900 = vmatpush1.msra.mxu0 %v3899
    %3901 = vmatprep.subr.mxu0 0.0
    %3902 = vmatpush1.msra.mxu0 0.0
    %3903 = vmatprep.subr.mxu0 0.0
    %3904 = vmatpush1.msra.mxu0 0.0
    %3905 = vmatprep.subr.mxu0 0.0
    %3906 = vmatpush1.msra.mxu0 0.0
    %3907 = vmatprep.subr.mxu0 0.0
    %3908 = vmatpush1.msra.mxu0 0.0
    %3909 = vmatprep.subr.mxu0 0.0
    %3910 = vmatpush1.msra.mxu0 0.0
    %3911 = vmatprep.subr.mxu0 0.0
    %3912 = vmatpush1.msra.mxu0 0.0
    %3913 = vmatprep.subr.mxu0 0.0
    %3914 = vmatpush1.msra.mxu0 0.0
    %3915 = vmatprep.subr.mxu0 0.0
    %3916 = vmatpush1.msra.mxu0 0.0
    %3917 = vmatprep.subr.mxu0 0.0
    %3918 = vmatpush1.msra.mxu0 0.0
    %3919 = vmatprep.subr.mxu0 0.0
    %3920 = vmatpush1.msra.mxu0 0.0
    %3921 = vmatprep.subr.mxu0 0.0
    %3922 = vmatpush1.msra.mxu0 0.0
    %3923 = vmatprep.subr.mxu0 0.0
    %3924 = vmatpush1.msra.mxu0 0.0
    %3925 = vmatprep.subr.mxu0 0.0
    %3926 = vmatpush1.msra.mxu0 0.0
    %3927 = vmatprep.subr.mxu0 0.0
    %3928 = vmatpush1.msra.mxu0 0.0
    %3929 = vmatprep.subr.mxu0 0.0
    %3930 = vmatpush1.msra.mxu0 0.0
    %3931 = vmatprep.subr.mxu0 0.0
    %3932 = vmatpush1.msra.mxu0 0.0
    %3933 = vmatprep.subr.mxu0 0.0
    %3934 = vmatpush1.msra.mxu0 0.0
    %3935 = vmatprep.subr.mxu0 0.0
    %3936 = vmatpush1.msra.mxu0 0.0
    %3937 = vmatprep.subr.mxu0 0.0
    %3938 = vmatpush1.msra.mxu0 0.0
    %3939 = vmatprep.subr.mxu0 0.0
    %3940 = vmatpush1.msra.mxu0 0.0
    %3941 = vmatprep.subr.mxu0 0.0
    %3942 = vmatpush1.msra.mxu0 0.0
    %3943 = vmatprep.subr.mxu0 0.0
    %3944 = vmatpush1.msra.mxu0 0.0
    %3945 = vmatprep.subr.mxu0 0.0
    %3946 = vmatpush1.msra.mxu0 0.0
    %3947 = vmatprep.subr.mxu0 0.0
    %3948 = vmatpush1.msra.mxu0 0.0
    %3949 = vmatprep.subr.mxu0 0.0
    %3950 = vmatpush1.msra.mxu0 0.0
    %3951 = vmatprep.subr.mxu0 0.0
    %3952 = vmatpush1.msra.mxu0 0.0
    %3953 = vmatprep.subr.mxu0 0.0
    %3954 = vmatpush1.msra.mxu0 0.0
    %3955 = vmatprep.subr.mxu0 0.0
    %3956 = vmatpush1.msra.mxu0 0.0
    %3957 = vmatprep.mubr.f32.mxu0 0.0
    %v3958 = vand.u32 %v3792, 4294901760
    %3959 = vmatmul.mubr.f32.gmra.mrb[0].mxu0 %v3958
    %v3960 = vpop.f32.mrb[0].mxu0
    %v3961 = vadd.f32 %v3870, %v3960
    %v3962 = vpop.f32.mrb[0].mxu0
    %3963 = vdwg.mxu0
    %3964 = vmatprep.subr.mxu0 0.0
    %v3965 = vand.u32 %v1115, 4294901760
    %v3966 = vsub.f32 %v1115, %v3965
    %3967 = vmatpush1.msra.mxu0 %v3966
    %3968 = vmatprep.subr.mxu0 0.0
    %v3969 = vand.u32 %v1116, 4294901760
    %v3970 = vsub.f32 %v1116, %v3969
    %3971 = vmatpush1.msra.mxu0 %v3970
    %3972 = vmatprep.subr.mxu0 0.0
    %v3973 = vand.u32 %v1117, 4294901760
    %v3974 = vsub.f32 %v1117, %v3973
    %3975 = vmatpush1.msra.mxu0 %v3974
    %3976 = vmatprep.subr.mxu0 0.0
    %v3977 = vand.u32 %v1118, 4294901760
    %v3978 = vsub.f32 %v1118, %v3977
    %3979 = vmatpush1.msra.mxu0 %v3978
    %3980 = vmatprep.subr.mxu0 0.0
    %3981 = vmatpush1.msra.mxu0 0.0
    %3982 = vmatprep.subr.mxu0 0.0
    %3983 = vmatpush1.msra.mxu0 0.0
    %3984 = vmatprep.subr.mxu0 0.0
    %3985 = vmatpush1.msra.mxu0 0.0
    %3986 = vmatprep.subr.mxu0 0.0
    %3987 = vmatpush1.msra.mxu0 0.0
    %3988 = vmatprep.subr.mxu0 0.0
    %3989 = vmatpush1.msra.mxu0 0.0
    %3990 = vmatprep.subr.mxu0 0.0
    %3991 = vmatpush1.msra.mxu0 0.0
    %3992 = vmatprep.subr.mxu0 0.0
    %3993 = vmatpush1.msra.mxu0 0.0
    %3994 = vmatprep.subr.mxu0 0.0
    %3995 = vmatpush1.msra.mxu0 0.0
    %3996 = vmatprep.subr.mxu0 0.0
    %3997 = vmatpush1.msra.mxu0 0.0
    %3998 = vmatprep.subr.mxu0 0.0
    %3999 = vmatpush1.msra.mxu0 0.0
    %4000 = vmatprep.subr.mxu0 0.0
    %4001 = vmatpush1.msra.mxu0 0.0
    %4002 = vmatprep.subr.mxu0 0.0
    %4003 = vmatpush1.msra.mxu0 0.0
    %4004 = vmatprep.subr.mxu0 0.0
    %4005 = vmatpush1.msra.mxu0 0.0
    %4006 = vmatprep.subr.mxu0 0.0
    %4007 = vmatpush1.msra.mxu0 0.0
    %4008 = vmatprep.subr.mxu0 0.0
    %4009 = vmatpush1.msra.mxu0 0.0
    %4010 = vmatprep.subr.mxu0 0.0
    %4011 = vmatpush1.msra.mxu0 0.0
    %4012 = vmatprep.subr.mxu0 0.0
    %4013 = vmatpush1.msra.mxu0 0.0
    %4014 = vmatprep.subr.mxu0 0.0
    %4015 = vmatpush1.msra.mxu0 0.0
    %4016 = vmatprep.subr.mxu0 0.0
    %4017 = vmatpush1.msra.mxu0 0.0
    %4018 = vmatprep.subr.mxu0 0.0
    %4019 = vmatpush1.msra.mxu0 0.0
    %4020 = vmatprep.subr.mxu0 0.0
    %4021 = vmatpush1.msra.mxu0 0.0
    %4022 = vmatprep.subr.mxu0 0.0
    %4023 = vmatpush1.msra.mxu0 0.0
    %4024 = vmatprep.subr.mxu0 0.0
    %4025 = vmatpush1.msra.mxu0 0.0
    %4026 = vmatprep.subr.mxu0 0.0
    %4027 = vmatpush1.msra.mxu0 0.0
    %4028 = vmatprep.subr.mxu0 0.0
    %4029 = vmatpush1.msra.mxu0 0.0
    %4030 = vmatprep.subr.mxu0 0.0
    %4031 = vmatpush1.msra.mxu0 0.0
    %4032 = vmatprep.subr.mxu0 0.0
    %4033 = vmatpush1.msra.mxu0 0.0
    %4034 = vmatprep.subr.mxu0 0.0
    %4035 = vmatpush1.msra.mxu0 0.0
    %4036 = vmatprep.mubr.f32.mxu0 0.0
    %v4037 = vand.u32 %v3792, 4294901760
    %v4038 = vsub.f32 %v3792, %v4037
    %4039 = vmatmul.mubr.f32.gmra.mrb[0].mxu0 %v4038
    %v4040 = vpop.f32.mrb[0].mxu0
    %v4041 = vadd.f32 %v3961, %v4040
    %v4042 = vpop.f32.mrb[0].mxu0
    %4043 = vdwg.mxu0
    %4044 = vmatprep.subr.mxu0 0.0
    %v4045 = vand.u32 %v1115, 4294901760
    %4046 = vmatpush1.msra.mxu0 %v4045
    %4047 = vmatprep.subr.mxu0 0.0
    %v4048 = vand.u32 %v1116, 4294901760
    %4049 = vmatpush1.msra.mxu0 %v4048
    %4050 = vmatprep.subr.mxu0 0.0
    %v4051 = vand.u32 %v1117, 4294901760
    %4052 = vmatpush1.msra.mxu0 %v4051
    %4053 = vmatprep.subr.mxu0 0.0
    %v4054 = vand.u32 %v1118, 4294901760
    %4055 = vmatpush1.msra.mxu0 %v4054
    %4056 = vmatprep.subr.mxu0 0.0
    %4057 = vmatpush1.msra.mxu0 0.0
    %4058 = vmatprep.subr.mxu0 0.0
    %4059 = vmatpush1.msra.mxu0 0.0
    %4060 = vmatprep.subr.mxu0 0.0
    %4061 = vmatpush1.msra.mxu0 0.0
    %4062 = vmatprep.subr.mxu0 0.0
    %4063 = vmatpush1.msra.mxu0 0.0
    %4064 = vmatprep.subr.mxu0 0.0
    %4065 = vmatpush1.msra.mxu0 0.0
    %4066 = vmatprep.subr.mxu0 0.0
    %4067 = vmatpush1.msra.mxu0 0.0
    %4068 = vmatprep.subr.mxu0 0.0
    %4069 = vmatpush1.msra.mxu0 0.0
    %4070 = vmatprep.subr.mxu0 0.0
    %4071 = vmatpush1.msra.mxu0 0.0
    %4072 = vmatprep.subr.mxu0 0.0
    %4073 = vmatpush1.msra.mxu0 0.0
    %4074 = vmatprep.subr.mxu0 0.0
    %4075 = vmatpush1.msra.mxu0 0.0
    %4076 = vmatprep.subr.mxu0 0.0
    %4077 = vmatpush1.msra.mxu0 0.0
    %4078 = vmatprep.subr.mxu0 0.0
    %4079 = vmatpush1.msra.mxu0 0.0
    %4080 = vmatprep.subr.mxu0 0.0
    %4081 = vmatpush1.msra.mxu0 0.0
    %4082 = vmatprep.subr.mxu0 0.0
    %4083 = vmatpush1.msra.mxu0 0.0
    %4084 = vmatprep.subr.mxu0 0.0
    %4085 = vmatpush1.msra.mxu0 0.0
    %4086 = vmatprep.subr.mxu0 0.0
    %4087 = vmatpush1.msra.mxu0 0.0
    %4088 = vmatprep.subr.mxu0 0.0
    %4089 = vmatpush1.msra.mxu0 0.0
    %4090 = vmatprep.subr.mxu0 0.0
    %4091 = vmatpush1.msra.mxu0 0.0
    %4092 = vmatprep.subr.mxu0 0.0
    %4093 = vmatpush1.msra.mxu0 0.0
    %4094 = vmatprep.subr.mxu0 0.0
    %4095 = vmatpush1.msra.mxu0 0.0
    %4096 = vmatprep.subr.mxu0 0.0
    %4097 = vmatpush1.msra.mxu0 0.0
    %4098 = vmatprep.subr.mxu0 0.0
    %4099 = vmatpush1.msra.mxu0 0.0
    %4100 = vmatprep.subr.mxu0 0.0
    %4101 = vmatpush1.msra.mxu0 0.0
    %4102 = vmatprep.subr.mxu0 0.0
    %4103 = vmatpush1.msra.mxu0 0.0
    %4104 = vmatprep.subr.mxu0 0.0
    %4105 = vmatpush1.msra.mxu0 0.0
    %4106 = vmatprep.subr.mxu0 0.0
    %4107 = vmatpush1.msra.mxu0 0.0
    %4108 = vmatprep.subr.mxu0 0.0
    %4109 = vmatpush1.msra.mxu0 0.0
    %4110 = vmatprep.subr.mxu0 0.0
    %4111 = vmatpush1.msra.mxu0 0.0
    %4112 = vmatprep.mubr.f32.mxu0 0.0
    %v4113 = vand.u32 %v3792, 4294901760
    %v4114 = vsub.f32 %v3792, %v4113
    %v4115 = vand.u32 %v4114, 4294901760
    %4116 = vmatmul.mubr.f32.gmra.mrb[0].mxu0 %v4115
    %v4117 = vpop.f32.mrb[0].mxu0
    %v4118 = vadd.f32 %v4041, %v4117
    %v4119 = vpop.f32.mrb[0].mxu0
    %4120 = vdwg.mxu0
    %4121 = vmatprep.subr.mxu0 0.0
    %v4122 = vand.u32 %v1115, 4294901760
    %v4123 = vsub.f32 %v1115, %v4122
    %v4124 = vand.u32 %v4123, 4294901760
    %4125 = vmatpush1.msra.mxu0 %v4124
    %4126 = vmatprep.subr.mxu0 0.0
    %v4127 = vand.u32 %v1116, 4294901760
    %v4128 = vsub.f32 %v1116, %v4127
    %v4129 = vand.u32 %v4128, 4294901760
    %4130 = vmatpush1.msra.mxu0 %v4129
    %4131 = vmatprep.subr.mxu0 0.0
    %v4132 = vand.u32 %v1117, 4294901760
    %v4133 = vsub.f32 %v1117, %v4132
    %v4134 = vand.u32 %v4133, 4294901760
    %4135 = vmatpush1.msra.mxu0 %v4134
    %4136 = vmatprep.subr.mxu0 0.0
    %v4137 = vand.u32 %v1118, 4294901760
    %v4138 = vsub.f32 %v1118, %v4137
    %v4139 = vand.u32 %v4138, 4294901760
    %4140 = vmatpush1.msra.mxu0 %v4139
    %4141 = vmatprep.subr.mxu0 0.0
    %4142 = vmatpush1.msra.mxu0 0.0
    %4143 = vmatprep.subr.mxu0 0.0
    %4144 = vmatpush1.msra.mxu0 0.0
    %4145 = vmatprep.subr.mxu0 0.0
    %4146 = vmatpush1.msra.mxu0 0.0
    %4147 = vmatprep.subr.mxu0 0.0
    %4148 = vmatpush1.msra.mxu0 0.0
    %4149 = vmatprep.subr.mxu0 0.0
    %4150 = vmatpush1.msra.mxu0 0.0
    %4151 = vmatprep.subr.mxu0 0.0
    %4152 = vmatpush1.msra.mxu0 0.0
    %4153 = vmatprep.subr.mxu0 0.0
    %4154 = vmatpush1.msra.mxu0 0.0
    %4155 = vmatprep.subr.mxu0 0.0
    %4156 = vmatpush1.msra.mxu0 0.0
    %4157 = vmatprep.subr.mxu0 0.0
    %4158 = vmatpush1.msra.mxu0 0.0
    %4159 = vmatprep.subr.mxu0 0.0
    %4160 = vmatpush1.msra.mxu0 0.0
    %4161 = vmatprep.subr.mxu0 0.0
    %4162 = vmatpush1.msra.mxu0 0.0
    %4163 = vmatprep.subr.mxu0 0.0
    %4164 = vmatpush1.msra.mxu0 0.0
    %4165 = vmatprep.subr.mxu0 0.0
    %4166 = vmatpush1.msra.mxu0 0.0
    %4167 = vmatprep.subr.mxu0 0.0
    %4168 = vmatpush1.msra.mxu0 0.0
    %4169 = vmatprep.subr.mxu0 0.0
    %4170 = vmatpush1.msra.mxu0 0.0
    %4171 = vmatprep.subr.mxu0 0.0
    %4172 = vmatpush1.msra.mxu0 0.0
    %4173 = vmatprep.subr.mxu0 0.0
    %4174 = vmatpush1.msra.mxu0 0.0
    %4175 = vmatprep.subr.mxu0 0.0
    %4176 = vmatpush1.msra.mxu0 0.0
    %4177 = vmatprep.subr.mxu0 0.0
    %4178 = vmatpush1.msra.mxu0 0.0
    %4179 = vmatprep.subr.mxu0 0.0
    %4180 = vmatpush1.msra.mxu0 0.0
    %4181 = vmatprep.subr.mxu0 0.0
    %4182 = vmatpush1.msra.mxu0 0.0
    %4183 = vmatprep.subr.mxu0 0.0
    %4184 = vmatpush1.msra.mxu0 0.0
    %4185 = vmatprep.subr.mxu0 0.0
    %4186 = vmatpush1.msra.mxu0 0.0
    %4187 = vmatprep.subr.mxu0 0.0
    %4188 = vmatpush1.msra.mxu0 0.0
    %4189 = vmatprep.subr.mxu0 0.0
    %4190 = vmatpush1.msra.mxu0 0.0
    %4191 = vmatprep.subr.mxu0 0.0
    %4192 = vmatpush1.msra.mxu0 0.0
    %4193 = vmatprep.subr.mxu0 0.0
    %4194 = vmatpush1.msra.mxu0 0.0
    %4195 = vmatprep.subr.mxu0 0.0
    %4196 = vmatpush1.msra.mxu0 0.0
    %4197 = vmatprep.mubr.f32.mxu0 0.0
    %v4198 = vand.u32 %v3792, 4294901760
    %4199 = vmatmul.mubr.f32.gmra.mrb[0].mxu0 %v4198
    %v4200 = vpop.f32.mrb[0].mxu0
    %v4201 = vadd.f32 %v4118, %v4200
    %v4202 = vpop.f32.mrb[0].mxu0
    %4203 = vdwg.mxu0
    %4204 = vmatprep.subr.mxu0 0.0
    %v4205 = vand.u32 %v1115, 4294901760
    %4206 = vmatpush1.msra.mxu0 %v4205
    %4207 = vmatprep.subr.mxu0 0.0
    %v4208 = vand.u32 %v1116, 4294901760
    %4209 = vmatpush1.msra.mxu0 %v4208
    %4210 = vmatprep.subr.mxu0 0.0
    %v4211 = vand.u32 %v1117, 4294901760
    %4212 = vmatpush1.msra.mxu0 %v4211
    %4213 = vmatprep.subr.mxu0 0.0
    %v4214 = vand.u32 %v1118, 4294901760
    %4215 = vmatpush1.msra.mxu0 %v4214
    %4216 = vmatprep.subr.mxu0 0.0
    %4217 = vmatpush1.msra.mxu0 0.0
    %4218 = vmatprep.subr.mxu0 0.0
    %4219 = vmatpush1.msra.mxu0 0.0
    %4220 = vmatprep.subr.mxu0 0.0
    %4221 = vmatpush1.msra.mxu0 0.0
    %4222 = vmatprep.subr.mxu0 0.0
    %4223 = vmatpush1.msra.mxu0 0.0
    %4224 = vmatprep.subr.mxu0 0.0
    %4225 = vmatpush1.msra.mxu0 0.0
    %4226 = vmatprep.subr.mxu0 0.0
    %4227 = vmatpush1.msra.mxu0 0.0
    %4228 = vmatprep.subr.mxu0 0.0
    %4229 = vmatpush1.msra.mxu0 0.0
    %4230 = vmatprep.subr.mxu0 0.0
    %4231 = vmatpush1.msra.mxu0 0.0
    %4232 = vmatprep.subr.mxu0 0.0
    %4233 = vmatpush1.msra.mxu0 0.0
    %4234 = vmatprep.subr.mxu0 0.0
    %4235 = vmatpush1.msra.mxu0 0.0
    %4236 = vmatprep.subr.mxu0 0.0
    %4237 = vmatpush1.msra.mxu0 0.0
    %4238 = vmatprep.subr.mxu0 0.0
    %4239 = vmatpush1.msra.mxu0 0.0
    %4240 = vmatprep.subr.mxu0 0.0
    %4241 = vmatpush1.msra.mxu0 0.0
    %4242 = vmatprep.subr.mxu0 0.0
    %4243 = vmatpush1.msra.mxu0 0.0
    %4244 = vmatprep.subr.mxu0 0.0
    %4245 = vmatpush1.msra.mxu0 0.0
    %4246 = vmatprep.subr.mxu0 0.0
    %4247 = vmatpush1.msra.mxu0 0.0
    %4248 = vmatprep.subr.mxu0 0.0
    %4249 = vmatpush1.msra.mxu0 0.0
    %4250 = vmatprep.subr.mxu0 0.0
    %4251 = vmatpush1.msra.mxu0 0.0
    %4252 = vmatprep.subr.mxu0 0.0
    %4253 = vmatpush1.msra.mxu0 0.0
    %4254 = vmatprep.subr.mxu0 0.0
    %4255 = vmatpush1.msra.mxu0 0.0
    %4256 = vmatprep.subr.mxu0 0.0
    %4257 = vmatpush1.msra.mxu0 0.0
    %4258 = vmatprep.subr.mxu0 0.0
    %4259 = vmatpush1.msra.mxu0 0.0
    %4260 = vmatprep.subr.mxu0 0.0
    %4261 = vmatpush1.msra.mxu0 0.0
    %4262 = vmatprep.subr.mxu0 0.0
    %4263 = vmatpush1.msra.mxu0 0.0
    %4264 = vmatprep.subr.mxu0 0.0
    %4265 = vmatpush1.msra.mxu0 0.0
    %4266 = vmatprep.subr.mxu0 0.0
    %4267 = vmatpush1.msra.mxu0 0.0
    %4268 = vmatprep.subr.mxu0 0.0
    %4269 = vmatpush1.msra.mxu0 0.0
    %4270 = vmatprep.subr.mxu0 0.0
    %4271 = vmatpush1.msra.mxu0 0.0
    %4272 = vmatprep.mubr.f32.mxu0 0.0
    %v4273 = vand.u32 %v3792, 4294901760
    %4274 = vmatmul.mubr.f32.gmra.mrb[0].mxu0 %v4273
    %v4275 = vpop.f32.mrb[0].mxu0
    %v4276 = vadd.f32 %v4201, %v4275
    %v4277 = vpop.f32.mrb[0].mxu0
    %4278 = vdwg.mxu0
    %v4280 = vrot.slane %v4276, 3
    %v4281 = vrot.slane %v4276, 4
    %v4284 = vadd.f32 %v1113, %v4280
    %v4285 = vadd.f32 %v1114, %v4281
    %v4286 = vmul.f32 %v4284, 0.5
    %v4287 = vmul.f32 %v4285, 0.5
    %v4290 = vrot.slane %v4284, 5
    %v4291 = vrot.slane %v4285, 4
    %v4292 = vsel %vm1626, %v4291, %v4290
    %v4296 = vrot.slane %v4286, 5
    %v4297 = vrot.slane %v4287, 4
    %v4298 = vsel %vm1626, %v4297, %v4296
    %v4300 = vsel %vm1123, %v4292, %v4298
    %v4301 = vtanh.pop %v4300
    %v4302 = vadd.f32 %v4301, 1.0
    %v4303 = vmul.f32 %v4302, 0.5
    %v4304 = vsel %vm1123, %v4301, %v4303
    %v4305 = vmul.f32 %v4304, %v3782
    %4307 = vrot.lane.b32.xlu0 %v4304, 64
    %v4308 = vpop.permute.xlu0 %4307
    %v4310 = vmul.f32 %v4304, %v4308
    %4312 = vrot.lane.b32.xlu0 %v4310, 32
    %v4313 = vpop.permute.xlu0 %4312
    %v4315 = vadd.f32 %v4305, %v4313
    %v4316 = vtanh.pop %v4315
    %4318 = vrot.lane.b32.xlu0 %v4316, 64
    %v4319 = vpop.permute.xlu0 %4318
    %v4321 = vmul.f32 %v4304, %v4319
    %4323 = vrot.lane.b32.xlu0 %v4321, 32
    %v4324 = vpop.permute.xlu0 %4323
    %v4325 = vsel %vm1126, %v4324, 0
    %4327 = vmatprep.subr.mxu0 0.0
    %v4328 = vand.u32 %v1115, 4294901760
    %4329 = vmatpush1.msra.mxu0 %v4328
    %4330 = vmatprep.subr.mxu0 0.0
    %v4331 = vand.u32 %v1116, 4294901760
    %4332 = vmatpush1.msra.mxu0 %v4331
    %4333 = vmatprep.subr.mxu0 0.0
    %v4334 = vand.u32 %v1117, 4294901760
    %4335 = vmatpush1.msra.mxu0 %v4334
    %4336 = vmatprep.subr.mxu0 0.0
    %v4337 = vand.u32 %v1118, 4294901760
    %4338 = vmatpush1.msra.mxu0 %v4337
    %4339 = vmatprep.subr.mxu0 0.0
    %4340 = vmatpush1.msra.mxu0 0.0
    %4341 = vmatprep.subr.mxu0 0.0
    %4342 = vmatpush1.msra.mxu0 0.0
    %4343 = vmatprep.subr.mxu0 0.0
    %4344 = vmatpush1.msra.mxu0 0.0
    %4345 = vmatprep.subr.mxu0 0.0
    %4346 = vmatpush1.msra.mxu0 0.0
    %4347 = vmatprep.subr.mxu0 0.0
    %4348 = vmatpush1.msra.mxu0 0.0
    %4349 = vmatprep.subr.mxu0 0.0
    %4350 = vmatpush1.msra.mxu0 0.0
    %4351 = vmatprep.subr.mxu0 0.0
    %4352 = vmatpush1.msra.mxu0 0.0
    %4353 = vmatprep.subr.mxu0 0.0
    %4354 = vmatpush1.msra.mxu0 0.0
    %4355 = vmatprep.subr.mxu0 0.0
    %4356 = vmatpush1.msra.mxu0 0.0
    %4357 = vmatprep.subr.mxu0 0.0
    %4358 = vmatpush1.msra.mxu0 0.0
    %4359 = vmatprep.subr.mxu0 0.0
    %4360 = vmatpush1.msra.mxu0 0.0
    %4361 = vmatprep.subr.mxu0 0.0
    %4362 = vmatpush1.msra.mxu0 0.0
    %4363 = vmatprep.subr.mxu0 0.0
    %4364 = vmatpush1.msra.mxu0 0.0
    %4365 = vmatprep.subr.mxu0 0.0
    %4366 = vmatpush1.msra.mxu0 0.0
    %4367 = vmatprep.subr.mxu0 0.0
    %4368 = vmatpush1.msra.mxu0 0.0
    %4369 = vmatprep.subr.mxu0 0.0
    %4370 = vmatpush1.msra.mxu0 0.0
    %4371 = vmatprep.subr.mxu0 0.0
    %4372 = vmatpush1.msra.mxu0 0.0
    %4373 = vmatprep.subr.mxu0 0.0
    %4374 = vmatpush1.msra.mxu0 0.0
    %4375 = vmatprep.subr.mxu0 0.0
    %4376 = vmatpush1.msra.mxu0 0.0
    %4377 = vmatprep.subr.mxu0 0.0
    %4378 = vmatpush1.msra.mxu0 0.0
    %4379 = vmatprep.subr.mxu0 0.0
    %4380 = vmatpush1.msra.mxu0 0.0
    %4381 = vmatprep.subr.mxu0 0.0
    %4382 = vmatpush1.msra.mxu0 0.0
    %4383 = vmatprep.subr.mxu0 0.0
    %4384 = vmatpush1.msra.mxu0 0.0
    %4385 = vmatprep.subr.mxu0 0.0
    %4386 = vmatpush1.msra.mxu0 0.0
    %4387 = vmatprep.subr.mxu0 0.0
    %4388 = vmatpush1.msra.mxu0 0.0
    %4389 = vmatprep.subr.mxu0 0.0
    %4390 = vmatpush1.msra.mxu0 0.0
    %4391 = vmatprep.subr.mxu0 0.0
    %4392 = vmatpush1.msra.mxu0 0.0
    %4393 = vmatprep.subr.mxu0 0.0
    %4394 = vmatpush1.msra.mxu0 0.0
    %4395 = vmatprep.mubr.f32.mxu0 0.0
    %v4396 = vand.u32 %v4325, 4294901760
    %v4397 = vsub.f32 %v4325, %v4396
    %v4398 = vand.u32 %v4397, 4294901760
    %v4399 = vsub.f32 %v4397, %v4398
    %v4400 = vand.u32 %v4399, 4294901760
    %4401 = vmatmul.mubr.f32.gmra.mrb[0].mxu0 %v4400
    %v4402 = vpop.f32.mrb[0].mxu0
    %v4403 = vadd.f32 0.0, %v4402
    %v4404 = vpop.f32.mrb[0].mxu0
    %4405 = vdwg.mxu0
    %4406 = vmatprep.subr.mxu0 0.0
    %v4407 = vand.u32 %v1115, 4294901760
    %v4408 = vsub.f32 %v1115, %v4407
    %v4409 = vand.u32 %v4408, 4294901760
    %v4410 = vsub.f32 %v4408, %v4409
    %v4411 = vand.u32 %v4410, 4294901760
    %4412 = vmatpush1.msra.mxu0 %v4411
    %4413 = vmatprep.subr.mxu0 0.0
    %v4414 = vand.u32 %v1116, 4294901760
    %v4415 = vsub.f32 %v1116, %v4414
    %v4416 = vand.u32 %v4415, 4294901760
    %v4417 = vsub.f32 %v4415, %v4416
    %v4418 = vand.u32 %v4417, 4294901760
    %4419 = vmatpush1.msra.mxu0 %v4418
    %4420 = vmatprep.subr.mxu0 0.0
    %v4421 = vand.u32 %v1117, 4294901760
    %v4422 = vsub.f32 %v1117, %v4421
    %v4423 = vand.u32 %v4422, 4294901760
    %v4424 = vsub.f32 %v4422, %v4423
    %v4425 = vand.u32 %v4424, 4294901760
    %4426 = vmatpush1.msra.mxu0 %v4425
    %4427 = vmatprep.subr.mxu0 0.0
    %v4428 = vand.u32 %v1118, 4294901760
    %v4429 = vsub.f32 %v1118, %v4428
    %v4430 = vand.u32 %v4429, 4294901760
    %v4431 = vsub.f32 %v4429, %v4430
    %v4432 = vand.u32 %v4431, 4294901760
    %4433 = vmatpush1.msra.mxu0 %v4432
    %4434 = vmatprep.subr.mxu0 0.0
    %4435 = vmatpush1.msra.mxu0 0.0
    %4436 = vmatprep.subr.mxu0 0.0
    %4437 = vmatpush1.msra.mxu0 0.0
    %4438 = vmatprep.subr.mxu0 0.0
    %4439 = vmatpush1.msra.mxu0 0.0
    %4440 = vmatprep.subr.mxu0 0.0
    %4441 = vmatpush1.msra.mxu0 0.0
    %4442 = vmatprep.subr.mxu0 0.0
    %4443 = vmatpush1.msra.mxu0 0.0
    %4444 = vmatprep.subr.mxu0 0.0
    %4445 = vmatpush1.msra.mxu0 0.0
    %4446 = vmatprep.subr.mxu0 0.0
    %4447 = vmatpush1.msra.mxu0 0.0
    %4448 = vmatprep.subr.mxu0 0.0
    %4449 = vmatpush1.msra.mxu0 0.0
    %4450 = vmatprep.subr.mxu0 0.0
    %4451 = vmatpush1.msra.mxu0 0.0
    %4452 = vmatprep.subr.mxu0 0.0
    %4453 = vmatpush1.msra.mxu0 0.0
    %4454 = vmatprep.subr.mxu0 0.0
    %4455 = vmatpush1.msra.mxu0 0.0
    %4456 = vmatprep.subr.mxu0 0.0
    %4457 = vmatpush1.msra.mxu0 0.0
    %4458 = vmatprep.subr.mxu0 0.0
    %4459 = vmatpush1.msra.mxu0 0.0
    %4460 = vmatprep.subr.mxu0 0.0
    %4461 = vmatpush1.msra.mxu0 0.0
    %4462 = vmatprep.subr.mxu0 0.0
    %4463 = vmatpush1.msra.mxu0 0.0
    %4464 = vmatprep.subr.mxu0 0.0
    %4465 = vmatpush1.msra.mxu0 0.0
    %4466 = vmatprep.subr.mxu0 0.0
    %4467 = vmatpush1.msra.mxu0 0.0
    %4468 = vmatprep.subr.mxu0 0.0
    %4469 = vmatpush1.msra.mxu0 0.0
    %4470 = vmatprep.subr.mxu0 0.0
    %4471 = vmatpush1.msra.mxu0 0.0
    %4472 = vmatprep.subr.mxu0 0.0
    %4473 = vmatpush1.msra.mxu0 0.0
    %4474 = vmatprep.subr.mxu0 0.0
    %4475 = vmatpush1.msra.mxu0 0.0
    %4476 = vmatprep.subr.mxu0 0.0
    %4477 = vmatpush1.msra.mxu0 0.0
    %4478 = vmatprep.subr.mxu0 0.0
    %4479 = vmatpush1.msra.mxu0 0.0
    %4480 = vmatprep.subr.mxu0 0.0
    %4481 = vmatpush1.msra.mxu0 0.0
    %4482 = vmatprep.subr.mxu0 0.0
    %4483 = vmatpush1.msra.mxu0 0.0
    %4484 = vmatprep.subr.mxu0 0.0
    %4485 = vmatpush1.msra.mxu0 0.0
    %4486 = vmatprep.subr.mxu0 0.0
    %4487 = vmatpush1.msra.mxu0 0.0
    %4488 = vmatprep.subr.mxu0 0.0
    %4489 = vmatpush1.msra.mxu0 0.0
    %4490 = vmatprep.mubr.f32.mxu0 0.0
    %v4491 = vand.u32 %v4325, 4294901760
    %4492 = vmatmul.mubr.f32.gmra.mrb[0].mxu0 %v4491
    %v4493 = vpop.f32.mrb[0].mxu0
    %v4494 = vadd.f32 %v4403, %v4493
    %v4495 = vpop.f32.mrb[0].mxu0
    %4496 = vdwg.mxu0
    %4497 = vmatprep.subr.mxu0 0.0
    %v4498 = vand.u32 %v1115, 4294901760
    %v4499 = vsub.f32 %v1115, %v4498
    %4500 = vmatpush1.msra.mxu0 %v4499
    %4501 = vmatprep.subr.mxu0 0.0
    %v4502 = vand.u32 %v1116, 4294901760
    %v4503 = vsub.f32 %v1116, %v4502
    %4504 = vmatpush1.msra.mxu0 %v4503
    %4505 = vmatprep.subr.mxu0 0.0
    %v4506 = vand.u32 %v1117, 4294901760
    %v4507 = vsub.f32 %v1117, %v4506
    %4508 = vmatpush1.msra.mxu0 %v4507
    %4509 = vmatprep.subr.mxu0 0.0
    %v4510 = vand.u32 %v1118, 4294901760
    %v4511 = vsub.f32 %v1118, %v4510
    %4512 = vmatpush1.msra.mxu0 %v4511
    %4513 = vmatprep.subr.mxu0 0.0
    %4514 = vmatpush1.msra.mxu0 0.0
    %4515 = vmatprep.subr.mxu0 0.0
    %4516 = vmatpush1.msra.mxu0 0.0
    %4517 = vmatprep.subr.mxu0 0.0
    %4518 = vmatpush1.msra.mxu0 0.0
    %4519 = vmatprep.subr.mxu0 0.0
    %4520 = vmatpush1.msra.mxu0 0.0
    %4521 = vmatprep.subr.mxu0 0.0
    %4522 = vmatpush1.msra.mxu0 0.0
    %4523 = vmatprep.subr.mxu0 0.0
    %4524 = vmatpush1.msra.mxu0 0.0
    %4525 = vmatprep.subr.mxu0 0.0
    %4526 = vmatpush1.msra.mxu0 0.0
    %4527 = vmatprep.subr.mxu0 0.0
    %4528 = vmatpush1.msra.mxu0 0.0
    %4529 = vmatprep.subr.mxu0 0.0
    %4530 = vmatpush1.msra.mxu0 0.0
    %4531 = vmatprep.subr.mxu0 0.0
    %4532 = vmatpush1.msra.mxu0 0.0
    %4533 = vmatprep.subr.mxu0 0.0
    %4534 = vmatpush1.msra.mxu0 0.0
    %4535 = vmatprep.subr.mxu0 0.0
    %4536 = vmatpush1.msra.mxu0 0.0
    %4537 = vmatprep.subr.mxu0 0.0
    %4538 = vmatpush1.msra.mxu0 0.0
    %4539 = vmatprep.subr.mxu0 0.0
    %4540 = vmatpush1.msra.mxu0 0.0
    %4541 = vmatprep.subr.mxu0 0.0
    %4542 = vmatpush1.msra.mxu0 0.0
    %4543 = vmatprep.subr.mxu0 0.0
    %4544 = vmatpush1.msra.mxu0 0.0
    %4545 = vmatprep.subr.mxu0 0.0
    %4546 = vmatpush1.msra.mxu0 0.0
    %4547 = vmatprep.subr.mxu0 0.0
    %4548 = vmatpush1.msra.mxu0 0.0
    %4549 = vmatprep.subr.mxu0 0.0
    %4550 = vmatpush1.msra.mxu0 0.0
    %4551 = vmatprep.subr.mxu0 0.0
    %4552 = vmatpush1.msra.mxu0 0.0
    %4553 = vmatprep.subr.mxu0 0.0
    %4554 = vmatpush1.msra.mxu0 0.0
    %4555 = vmatprep.subr.mxu0 0.0
    %4556 = vmatpush1.msra.mxu0 0.0
    %4557 = vmatprep.subr.mxu0 0.0
    %4558 = vmatpush1.msra.mxu0 0.0
    %4559 = vmatprep.subr.mxu0 0.0
    %4560 = vmatpush1.msra.mxu0 0.0
    %4561 = vmatprep.subr.mxu0 0.0
    %4562 = vmatpush1.msra.mxu0 0.0
    %4563 = vmatprep.subr.mxu0 0.0
    %4564 = vmatpush1.msra.mxu0 0.0
    %4565 = vmatprep.subr.mxu0 0.0
    %4566 = vmatpush1.msra.mxu0 0.0
    %4567 = vmatprep.subr.mxu0 0.0
    %4568 = vmatpush1.msra.mxu0 0.0
    %4569 = vmatprep.mubr.f32.mxu0 0.0
    %v4570 = vand.u32 %v4325, 4294901760
    %v4571 = vsub.f32 %v4325, %v4570
    %4572 = vmatmul.mubr.f32.gmra.mrb[0].mxu0 %v4571
    %v4573 = vpop.f32.mrb[0].mxu0
    %v4574 = vadd.f32 %v4494, %v4573
    %v4575 = vpop.f32.mrb[0].mxu0
    %4576 = vdwg.mxu0
    %4577 = vmatprep.subr.mxu0 0.0
    %v4578 = vand.u32 %v1115, 4294901760
    %4579 = vmatpush1.msra.mxu0 %v4578
    %4580 = vmatprep.subr.mxu0 0.0
    %v4581 = vand.u32 %v1116, 4294901760
    %4582 = vmatpush1.msra.mxu0 %v4581
    %4583 = vmatprep.subr.mxu0 0.0
    %v4584 = vand.u32 %v1117, 4294901760
    %4585 = vmatpush1.msra.mxu0 %v4584
    %4586 = vmatprep.subr.mxu0 0.0
    %v4587 = vand.u32 %v1118, 4294901760
    %4588 = vmatpush1.msra.mxu0 %v4587
    %4589 = vmatprep.subr.mxu0 0.0
    %4590 = vmatpush1.msra.mxu0 0.0
    %4591 = vmatprep.subr.mxu0 0.0
    %4592 = vmatpush1.msra.mxu0 0.0
    %4593 = vmatprep.subr.mxu0 0.0
    %4594 = vmatpush1.msra.mxu0 0.0
    %4595 = vmatprep.subr.mxu0 0.0
    %4596 = vmatpush1.msra.mxu0 0.0
    %4597 = vmatprep.subr.mxu0 0.0
    %4598 = vmatpush1.msra.mxu0 0.0
    %4599 = vmatprep.subr.mxu0 0.0
    %4600 = vmatpush1.msra.mxu0 0.0
    %4601 = vmatprep.subr.mxu0 0.0
    %4602 = vmatpush1.msra.mxu0 0.0
    %4603 = vmatprep.subr.mxu0 0.0
    %4604 = vmatpush1.msra.mxu0 0.0
    %4605 = vmatprep.subr.mxu0 0.0
    %4606 = vmatpush1.msra.mxu0 0.0
    %4607 = vmatprep.subr.mxu0 0.0
    %4608 = vmatpush1.msra.mxu0 0.0
    %4609 = vmatprep.subr.mxu0 0.0
    %4610 = vmatpush1.msra.mxu0 0.0
    %4611 = vmatprep.subr.mxu0 0.0
    %4612 = vmatpush1.msra.mxu0 0.0
    %4613 = vmatprep.subr.mxu0 0.0
    %4614 = vmatpush1.msra.mxu0 0.0
    %4615 = vmatprep.subr.mxu0 0.0
    %4616 = vmatpush1.msra.mxu0 0.0
    %4617 = vmatprep.subr.mxu0 0.0
    %4618 = vmatpush1.msra.mxu0 0.0
    %4619 = vmatprep.subr.mxu0 0.0
    %4620 = vmatpush1.msra.mxu0 0.0
    %4621 = vmatprep.subr.mxu0 0.0
    %4622 = vmatpush1.msra.mxu0 0.0
    %4623 = vmatprep.subr.mxu0 0.0
    %4624 = vmatpush1.msra.mxu0 0.0
    %4625 = vmatprep.subr.mxu0 0.0
    %4626 = vmatpush1.msra.mxu0 0.0
    %4627 = vmatprep.subr.mxu0 0.0
    %4628 = vmatpush1.msra.mxu0 0.0
    %4629 = vmatprep.subr.mxu0 0.0
    %4630 = vmatpush1.msra.mxu0 0.0
    %4631 = vmatprep.subr.mxu0 0.0
    %4632 = vmatpush1.msra.mxu0 0.0
    %4633 = vmatprep.subr.mxu0 0.0
    %4634 = vmatpush1.msra.mxu0 0.0
    %4635 = vmatprep.subr.mxu0 0.0
    %4636 = vmatpush1.msra.mxu0 0.0
    %4637 = vmatprep.subr.mxu0 0.0
    %4638 = vmatpush1.msra.mxu0 0.0
    %4639 = vmatprep.subr.mxu0 0.0
    %4640 = vmatpush1.msra.mxu0 0.0
    %4641 = vmatprep.subr.mxu0 0.0
    %4642 = vmatpush1.msra.mxu0 0.0
    %4643 = vmatprep.subr.mxu0 0.0
    %4644 = vmatpush1.msra.mxu0 0.0
    %4645 = vmatprep.mubr.f32.mxu0 0.0
    %v4646 = vand.u32 %v4325, 4294901760
    %v4647 = vsub.f32 %v4325, %v4646
    %v4648 = vand.u32 %v4647, 4294901760
    %4649 = vmatmul.mubr.f32.gmra.mrb[0].mxu0 %v4648
    %v4650 = vpop.f32.mrb[0].mxu0
    %v4651 = vadd.f32 %v4574, %v4650
    %v4652 = vpop.f32.mrb[0].mxu0
    %4653 = vdwg.mxu0
    %4654 = vmatprep.subr.mxu0 0.0
    %v4655 = vand.u32 %v1115, 4294901760
    %v4656 = vsub.f32 %v1115, %v4655
    %v4657 = vand.u32 %v4656, 4294901760
    %4658 = vmatpush1.msra.mxu0 %v4657
    %4659 = vmatprep.subr.mxu0 0.0
    %v4660 = vand.u32 %v1116, 4294901760
    %v4661 = vsub.f32 %v1116, %v4660
    %v4662 = vand.u32 %v4661, 4294901760
    %4663 = vmatpush1.msra.mxu0 %v4662
    %4664 = vmatprep.subr.mxu0 0.0
    %v4665 = vand.u32 %v1117, 4294901760
    %v4666 = vsub.f32 %v1117, %v4665
    %v4667 = vand.u32 %v4666, 4294901760
    %4668 = vmatpush1.msra.mxu0 %v4667
    %4669 = vmatprep.subr.mxu0 0.0
    %v4670 = vand.u32 %v1118, 4294901760
    %v4671 = vsub.f32 %v1118, %v4670
    %v4672 = vand.u32 %v4671, 4294901760
    %4673 = vmatpush1.msra.mxu0 %v4672
    %4674 = vmatprep.subr.mxu0 0.0
    %4675 = vmatpush1.msra.mxu0 0.0
    %4676 = vmatprep.subr.mxu0 0.0
    %4677 = vmatpush1.msra.mxu0 0.0
    %4678 = vmatprep.subr.mxu0 0.0
    %4679 = vmatpush1.msra.mxu0 0.0
    %4680 = vmatprep.subr.mxu0 0.0
    %4681 = vmatpush1.msra.mxu0 0.0
    %4682 = vmatprep.subr.mxu0 0.0
    %4683 = vmatpush1.msra.mxu0 0.0
    %4684 = vmatprep.subr.mxu0 0.0
    %4685 = vmatpush1.msra.mxu0 0.0
    %4686 = vmatprep.subr.mxu0 0.0
    %4687 = vmatpush1.msra.mxu0 0.0
    %4688 = vmatprep.subr.mxu0 0.0
    %4689 = vmatpush1.msra.mxu0 0.0
    %4690 = vmatprep.subr.mxu0 0.0
    %4691 = vmatpush1.msra.mxu0 0.0
    %4692 = vmatprep.subr.mxu0 0.0
    %4693 = vmatpush1.msra.mxu0 0.0
    %4694 = vmatprep.subr.mxu0 0.0
    %4695 = vmatpush1.msra.mxu0 0.0
    %4696 = vmatprep.subr.mxu0 0.0
    %4697 = vmatpush1.msra.mxu0 0.0
    %4698 = vmatprep.subr.mxu0 0.0
    %4699 = vmatpush1.msra.mxu0 0.0
    %4700 = vmatprep.subr.mxu0 0.0
    %4701 = vmatpush1.msra.mxu0 0.0
    %4702 = vmatprep.subr.mxu0 0.0
    %4703 = vmatpush1.msra.mxu0 0.0
    %4704 = vmatprep.subr.mxu0 0.0
    %4705 = vmatpush1.msra.mxu0 0.0
    %4706 = vmatprep.subr.mxu0 0.0
    %4707 = vmatpush1.msra.mxu0 0.0
    %4708 = vmatprep.subr.mxu0 0.0
    %4709 = vmatpush1.msra.mxu0 0.0
    %4710 = vmatprep.subr.mxu0 0.0
    %4711 = vmatpush1.msra.mxu0 0.0
    %4712 = vmatprep.subr.mxu0 0.0
    %4713 = vmatpush1.msra.mxu0 0.0
    %4714 = vmatprep.subr.mxu0 0.0
    %4715 = vmatpush1.msra.mxu0 0.0
    %4716 = vmatprep.subr.mxu0 0.0
    %4717 = vmatpush1.msra.mxu0 0.0
    %4718 = vmatprep.subr.mxu0 0.0
    %4719 = vmatpush1.msra.mxu0 0.0
    %4720 = vmatprep.subr.mxu0 0.0
    %4721 = vmatpush1.msra.mxu0 0.0
    %4722 = vmatprep.subr.mxu0 0.0
    %4723 = vmatpush1.msra.mxu0 0.0
    %4724 = vmatprep.subr.mxu0 0.0
    %4725 = vmatpush1.msra.mxu0 0.0
    %4726 = vmatprep.subr.mxu0 0.0
    %4727 = vmatpush1.msra.mxu0 0.0
    %4728 = vmatprep.subr.mxu0 0.0
    %4729 = vmatpush1.msra.mxu0 0.0
    %4730 = vmatprep.mubr.f32.mxu0 0.0
    %v4731 = vand.u32 %v4325, 4294901760
    %4732 = vmatmul.mubr.f32.gmra.mrb[0].mxu0 %v4731
    %v4733 = vpop.f32.mrb[0].mxu0
    %v4734 = vadd.f32 %v4651, %v4733
    %v4735 = vpop.f32.mrb[0].mxu0
    %4736 = vdwg.mxu0
    %4737 = vmatprep.subr.mxu0 0.0
    %v4738 = vand.u32 %v1115, 4294901760
    %4739 = vmatpush1.msra.mxu0 %v4738
    %4740 = vmatprep.subr.mxu0 0.0
    %v4741 = vand.u32 %v1116, 4294901760
    %4742 = vmatpush1.msra.mxu0 %v4741
    %4743 = vmatprep.subr.mxu0 0.0
    %v4744 = vand.u32 %v1117, 4294901760
    %4745 = vmatpush1.msra.mxu0 %v4744
    %4746 = vmatprep.subr.mxu0 0.0
    %v4747 = vand.u32 %v1118, 4294901760
    %4748 = vmatpush1.msra.mxu0 %v4747
    %4749 = vmatprep.subr.mxu0 0.0
    %4750 = vmatpush1.msra.mxu0 0.0
    %4751 = vmatprep.subr.mxu0 0.0
    %4752 = vmatpush1.msra.mxu0 0.0
    %4753 = vmatprep.subr.mxu0 0.0
    %4754 = vmatpush1.msra.mxu0 0.0
    %4755 = vmatprep.subr.mxu0 0.0
    %4756 = vmatpush1.msra.mxu0 0.0
    %4757 = vmatprep.subr.mxu0 0.0
    %4758 = vmatpush1.msra.mxu0 0.0
    %4759 = vmatprep.subr.mxu0 0.0
    %4760 = vmatpush1.msra.mxu0 0.0
    %4761 = vmatprep.subr.mxu0 0.0
    %4762 = vmatpush1.msra.mxu0 0.0
    %4763 = vmatprep.subr.mxu0 0.0
    %4764 = vmatpush1.msra.mxu0 0.0
    %4765 = vmatprep.subr.mxu0 0.0
    %4766 = vmatpush1.msra.mxu0 0.0
    %4767 = vmatprep.subr.mxu0 0.0
    %4768 = vmatpush1.msra.mxu0 0.0
    %4769 = vmatprep.subr.mxu0 0.0
    %4770 = vmatpush1.msra.mxu0 0.0
    %4771 = vmatprep.subr.mxu0 0.0
    %4772 = vmatpush1.msra.mxu0 0.0
    %4773 = vmatprep.subr.mxu0 0.0
    %4774 = vmatpush1.msra.mxu0 0.0
    %4775 = vmatprep.subr.mxu0 0.0
    %4776 = vmatpush1.msra.mxu0 0.0
    %4777 = vmatprep.subr.mxu0 0.0
    %4778 = vmatpush1.msra.mxu0 0.0
    %4779 = vmatprep.subr.mxu0 0.0
    %4780 = vmatpush1.msra.mxu0 0.0
    %4781 = vmatprep.subr.mxu0 0.0
    %4782 = vmatpush1.msra.mxu0 0.0
    %4783 = vmatprep.subr.mxu0 0.0
    %4784 = vmatpush1.msra.mxu0 0.0
    %4785 = vmatprep.subr.mxu0 0.0
    %4786 = vmatpush1.msra.mxu0 0.0
    %4787 = vmatprep.subr.mxu0 0.0
    %4788 = vmatpush1.msra.mxu0 0.0
    %4789 = vmatprep.subr.mxu0 0.0
    %4790 = vmatpush1.msra.mxu0 0.0
    %4791 = vmatprep.subr.mxu0 0.0
    %4792 = vmatpush1.msra.mxu0 0.0
    %4793 = vmatprep.subr.mxu0 0.0
    %4794 = vmatpush1.msra.mxu0 0.0
    %4795 = vmatprep.subr.mxu0 0.0
    %4796 = vmatpush1.msra.mxu0 0.0
    %4797 = vmatprep.subr.mxu0 0.0
    %4798 = vmatpush1.msra.mxu0 0.0
    %4799 = vmatprep.subr.mxu0 0.0
    %4800 = vmatpush1.msra.mxu0 0.0
    %4801 = vmatprep.subr.mxu0 0.0
    %4802 = vmatpush1.msra.mxu0 0.0
    %4803 = vmatprep.subr.mxu0 0.0
    %4804 = vmatpush1.msra.mxu0 0.0
    %4805 = vmatprep.mubr.f32.mxu0 0.0
    %v4806 = vand.u32 %v4325, 4294901760
    %4807 = vmatmul.mubr.f32.gmra.mrb[0].mxu0 %v4806
    %v4808 = vpop.f32.mrb[0].mxu0
    %v4809 = vadd.f32 %v4734, %v4808
    %v4810 = vpop.f32.mrb[0].mxu0
    %4811 = vdwg.mxu0
    %v4813 = vrot.slane %v4809, 2
    %v4814 = vrot.slane %v4809, 3
    %v4817 = vadd.f32 %v1113, %v4813
    %v4818 = vadd.f32 %v1114, %v4814
    %v4819 = vmul.f32 %v4817, 0.5
    %v4820 = vmul.f32 %v4818, 0.5
    %v4823 = vrot.slane %v4817, 6
    %v4824 = vrot.slane %v4818, 5
    %v4825 = vsel %vm1626, %v4824, %v4823
    %v4829 = vrot.slane %v4819, 6
    %v4830 = vrot.slane %v4820, 5
    %v4831 = vsel %vm1626, %v4830, %v4829
    %v4833 = vsel %vm1123, %v4825, %v4831
    %v4834 = vtanh.pop %v4833
    %v4835 = vadd.f32 %v4834, 1.0
    %v4836 = vmul.f32 %v4835, 0.5
    %v4837 = vsel %vm1123, %v4834, %v4836
    %v4838 = vmul.f32 %v4837, %v4315
    %4840 = vrot.lane.b32.xlu0 %v4837, 64
    %v4841 = vpop.permute.xlu0 %4840
    %v4843 = vmul.f32 %v4837, %v4841
    %4845 = vrot.lane.b32.xlu0 %v4843, 32
    %v4846 = vpop.permute.xlu0 %4845
    %v4848 = vadd.f32 %v4838, %v4846
    %v4849 = vtanh.pop %v4848
    %4851 = vrot.lane.b32.xlu0 %v4849, 64
    %v4852 = vpop.permute.xlu0 %4851
    %v4854 = vmul.f32 %v4837, %v4852
    %4856 = vrot.lane.b32.xlu0 %v4854, 32
    %v4857 = vpop.permute.xlu0 %4856
    %v4858 = vsel %vm1126, %v4857, 0
    %4860 = vmatprep.subr.mxu0 0.0
    %v4861 = vand.u32 %v1115, 4294901760
    %4862 = vmatpush1.msra.mxu0 %v4861
    %4863 = vmatprep.subr.mxu0 0.0
    %v4864 = vand.u32 %v1116, 4294901760
    %4865 = vmatpush1.msra.mxu0 %v4864
    %4866 = vmatprep.subr.mxu0 0.0
    %v4867 = vand.u32 %v1117, 4294901760
    %4868 = vmatpush1.msra.mxu0 %v4867
    %4869 = vmatprep.subr.mxu0 0.0
    %v4870 = vand.u32 %v1118, 4294901760
    %4871 = vmatpush1.msra.mxu0 %v4870
    %4872 = vmatprep.subr.mxu0 0.0
    %4873 = vmatpush1.msra.mxu0 0.0
    %4874 = vmatprep.subr.mxu0 0.0
    %4875 = vmatpush1.msra.mxu0 0.0
    %4876 = vmatprep.subr.mxu0 0.0
    %4877 = vmatpush1.msra.mxu0 0.0
    %4878 = vmatprep.subr.mxu0 0.0
    %4879 = vmatpush1.msra.mxu0 0.0
    %4880 = vmatprep.subr.mxu0 0.0
    %4881 = vmatpush1.msra.mxu0 0.0
    %4882 = vmatprep.subr.mxu0 0.0
    %4883 = vmatpush1.msra.mxu0 0.0
    %4884 = vmatprep.subr.mxu0 0.0
    %4885 = vmatpush1.msra.mxu0 0.0
    %4886 = vmatprep.subr.mxu0 0.0
    %4887 = vmatpush1.msra.mxu0 0.0
    %4888 = vmatprep.subr.mxu0 0.0
    %4889 = vmatpush1.msra.mxu0 0.0
    %4890 = vmatprep.subr.mxu0 0.0
    %4891 = vmatpush1.msra.mxu0 0.0
    %4892 = vmatprep.subr.mxu0 0.0
    %4893 = vmatpush1.msra.mxu0 0.0
    %4894 = vmatprep.subr.mxu0 0.0
    %4895 = vmatpush1.msra.mxu0 0.0
    %4896 = vmatprep.subr.mxu0 0.0
    %4897 = vmatpush1.msra.mxu0 0.0
    %4898 = vmatprep.subr.mxu0 0.0
    %4899 = vmatpush1.msra.mxu0 0.0
    %4900 = vmatprep.subr.mxu0 0.0
    %4901 = vmatpush1.msra.mxu0 0.0
    %4902 = vmatprep.subr.mxu0 0.0
    %4903 = vmatpush1.msra.mxu0 0.0
    %4904 = vmatprep.subr.mxu0 0.0
    %4905 = vmatpush1.msra.mxu0 0.0
    %4906 = vmatprep.subr.mxu0 0.0
    %4907 = vmatpush1.msra.mxu0 0.0
    %4908 = vmatprep.subr.mxu0 0.0
    %4909 = vmatpush1.msra.mxu0 0.0
    %4910 = vmatprep.subr.mxu0 0.0
    %4911 = vmatpush1.msra.mxu0 0.0
    %4912 = vmatprep.subr.mxu0 0.0
    %4913 = vmatpush1.msra.mxu0 0.0
    %4914 = vmatprep.subr.mxu0 0.0
    %4915 = vmatpush1.msra.mxu0 0.0
    %4916 = vmatprep.subr.mxu0 0.0
    %4917 = vmatpush1.msra.mxu0 0.0
    %4918 = vmatprep.subr.mxu0 0.0
    %4919 = vmatpush1.msra.mxu0 0.0
    %4920 = vmatprep.subr.mxu0 0.0
    %4921 = vmatpush1.msra.mxu0 0.0
    %4922 = vmatprep.subr.mxu0 0.0
    %4923 = vmatpush1.msra.mxu0 0.0
    %4924 = vmatprep.subr.mxu0 0.0
    %4925 = vmatpush1.msra.mxu0 0.0
    %4926 = vmatprep.subr.mxu0 0.0
    %4927 = vmatpush1.msra.mxu0 0.0
    %4928 = vmatprep.mubr.f32.mxu0 0.0
    %v4929 = vand.u32 %v4858, 4294901760
    %v4930 = vsub.f32 %v4858, %v4929
    %v4931 = vand.u32 %v4930, 4294901760
    %v4932 = vsub.f32 %v4930, %v4931
    %v4933 = vand.u32 %v4932, 4294901760
    %4934 = vmatmul.mubr.f32.gmra.mrb[0].mxu0 %v4933
    %v4935 = vpop.f32.mrb[0].mxu0
    %v4936 = vadd.f32 0.0, %v4935
    %v4937 = vpop.f32.mrb[0].mxu0
    %4938 = vdwg.mxu0
    %4939 = vmatprep.subr.mxu0 0.0
    %v4940 = vand.u32 %v1115, 4294901760
    %v4941 = vsub.f32 %v1115, %v4940
    %v4942 = vand.u32 %v4941, 4294901760
    %v4943 = vsub.f32 %v4941, %v4942
    %v4944 = vand.u32 %v4943, 4294901760
    %4945 = vmatpush1.msra.mxu0 %v4944
    %4946 = vmatprep.subr.mxu0 0.0
    %v4947 = vand.u32 %v1116, 4294901760
    %v4948 = vsub.f32 %v1116, %v4947
    %v4949 = vand.u32 %v4948, 4294901760
    %v4950 = vsub.f32 %v4948, %v4949
    %v4951 = vand.u32 %v4950, 4294901760
    %4952 = vmatpush1.msra.mxu0 %v4951
    %4953 = vmatprep.subr.mxu0 0.0
    %v4954 = vand.u32 %v1117, 4294901760
    %v4955 = vsub.f32 %v1117, %v4954
    %v4956 = vand.u32 %v4955, 4294901760
    %v4957 = vsub.f32 %v4955, %v4956
    %v4958 = vand.u32 %v4957, 4294901760
    %4959 = vmatpush1.msra.mxu0 %v4958
    %4960 = vmatprep.subr.mxu0 0.0
    %v4961 = vand.u32 %v1118, 4294901760
    %v4962 = vsub.f32 %v1118, %v4961
    %v4963 = vand.u32 %v4962, 4294901760
    %v4964 = vsub.f32 %v4962, %v4963
    %v4965 = vand.u32 %v4964, 4294901760
    %4966 = vmatpush1.msra.mxu0 %v4965
    %4967 = vmatprep.subr.mxu0 0.0
    %4968 = vmatpush1.msra.mxu0 0.0
    %4969 = vmatprep.subr.mxu0 0.0
    %4970 = vmatpush1.msra.mxu0 0.0
    %4971 = vmatprep.subr.mxu0 0.0
    %4972 = vmatpush1.msra.mxu0 0.0
    %4973 = vmatprep.subr.mxu0 0.0
    %4974 = vmatpush1.msra.mxu0 0.0
    %4975 = vmatprep.subr.mxu0 0.0
    %4976 = vmatpush1.msra.mxu0 0.0
    %4977 = vmatprep.subr.mxu0 0.0
    %4978 = vmatpush1.msra.mxu0 0.0
    %4979 = vmatprep.subr.mxu0 0.0
    %4980 = vmatpush1.msra.mxu0 0.0
    %4981 = vmatprep.subr.mxu0 0.0
    %4982 = vmatpush1.msra.mxu0 0.0
    %4983 = vmatprep.subr.mxu0 0.0
    %4984 = vmatpush1.msra.mxu0 0.0
    %4985 = vmatprep.subr.mxu0 0.0
    %4986 = vmatpush1.msra.mxu0 0.0
    %4987 = vmatprep.subr.mxu0 0.0
    %4988 = vmatpush1.msra.mxu0 0.0
    %4989 = vmatprep.subr.mxu0 0.0
    %4990 = vmatpush1.msra.mxu0 0.0
    %4991 = vmatprep.subr.mxu0 0.0
    %4992 = vmatpush1.msra.mxu0 0.0
    %4993 = vmatprep.subr.mxu0 0.0
    %4994 = vmatpush1.msra.mxu0 0.0
    %4995 = vmatprep.subr.mxu0 0.0
    %4996 = vmatpush1.msra.mxu0 0.0
    %4997 = vmatprep.subr.mxu0 0.0
    %4998 = vmatpush1.msra.mxu0 0.0
    %4999 = vmatprep.subr.mxu0 0.0
    %5000 = vmatpush1.msra.mxu0 0.0
    %5001 = vmatprep.subr.mxu0 0.0
    %5002 = vmatpush1.msra.mxu0 0.0
    %5003 = vmatprep.subr.mxu0 0.0
    %5004 = vmatpush1.msra.mxu0 0.0
    %5005 = vmatprep.subr.mxu0 0.0
    %5006 = vmatpush1.msra.mxu0 0.0
    %5007 = vmatprep.subr.mxu0 0.0
    %5008 = vmatpush1.msra.mxu0 0.0
    %5009 = vmatprep.subr.mxu0 0.0
    %5010 = vmatpush1.msra.mxu0 0.0
    %5011 = vmatprep.subr.mxu0 0.0
    %5012 = vmatpush1.msra.mxu0 0.0
    %5013 = vmatprep.subr.mxu0 0.0
    %5014 = vmatpush1.msra.mxu0 0.0
    %5015 = vmatprep.subr.mxu0 0.0
    %5016 = vmatpush1.msra.mxu0 0.0
    %5017 = vmatprep.subr.mxu0 0.0
    %5018 = vmatpush1.msra.mxu0 0.0
    %5019 = vmatprep.subr.mxu0 0.0
    %5020 = vmatpush1.msra.mxu0 0.0
    %5021 = vmatprep.subr.mxu0 0.0
    %5022 = vmatpush1.msra.mxu0 0.0
    %5023 = vmatprep.mubr.f32.mxu0 0.0
    %v5024 = vand.u32 %v4858, 4294901760
    %5025 = vmatmul.mubr.f32.gmra.mrb[0].mxu0 %v5024
    %v5026 = vpop.f32.mrb[0].mxu0
    %v5027 = vadd.f32 %v4936, %v5026
    %v5028 = vpop.f32.mrb[0].mxu0
    %5029 = vdwg.mxu0
    %5030 = vmatprep.subr.mxu0 0.0
    %v5031 = vand.u32 %v1115, 4294901760
    %v5032 = vsub.f32 %v1115, %v5031
    %5033 = vmatpush1.msra.mxu0 %v5032
    %5034 = vmatprep.subr.mxu0 0.0
    %v5035 = vand.u32 %v1116, 4294901760
    %v5036 = vsub.f32 %v1116, %v5035
    %5037 = vmatpush1.msra.mxu0 %v5036
    %5038 = vmatprep.subr.mxu0 0.0
    %v5039 = vand.u32 %v1117, 4294901760
    %v5040 = vsub.f32 %v1117, %v5039
    %5041 = vmatpush1.msra.mxu0 %v5040
    %5042 = vmatprep.subr.mxu0 0.0
    %v5043 = vand.u32 %v1118, 4294901760
    %v5044 = vsub.f32 %v1118, %v5043
    %5045 = vmatpush1.msra.mxu0 %v5044
    %5046 = vmatprep.subr.mxu0 0.0
    %5047 = vmatpush1.msra.mxu0 0.0
    %5048 = vmatprep.subr.mxu0 0.0
    %5049 = vmatpush1.msra.mxu0 0.0
    %5050 = vmatprep.subr.mxu0 0.0
    %5051 = vmatpush1.msra.mxu0 0.0
    %5052 = vmatprep.subr.mxu0 0.0
    %5053 = vmatpush1.msra.mxu0 0.0
    %5054 = vmatprep.subr.mxu0 0.0
    %5055 = vmatpush1.msra.mxu0 0.0
    %5056 = vmatprep.subr.mxu0 0.0
    %5057 = vmatpush1.msra.mxu0 0.0
    %5058 = vmatprep.subr.mxu0 0.0
    %5059 = vmatpush1.msra.mxu0 0.0
    %5060 = vmatprep.subr.mxu0 0.0
    %5061 = vmatpush1.msra.mxu0 0.0
    %5062 = vmatprep.subr.mxu0 0.0
    %5063 = vmatpush1.msra.mxu0 0.0
    %5064 = vmatprep.subr.mxu0 0.0
    %5065 = vmatpush1.msra.mxu0 0.0
    %5066 = vmatprep.subr.mxu0 0.0
    %5067 = vmatpush1.msra.mxu0 0.0
    %5068 = vmatprep.subr.mxu0 0.0
    %5069 = vmatpush1.msra.mxu0 0.0
    %5070 = vmatprep.subr.mxu0 0.0
    %5071 = vmatpush1.msra.mxu0 0.0
    %5072 = vmatprep.subr.mxu0 0.0
    %5073 = vmatpush1.msra.mxu0 0.0
    %5074 = vmatprep.subr.mxu0 0.0
    %5075 = vmatpush1.msra.mxu0 0.0
    %5076 = vmatprep.subr.mxu0 0.0
    %5077 = vmatpush1.msra.mxu0 0.0
    %5078 = vmatprep.subr.mxu0 0.0
    %5079 = vmatpush1.msra.mxu0 0.0
    %5080 = vmatprep.subr.mxu0 0.0
    %5081 = vmatpush1.msra.mxu0 0.0
    %5082 = vmatprep.subr.mxu0 0.0
    %5083 = vmatpush1.msra.mxu0 0.0
    %5084 = vmatprep.subr.mxu0 0.0
    %5085 = vmatpush1.msra.mxu0 0.0
    %5086 = vmatprep.subr.mxu0 0.0
    %5087 = vmatpush1.msra.mxu0 0.0
    %5088 = vmatprep.subr.mxu0 0.0
    %5089 = vmatpush1.msra.mxu0 0.0
    %5090 = vmatprep.subr.mxu0 0.0
    %5091 = vmatpush1.msra.mxu0 0.0
    %5092 = vmatprep.subr.mxu0 0.0
    %5093 = vmatpush1.msra.mxu0 0.0
    %5094 = vmatprep.subr.mxu0 0.0
    %5095 = vmatpush1.msra.mxu0 0.0
    %5096 = vmatprep.subr.mxu0 0.0
    %5097 = vmatpush1.msra.mxu0 0.0
    %5098 = vmatprep.subr.mxu0 0.0
    %5099 = vmatpush1.msra.mxu0 0.0
    %5100 = vmatprep.subr.mxu0 0.0
    %5101 = vmatpush1.msra.mxu0 0.0
    %5102 = vmatprep.mubr.f32.mxu0 0.0
    %v5103 = vand.u32 %v4858, 4294901760
    %v5104 = vsub.f32 %v4858, %v5103
    %5105 = vmatmul.mubr.f32.gmra.mrb[0].mxu0 %v5104
    %v5106 = vpop.f32.mrb[0].mxu0
    %v5107 = vadd.f32 %v5027, %v5106
    %v5108 = vpop.f32.mrb[0].mxu0
    %5109 = vdwg.mxu0
    %5110 = vmatprep.subr.mxu0 0.0
    %v5111 = vand.u32 %v1115, 4294901760
    %5112 = vmatpush1.msra.mxu0 %v5111
    %5113 = vmatprep.subr.mxu0 0.0
    %v5114 = vand.u32 %v1116, 4294901760
    %5115 = vmatpush1.msra.mxu0 %v5114
    %5116 = vmatprep.subr.mxu0 0.0
    %v5117 = vand.u32 %v1117, 4294901760
    %5118 = vmatpush1.msra.mxu0 %v5117
    %5119 = vmatprep.subr.mxu0 0.0
    %v5120 = vand.u32 %v1118, 4294901760
    %5121 = vmatpush1.msra.mxu0 %v5120
    %5122 = vmatprep.subr.mxu0 0.0
    %5123 = vmatpush1.msra.mxu0 0.0
    %5124 = vmatprep.subr.mxu0 0.0
    %5125 = vmatpush1.msra.mxu0 0.0
    %5126 = vmatprep.subr.mxu0 0.0
    %5127 = vmatpush1.msra.mxu0 0.0
    %5128 = vmatprep.subr.mxu0 0.0
    %5129 = vmatpush1.msra.mxu0 0.0
    %5130 = vmatprep.subr.mxu0 0.0
    %5131 = vmatpush1.msra.mxu0 0.0
    %5132 = vmatprep.subr.mxu0 0.0
    %5133 = vmatpush1.msra.mxu0 0.0
    %5134 = vmatprep.subr.mxu0 0.0
    %5135 = vmatpush1.msra.mxu0 0.0
    %5136 = vmatprep.subr.mxu0 0.0
    %5137 = vmatpush1.msra.mxu0 0.0
    %5138 = vmatprep.subr.mxu0 0.0
    %5139 = vmatpush1.msra.mxu0 0.0
    %5140 = vmatprep.subr.mxu0 0.0
    %5141 = vmatpush1.msra.mxu0 0.0
    %5142 = vmatprep.subr.mxu0 0.0
    %5143 = vmatpush1.msra.mxu0 0.0
    %5144 = vmatprep.subr.mxu0 0.0
    %5145 = vmatpush1.msra.mxu0 0.0
    %5146 = vmatprep.subr.mxu0 0.0
    %5147 = vmatpush1.msra.mxu0 0.0
    %5148 = vmatprep.subr.mxu0 0.0
    %5149 = vmatpush1.msra.mxu0 0.0
    %5150 = vmatprep.subr.mxu0 0.0
    %5151 = vmatpush1.msra.mxu0 0.0
    %5152 = vmatprep.subr.mxu0 0.0
    %5153 = vmatpush1.msra.mxu0 0.0
    %5154 = vmatprep.subr.mxu0 0.0
    %5155 = vmatpush1.msra.mxu0 0.0
    %5156 = vmatprep.subr.mxu0 0.0
    %5157 = vmatpush1.msra.mxu0 0.0
    %5158 = vmatprep.subr.mxu0 0.0
    %5159 = vmatpush1.msra.mxu0 0.0
    %5160 = vmatprep.subr.mxu0 0.0
    %5161 = vmatpush1.msra.mxu0 0.0
    %5162 = vmatprep.subr.mxu0 0.0
    %5163 = vmatpush1.msra.mxu0 0.0
    %5164 = vmatprep.subr.mxu0 0.0
    %5165 = vmatpush1.msra.mxu0 0.0
    %5166 = vmatprep.subr.mxu0 0.0
    %5167 = vmatpush1.msra.mxu0 0.0
    %5168 = vmatprep.subr.mxu0 0.0
    %5169 = vmatpush1.msra.mxu0 0.0
    %5170 = vmatprep.subr.mxu0 0.0
    %5171 = vmatpush1.msra.mxu0 0.0
    %5172 = vmatprep.subr.mxu0 0.0
    %5173 = vmatpush1.msra.mxu0 0.0
    %5174 = vmatprep.subr.mxu0 0.0
    %5175 = vmatpush1.msra.mxu0 0.0
    %5176 = vmatprep.subr.mxu0 0.0
    %5177 = vmatpush1.msra.mxu0 0.0
    %5178 = vmatprep.mubr.f32.mxu0 0.0
    %v5179 = vand.u32 %v4858, 4294901760
    %v5180 = vsub.f32 %v4858, %v5179
    %v5181 = vand.u32 %v5180, 4294901760
    %5182 = vmatmul.mubr.f32.gmra.mrb[0].mxu0 %v5181
    %v5183 = vpop.f32.mrb[0].mxu0
    %v5184 = vadd.f32 %v5107, %v5183
    %v5185 = vpop.f32.mrb[0].mxu0
    %5186 = vdwg.mxu0
    %5187 = vmatprep.subr.mxu0 0.0
    %v5188 = vand.u32 %v1115, 4294901760
    %v5189 = vsub.f32 %v1115, %v5188
    %v5190 = vand.u32 %v5189, 4294901760
    %5191 = vmatpush1.msra.mxu0 %v5190
    %5192 = vmatprep.subr.mxu0 0.0
    %v5193 = vand.u32 %v1116, 4294901760
    %v5194 = vsub.f32 %v1116, %v5193
    %v5195 = vand.u32 %v5194, 4294901760
    %5196 = vmatpush1.msra.mxu0 %v5195
    %5197 = vmatprep.subr.mxu0 0.0
    %v5198 = vand.u32 %v1117, 4294901760
    %v5199 = vsub.f32 %v1117, %v5198
    %v5200 = vand.u32 %v5199, 4294901760
    %5201 = vmatpush1.msra.mxu0 %v5200
    %5202 = vmatprep.subr.mxu0 0.0
    %v5203 = vand.u32 %v1118, 4294901760
    %v5204 = vsub.f32 %v1118, %v5203
    %v5205 = vand.u32 %v5204, 4294901760
    %5206 = vmatpush1.msra.mxu0 %v5205
    %5207 = vmatprep.subr.mxu0 0.0
    %5208 = vmatpush1.msra.mxu0 0.0
    %5209 = vmatprep.subr.mxu0 0.0
    %5210 = vmatpush1.msra.mxu0 0.0
    %5211 = vmatprep.subr.mxu0 0.0
    %5212 = vmatpush1.msra.mxu0 0.0
    %5213 = vmatprep.subr.mxu0 0.0
    %5214 = vmatpush1.msra.mxu0 0.0
    %5215 = vmatprep.subr.mxu0 0.0
    %5216 = vmatpush1.msra.mxu0 0.0
    %5217 = vmatprep.subr.mxu0 0.0
    %5218 = vmatpush1.msra.mxu0 0.0
    %5219 = vmatprep.subr.mxu0 0.0
    %5220 = vmatpush1.msra.mxu0 0.0
    %5221 = vmatprep.subr.mxu0 0.0
    %5222 = vmatpush1.msra.mxu0 0.0
    %5223 = vmatprep.subr.mxu0 0.0
    %5224 = vmatpush1.msra.mxu0 0.0
    %5225 = vmatprep.subr.mxu0 0.0
    %5226 = vmatpush1.msra.mxu0 0.0
    %5227 = vmatprep.subr.mxu0 0.0
    %5228 = vmatpush1.msra.mxu0 0.0
    %5229 = vmatprep.subr.mxu0 0.0
    %5230 = vmatpush1.msra.mxu0 0.0
    %5231 = vmatprep.subr.mxu0 0.0
    %5232 = vmatpush1.msra.mxu0 0.0
    %5233 = vmatprep.subr.mxu0 0.0
    %5234 = vmatpush1.msra.mxu0 0.0
    %5235 = vmatprep.subr.mxu0 0.0
    %5236 = vmatpush1.msra.mxu0 0.0
    %5237 = vmatprep.subr.mxu0 0.0
    %5238 = vmatpush1.msra.mxu0 0.0
    %5239 = vmatprep.subr.mxu0 0.0
    %5240 = vmatpush1.msra.mxu0 0.0
    %5241 = vmatprep.subr.mxu0 0.0
    %5242 = vmatpush1.msra.mxu0 0.0
    %5243 = vmatprep.subr.mxu0 0.0
    %5244 = vmatpush1.msra.mxu0 0.0
    %5245 = vmatprep.subr.mxu0 0.0
    %5246 = vmatpush1.msra.mxu0 0.0
    %5247 = vmatprep.subr.mxu0 0.0
    %5248 = vmatpush1.msra.mxu0 0.0
    %5249 = vmatprep.subr.mxu0 0.0
    %5250 = vmatpush1.msra.mxu0 0.0
    %5251 = vmatprep.subr.mxu0 0.0
    %5252 = vmatpush1.msra.mxu0 0.0
    %5253 = vmatprep.subr.mxu0 0.0
    %5254 = vmatpush1.msra.mxu0 0.0
    %5255 = vmatprep.subr.mxu0 0.0
    %5256 = vmatpush1.msra.mxu0 0.0
    %5257 = vmatprep.subr.mxu0 0.0
    %5258 = vmatpush1.msra.mxu0 0.0
    %5259 = vmatprep.subr.mxu0 0.0
    %5260 = vmatpush1.msra.mxu0 0.0
    %5261 = vmatprep.subr.mxu0 0.0
    %5262 = vmatpush1.msra.mxu0 0.0
    %5263 = vmatprep.mubr.f32.mxu0 0.0
    %v5264 = vand.u32 %v4858, 4294901760
    %5265 = vmatmul.mubr.f32.gmra.mrb[0].mxu0 %v5264
    %v5266 = vpop.f32.mrb[0].mxu0
    %v5267 = vadd.f32 %v5184, %v5266
    %v5268 = vpop.f32.mrb[0].mxu0
    %5269 = vdwg.mxu0
    %5270 = vmatprep.subr.mxu0 0.0
    %v5271 = vand.u32 %v1115, 4294901760
    %5272 = vmatpush1.msra.mxu0 %v5271
    %5273 = vmatprep.subr.mxu0 0.0
    %v5274 = vand.u32 %v1116, 4294901760
    %5275 = vmatpush1.msra.mxu0 %v5274
    %5276 = vmatprep.subr.mxu0 0.0
    %v5277 = vand.u32 %v1117, 4294901760
    %5278 = vmatpush1.msra.mxu0 %v5277
    %5279 = vmatprep.subr.mxu0 0.0
    %v5280 = vand.u32 %v1118, 4294901760
    %5281 = vmatpush1.msra.mxu0 %v5280
    %5282 = vmatprep.subr.mxu0 0.0
    %5283 = vmatpush1.msra.mxu0 0.0
    %5284 = vmatprep.subr.mxu0 0.0
    %5285 = vmatpush1.msra.mxu0 0.0
    %5286 = vmatprep.subr.mxu0 0.0
    %5287 = vmatpush1.msra.mxu0 0.0
    %5288 = vmatprep.subr.mxu0 0.0
    %5289 = vmatpush1.msra.mxu0 0.0
    %5290 = vmatprep.subr.mxu0 0.0
    %5291 = vmatpush1.msra.mxu0 0.0
    %5292 = vmatprep.subr.mxu0 0.0
    %5293 = vmatpush1.msra.mxu0 0.0
    %5294 = vmatprep.subr.mxu0 0.0
    %5295 = vmatpush1.msra.mxu0 0.0
    %5296 = vmatprep.subr.mxu0 0.0
    %5297 = vmatpush1.msra.mxu0 0.0
    %5298 = vmatprep.subr.mxu0 0.0
    %5299 = vmatpush1.msra.mxu0 0.0
    %5300 = vmatprep.subr.mxu0 0.0
    %5301 = vmatpush1.msra.mxu0 0.0
    %5302 = vmatprep.subr.mxu0 0.0
    %5303 = vmatpush1.msra.mxu0 0.0
    %5304 = vmatprep.subr.mxu0 0.0
    %5305 = vmatpush1.msra.mxu0 0.0
    %5306 = vmatprep.subr.mxu0 0.0
    %5307 = vmatpush1.msra.mxu0 0.0
    %5308 = vmatprep.subr.mxu0 0.0
    %5309 = vmatpush1.msra.mxu0 0.0
    %5310 = vmatprep.subr.mxu0 0.0
    %5311 = vmatpush1.msra.mxu0 0.0
    %5312 = vmatprep.subr.mxu0 0.0
    %5313 = vmatpush1.msra.mxu0 0.0
    %5314 = vmatprep.subr.mxu0 0.0
    %5315 = vmatpush1.msra.mxu0 0.0
    %5316 = vmatprep.subr.mxu0 0.0
    %5317 = vmatpush1.msra.mxu0 0.0
    %5318 = vmatprep.subr.mxu0 0.0
    %5319 = vmatpush1.msra.mxu0 0.0
    %5320 = vmatprep.subr.mxu0 0.0
    %5321 = vmatpush1.msra.mxu0 0.0
    %5322 = vmatprep.subr.mxu0 0.0
    %5323 = vmatpush1.msra.mxu0 0.0
    %5324 = vmatprep.subr.mxu0 0.0
    %5325 = vmatpush1.msra.mxu0 0.0
    %5326 = vmatprep.subr.mxu0 0.0
    %5327 = vmatpush1.msra.mxu0 0.0
    %5328 = vmatprep.subr.mxu0 0.0
    %5329 = vmatpush1.msra.mxu0 0.0
    %5330 = vmatprep.subr.mxu0 0.0
    %5331 = vmatpush1.msra.mxu0 0.0
    %5332 = vmatprep.subr.mxu0 0.0
    %5333 = vmatpush1.msra.mxu0 0.0
    %5334 = vmatprep.subr.mxu0 0.0
    %5335 = vmatpush1.msra.mxu0 0.0
    %5336 = vmatprep.subr.mxu0 0.0
    %5337 = vmatpush1.msra.mxu0 0.0
    %5338 = vmatprep.mubr.f32.mxu0 0.0
    %v5339 = vand.u32 %v4858, 4294901760
    %5340 = vmatmul.mubr.f32.gmra.mrb[0].mxu0 %v5339
    %v5341 = vpop.f32.mrb[0].mxu0
    %v5342 = vadd.f32 %v5267, %v5341
    %v5343 = vpop.f32.mrb[0].mxu0
    %5344 = vdwg.mxu0
    %v5346 = vrot.slane %v5342, 1
    %v5347 = vrot.slane %v5342, 2
    %v5350 = vadd.f32 %v1113, %v5346
    %v5351 = vadd.f32 %v1114, %v5347
    %v5352 = vmul.f32 %v5350, 0.5
    %v5353 = vmul.f32 %v5351, 0.5
    %v5356 = vrot.slane %v5350, 7
    %v5357 = vrot.slane %v5351, 6
    %v5358 = vsel %vm1626, %v5357, %v5356
    %v5362 = vrot.slane %v5352, 7
    %v5363 = vrot.slane %v5353, 6
    %v5364 = vsel %vm1626, %v5363, %v5362
    %v5366 = vsel %vm1123, %v5358, %v5364
    %v5367 = vtanh.pop %v5366
    %v5368 = vadd.f32 %v5367, 1.0
    %v5369 = vmul.f32 %v5368, 0.5
    %v5370 = vsel %vm1123, %v5367, %v5369
    %v5371 = vmul.f32 %v5370, %v4848
    %5373 = vrot.lane.b32.xlu0 %v5370, 64
    %v5374 = vpop.permute.xlu0 %5373
    %v5376 = vmul.f32 %v5370, %v5374
    %5378 = vrot.lane.b32.xlu0 %v5376, 32
    %v5379 = vpop.permute.xlu0 %5378
    %v5381 = vadd.f32 %v5371, %v5379
    %v5382 = vtanh.pop %v5381
    %5384 = vrot.lane.b32.xlu0 %v5382, 64
    %v5385 = vpop.permute.xlu0 %5384
    %v5387 = vmul.f32 %v5370, %v5385
    %v5389 = vunpack.c.l.s4 1966171168
    %v5390 = vunpack.c.0.s8 %v5389
    %v5391 = vlaneseq
    %v5392 = vshrl.u32 %v5391, 7
    %v5393 = vsub.s32 %v5390, %v5392
    %v5394 = vrot.slane %v1659, %v5393
    %v5395 = vcombine.high %v5394, %v5394
    %v5397 = vunpack.c.l.s4 1966171168
    %v5398 = vunpack.c.0.s8 %v5397
    %v5399 = vlaneseq
    %v5400 = vshrl.u32 %v5399, 7
    %v5401 = vsub.s32 %v5398, %v5400
    %v5402 = vrot.slane %v5394, %v5401
    %v5404 = vunpack.c.l.s4 1966171168
    %v5405 = vunpack.c.0.s8 %v5404
    %v5406 = vlaneseq
    %v5407 = vshrl.u32 %v5406, 7
    %v5408 = vsub.s32 %v5405, %v5407
    %v5409 = vrot.slane %v5395, %v5408
    %v5413 = vunpack.c.l.s4 1966171168
    %v5414 = vunpack.c.0.s8 %v5413
    %v5415 = vlaneseq
    %v5416 = vshrl.u32 %v5415, 7
    %v5417 = vsub.s32 %v5414, %v5416
    %v5418 = vrot.slane %v2189, %v5417
    %v5419 = vcombine.high %v5418, %v5418
    %v5421 = vunpack.c.l.s4 1966171168
    %v5422 = vunpack.c.0.s8 %v5421
    %v5423 = vlaneseq
    %v5424 = vshrl.u32 %v5423, 7
    %v5425 = vsub.s32 %v5422, %v5424
    %v5426 = vrot.slane %v5418, %v5425
    %v5428 = vunpack.c.l.s4 1966171168
    %v5429 = vunpack.c.0.s8 %v5428
    %v5430 = vlaneseq
    %v5431 = vshrl.u32 %v5430, 7
    %v5432 = vsub.s32 %v5429, %v5431
    %v5433 = vrot.slane %v5419, %v5432
    %v5435 = vunpack.c.l.s4 1966171168
    %v5436 = vunpack.c.0.s8 %v5435
    %v5437 = vlaneseq
    %v5438 = vshrl.u32 %v5437, 7
    %v5439 = vsub.s32 %v5436, %v5438
    %v5440 = vrot.slane %v2722, %v5439
    %v5441 = vcombine.high %v5440, %v5440
    %v5443 = vunpack.c.l.s4 1966171168
    %v5444 = vunpack.c.0.s8 %v5443
    %v5445 = vlaneseq
    %v5446 = vshrl.u32 %v5445, 7
    %v5447 = vsub.s32 %v5444, %v5446
    %v5448 = vrot.slane %v5440, %v5447
    %v5450 = vunpack.c.l.s4 1966171168
    %v5451 = vunpack.c.0.s8 %v5450
    %v5452 = vlaneseq
    %v5453 = vshrl.u32 %v5452, 7
    %v5454 = vsub.s32 %v5451, %v5453
    %v5455 = vrot.slane %v5441, %v5454
    %v5457 = vunpack.c.l.s4 1966171168
    %v5458 = vunpack.c.0.s8 %v5457
    %v5459 = vlaneseq
    %v5460 = vshrl.u32 %v5459, 7
    %v5461 = vsub.s32 %v5458, %v5460
    %v5462 = vrot.slane %v3255, %v5461
    %v5463 = vcombine.high %v5462, %v5462
    %v5465 = vunpack.c.l.s4 1966171168
    %v5466 = vunpack.c.0.s8 %v5465
    %v5467 = vlaneseq
    %v5468 = vshrl.u32 %v5467, 7
    %v5469 = vsub.s32 %v5466, %v5468
    %v5470 = vrot.slane %v5462, %v5469
    %v5472 = vunpack.c.l.s4 1966171168
    %v5473 = vunpack.c.0.s8 %v5472
    %v5474 = vlaneseq
    %v5475 = vshrl.u32 %v5474, 7
    %v5476 = vsub.s32 %v5473, %v5475
    %v5477 = vrot.slane %v5463, %v5476
    %v5479 = vunpack.c.l.s4 1966171168
    %v5480 = vunpack.c.0.s8 %v5479
    %v5481 = vlaneseq
    %v5482 = vshrl.u32 %v5481, 7
    %v5483 = vsub.s32 %v5480, %v5482
    %v5484 = vrot.slane %v3788, %v5483
    %v5485 = vcombine.high %v5484, %v5484
    %v5487 = vunpack.c.l.s4 1966171168
    %v5488 = vunpack.c.0.s8 %v5487
    %v5489 = vlaneseq
    %v5490 = vshrl.u32 %v5489, 7
    %v5491 = vsub.s32 %v5488, %v5490
    %v5492 = vrot.slane %v5484, %v5491
    %v5494 = vunpack.c.l.s4 1966171168
    %v5495 = vunpack.c.0.s8 %v5494
    %v5496 = vlaneseq
    %v5497 = vshrl.u32 %v5496, 7
    %v5498 = vsub.s32 %v5495, %v5497
    %v5499 = vrot.slane %v5485, %v5498
    %v5501 = vunpack.c.l.s4 1966171168
    %v5502 = vunpack.c.0.s8 %v5501
    %v5503 = vlaneseq
    %v5504 = vshrl.u32 %v5503, 7
    %v5505 = vsub.s32 %v5502, %v5504
    %v5506 = vrot.slane %v4321, %v5505
    %v5507 = vcombine.high %v5506, %v5506
    %v5509 = vunpack.c.l.s4 1966171168
    %v5510 = vunpack.c.0.s8 %v5509
    %v5511 = vlaneseq
    %v5512 = vshrl.u32 %v5511, 7
    %v5513 = vsub.s32 %v5510, %v5512
    %v5514 = vrot.slane %v5506, %v5513
    %v5516 = vunpack.c.l.s4 1966171168
    %v5517 = vunpack.c.0.s8 %v5516
    %v5518 = vlaneseq
    %v5519 = vshrl.u32 %v5518, 7
    %v5520 = vsub.s32 %v5517, %v5519
    %v5521 = vrot.slane %v5507, %v5520
    %v5523 = vunpack.c.l.s4 1966171168
    %v5524 = vunpack.c.0.s8 %v5523
    %v5525 = vlaneseq
    %v5526 = vshrl.u32 %v5525, 7
    %v5527 = vsub.s32 %v5524, %v5526
    %v5528 = vrot.slane %v4854, %v5527
    %v5529 = vcombine.high %v5528, %v5528
    %v5531 = vunpack.c.l.s4 1966171168
    %v5532 = vunpack.c.0.s8 %v5531
    %v5533 = vlaneseq
    %v5534 = vshrl.u32 %v5533, 7
    %v5535 = vsub.s32 %v5532, %v5534
    %v5536 = vrot.slane %v5528, %v5535
    %v5538 = vunpack.c.l.s4 1966171168
    %v5539 = vunpack.c.0.s8 %v5538
    %v5540 = vlaneseq
    %v5541 = vshrl.u32 %v5540, 7
    %v5542 = vsub.s32 %v5539, %v5541
    %v5543 = vrot.slane %v5529, %v5542
    %v5546 = vunpack.c.l.s4 1966171168
    %v5547 = vunpack.c.0.s8 %v5546
    %v5548 = vlaneseq
    %v5549 = vshrl.u32 %v5548, 7
    %v5550 = vsub.s32 %v5547, %v5549
    %v5551 = vrot.slane %v5387, %v5550
    %v5552 = vcombine.high %v5551, %v5551
    %v5554 = vunpack.c.l.s4 1966171168
    %v5555 = vunpack.c.0.s8 %v5554
    %v5556 = vlaneseq
    %v5557 = vshrl.u32 %v5556, 7
    %v5558 = vsub.s32 %v5555, %v5557
    %v5559 = vrot.slane %v5551, %v5558
    %v5561 = vunpack.c.l.s4 1966171168
    %v5562 = vunpack.c.0.s8 %v5561
    %v5563 = vlaneseq
    %v5564 = vshrl.u32 %v5563, 7
    %v5565 = vsub.s32 %v5562, %v5564
    %v5566 = vrot.slane %v5552, %v5565
    %v5567 = vlaneseq
    %v5568 = vshrl.u32 %v5567, 7
    %v5569 = vsub.s32 0, %v5568
    %v5570 = vrot.slane %v5426, %v5569
    %v5571 = vlaneseq
    %v5572 = vshrl.u32 %v5571, 7
    %v5573 = vsub.s32 0, %v5572
    %v5574 = vrot.slane %v5433, %v5573
    %v5577 = vlaneseq
    %v5578 = vshrl.u32 %v5577, 7
    %v5579 = vsub.s32 0, %v5578
    %v5580 = vrot.slane %v5448, %v5579
    %v5581 = vlaneseq
    %v5582 = vshrl.u32 %v5581, 7
    %v5583 = vsub.s32 0, %v5582
    %v5584 = vrot.slane %v5455, %v5583
    %v5587 = vlaneseq
    %v5588 = vshrl.u32 %v5587, 7
    %v5589 = vsub.s32 0, %v5588
    %v5590 = vrot.slane %v5470, %v5589
    %v5591 = vlaneseq
    %v5592 = vshrl.u32 %v5591, 7
    %v5593 = vsub.s32 0, %v5592
    %v5594 = vrot.slane %v5477, %v5593
    %v5597 = vlaneseq
    %v5598 = vshrl.u32 %v5597, 7
    %v5599 = vsub.s32 0, %v5598
    %v5600 = vrot.slane %v5492, %v5599
    %v5601 = vlaneseq
    %v5602 = vshrl.u32 %v5601, 7
    %v5603 = vsub.s32 0, %v5602
    %v5604 = vrot.slane %v5499, %v5603
    %v5607 = vlaneseq
    %v5608 = vshrl.u32 %v5607, 7
    %v5609 = vsub.s32 0, %v5608
    %v5610 = vrot.slane %v5514, %v5609
    %v5611 = vlaneseq
    %v5612 = vshrl.u32 %v5611, 7
    %v5613 = vsub.s32 0, %v5612
    %v5614 = vrot.slane %v5521, %v5613
    %v5617 = vlaneseq
    %v5618 = vshrl.u32 %v5617, 7
    %v5619 = vsub.s32 0, %v5618
    %v5620 = vrot.slane %v5536, %v5619
    %v5621 = vlaneseq
    %v5622 = vshrl.u32 %v5621, 7
    %v5623 = vsub.s32 0, %v5622
    %v5624 = vrot.slane %v5543, %v5623
    %v5627 = vlaneseq
    %v5628 = vshrl.u32 %v5627, 7
    %v5629 = vsub.s32 0, %v5628
    %v5630 = vrot.slane %v5559, %v5629
    %v5631 = vlaneseq
    %v5632 = vshrl.u32 %v5631, 7
    %v5633 = vsub.s32 0, %v5632
    %v5634 = vrot.slane %v5566, %v5633
    %vm5637 = vcmask 1040384
    %v5638 = vsel %vm5637, %v5402, %v5570
    %v5639 = vsel %vm5637, %v5409, %v5574
    %vm5640 = vcmask 1041408
    %v5641 = vsel %vm5640, %v5638, %v5580
    %v5642 = vsel %vm5640, %v5639, %v5584
    %vm5643 = vcmask 1042432
    %v5644 = vsel %vm5643, %v5641, %v5590
    %v5645 = vsel %vm5643, %v5642, %v5594
    %vm5646 = vcmask 1043456
    %v5647 = vsel %vm5646, %v5644, %v5600
    %v5648 = vsel %vm5646, %v5645, %v5604
    %vm5649 = vcmask 1044480
    %v5650 = vsel %vm5649, %v5647, %v5610
    %v5651 = vsel %vm5649, %v5648, %v5614
    %vm5652 = vcmask 1045504
    %v5653 = vsel %vm5652, %v5650, %v5620
    %v5654 = vsel %vm5652, %v5651, %v5624
    %vm5655 = vcmask 1046528
    %v5656 = vsel %vm5655, %v5653, %v5630
    %v5657 = vsel %vm5655, %v5654, %v5634
    %v5658 = vld [vmem:[%s8] sm:$0xff]
    %v5659 = vld [vmem:[%s8 + $0x8] sm:$0xff]
    %v5660 = vld [vmem:[%s8 + $0x10] sm:$0xff]
    %v5661 = vld [vmem:[%s8 + $0x18] sm:$0xff]
    %v5662 = vld [vmem:[%s9] sm:$0x1]
    %v5664 = vlaneseq
    %v5665 = vshrl.u32 %v5664, 7
    %v5666 = vsub.s32 0, %v5665
    %v5667 = vrot.slane %v5662, %v5666
    %5671 = vrot.lane.b32.xlu0 %v5656, 32
    %v5672 = vpop.permute.xlu0 %5671
    %5673 = vrot.lane.b32.xlu0 %v5657, 32
    %v5674 = vpop.permute.xlu0 %5673
    %v5675 = vsel %vm1126, %v5672, 0
    %v5677 = vsel %vm1126, %v5674, 0
    %5679 = vmatprep.subr.mxu0 0.0
    %v5680 = vand.u32 %v5658, 4294901760
    %5681 = vmatpush1.msra.mxu0 %v5680
    %5682 = vmatprep.subr.mxu0 0.0
    %v5683 = vand.u32 %v5659, 4294901760
    %5684 = vmatpush1.msra.mxu0 %v5683
    %5685 = vmatprep.subr.mxu0 0.0
    %v5686 = vand.u32 %v5660, 4294901760
    %5687 = vmatpush1.msra.mxu0 %v5686
    %5688 = vmatprep.subr.mxu0 0.0
    %v5689 = vand.u32 %v5661, 4294901760
    %5690 = vmatpush1.msra.mxu0 %v5689
    %5691 = vmatprep.subr.mxu0 0.0
    %5692 = vmatpush1.msra.mxu0 0.0
    %5693 = vmatprep.subr.mxu0 0.0
    %5694 = vmatpush1.msra.mxu0 0.0
    %5695 = vmatprep.subr.mxu0 0.0
    %5696 = vmatpush1.msra.mxu0 0.0
    %5697 = vmatprep.subr.mxu0 0.0
    %5698 = vmatpush1.msra.mxu0 0.0
    %5699 = vmatprep.subr.mxu0 0.0
    %5700 = vmatpush1.msra.mxu0 0.0
    %5701 = vmatprep.subr.mxu0 0.0
    %5702 = vmatpush1.msra.mxu0 0.0
    %5703 = vmatprep.subr.mxu0 0.0
    %5704 = vmatpush1.msra.mxu0 0.0
    %5705 = vmatprep.subr.mxu0 0.0
    %5706 = vmatpush1.msra.mxu0 0.0
    %5707 = vmatprep.subr.mxu0 0.0
    %5708 = vmatpush1.msra.mxu0 0.0
    %5709 = vmatprep.subr.mxu0 0.0
    %5710 = vmatpush1.msra.mxu0 0.0
    %5711 = vmatprep.subr.mxu0 0.0
    %5712 = vmatpush1.msra.mxu0 0.0
    %5713 = vmatprep.subr.mxu0 0.0
    %5714 = vmatpush1.msra.mxu0 0.0
    %5715 = vmatprep.subr.mxu0 0.0
    %5716 = vmatpush1.msra.mxu0 0.0
    %5717 = vmatprep.subr.mxu0 0.0
    %5718 = vmatpush1.msra.mxu0 0.0
    %5719 = vmatprep.subr.mxu0 0.0
    %5720 = vmatpush1.msra.mxu0 0.0
    %5721 = vmatprep.subr.mxu0 0.0
    %5722 = vmatpush1.msra.mxu0 0.0
    %5723 = vmatprep.subr.mxu0 0.0
    %5724 = vmatpush1.msra.mxu0 0.0
    %5725 = vmatprep.subr.mxu0 0.0
    %5726 = vmatpush1.msra.mxu0 0.0
    %5727 = vmatprep.subr.mxu0 0.0
    %5728 = vmatpush1.msra.mxu0 0.0
    %5729 = vmatprep.subr.mxu0 0.0
    %5730 = vmatpush1.msra.mxu0 0.0
    %5731 = vmatprep.subr.mxu0 0.0
    %5732 = vmatpush1.msra.mxu0 0.0
    %5733 = vmatprep.subr.mxu0 0.0
    %5734 = vmatpush1.msra.mxu0 0.0
    %5735 = vmatprep.subr.mxu0 0.0
    %5736 = vmatpush1.msra.mxu0 0.0
    %5737 = vmatprep.subr.mxu0 0.0
    %5738 = vmatpush1.msra.mxu0 0.0
    %5739 = vmatprep.subr.mxu0 0.0
    %5740 = vmatpush1.msra.mxu0 0.0
    %5741 = vmatprep.subr.mxu0 0.0
    %5742 = vmatpush1.msra.mxu0 0.0
    %5743 = vmatprep.subr.mxu0 0.0
    %5744 = vmatpush1.msra.mxu0 0.0
    %5745 = vmatprep.subr.mxu0 0.0
    %5746 = vmatpush1.msra.mxu0 0.0
    %5747 = vmatprep.mubr.f32.mxu0 0.0
    %v5748 = vand.u32 %v5675, 4294901760
    %v5749 = vsub.f32 %v5675, %v5748
    %v5750 = vand.u32 %v5749, 4294901760
    %v5751 = vsub.f32 %v5749, %v5750
    %v5752 = vand.u32 %v5751, 4294901760
    %5753 = vmatmul.mubr.f32.gmra.mrb[0].mxu0 %v5752
    %v5754 = vpop.f32.mrb[0].mxu0
    %v5755 = vadd.f32 %v5667, %v5754
    %v5756 = vpop.f32.mrb[0].mxu0
    %5757 = vmatprep.mubr.f32.mxu0 0.0
    %v5758 = vand.u32 %v5677, 4294901760
    %v5759 = vsub.f32 %v5677, %v5758
    %v5760 = vand.u32 %v5759, 4294901760
    %v5761 = vsub.f32 %v5759, %v5760
    %v5762 = vand.u32 %v5761, 4294901760
    %5763 = vmatmul.mubr.f32.gmra.mrb[0].mxu0 %v5762
    %v5764 = vpop.f32.mrb[0].mxu0
    %v5765 = vadd.f32 %v5667, %v5764
    %v5766 = vpop.f32.mrb[0].mxu0
    %5767 = vdwg.mxu0
    %5768 = vmatprep.subr.mxu0 0.0
    %v5769 = vand.u32 %v5658, 4294901760
    %v5770 = vsub.f32 %v5658, %v5769
    %v5771 = vand.u32 %v5770, 4294901760
    %v5772 = vsub.f32 %v5770, %v5771
    %v5773 = vand.u32 %v5772, 4294901760
    %5774 = vmatpush1.msra.mxu0 %v5773
    %5775 = vmatprep.subr.mxu0 0.0
    %v5776 = vand.u32 %v5659, 4294901760
    %v5777 = vsub.f32 %v5659, %v5776
    %v5778 = vand.u32 %v5777, 4294901760
    %v5779 = vsub.f32 %v5777, %v5778
    %v5780 = vand.u32 %v5779, 4294901760
    %5781 = vmatpush1.msra.mxu0 %v5780
    %5782 = vmatprep.subr.mxu0 0.0
    %v5783 = vand.u32 %v5660, 4294901760
    %v5784 = vsub.f32 %v5660, %v5783
    %v5785 = vand.u32 %v5784, 4294901760
    %v5786 = vsub.f32 %v5784, %v5785
    %v5787 = vand.u32 %v5786, 4294901760
    %5788 = vmatpush1.msra.mxu0 %v5787
    %5789 = vmatprep.subr.mxu0 0.0
    %v5790 = vand.u32 %v5661, 4294901760
    %v5791 = vsub.f32 %v5661, %v5790
    %v5792 = vand.u32 %v5791, 4294901760
    %v5793 = vsub.f32 %v5791, %v5792
    %v5794 = vand.u32 %v5793, 4294901760
    %5795 = vmatpush1.msra.mxu0 %v5794
    %5796 = vmatprep.subr.mxu0 0.0
    %5797 = vmatpush1.msra.mxu0 0.0
    %5798 = vmatprep.subr.mxu0 0.0
    %5799 = vmatpush1.msra.mxu0 0.0
    %5800 = vmatprep.subr.mxu0 0.0
    %5801 = vmatpush1.msra.mxu0 0.0
    %5802 = vmatprep.subr.mxu0 0.0
    %5803 = vmatpush1.msra.mxu0 0.0
    %5804 = vmatprep.subr.mxu0 0.0
    %5805 = vmatpush1.msra.mxu0 0.0
    %5806 = vmatprep.subr.mxu0 0.0
    %5807 = vmatpush1.msra.mxu0 0.0
    %5808 = vmatprep.subr.mxu0 0.0
    %5809 = vmatpush1.msra.mxu0 0.0
    %5810 = vmatprep.subr.mxu0 0.0
    %5811 = vmatpush1.msra.mxu0 0.0
    %5812 = vmatprep.subr.mxu0 0.0
    %5813 = vmatpush1.msra.mxu0 0.0
    %5814 = vmatprep.subr.mxu0 0.0
    %5815 = vmatpush1.msra.mxu0 0.0
    %5816 = vmatprep.subr.mxu0 0.0
    %5817 = vmatpush1.msra.mxu0 0.0
    %5818 = vmatprep.subr.mxu0 0.0
    %5819 = vmatpush1.msra.mxu0 0.0
    %5820 = vmatprep.subr.mxu0 0.0
    %5821 = vmatpush1.msra.mxu0 0.0
    %5822 = vmatprep.subr.mxu0 0.0
    %5823 = vmatpush1.msra.mxu0 0.0
    %5824 = vmatprep.subr.mxu0 0.0
    %5825 = vmatpush1.msra.mxu0 0.0
    %5826 = vmatprep.subr.mxu0 0.0
    %5827 = vmatpush1.msra.mxu0 0.0
    %5828 = vmatprep.subr.mxu0 0.0
    %5829 = vmatpush1.msra.mxu0 0.0
    %5830 = vmatprep.subr.mxu0 0.0
    %5831 = vmatpush1.msra.mxu0 0.0
    %5832 = vmatprep.subr.mxu0 0.0
    %5833 = vmatpush1.msra.mxu0 0.0
    %5834 = vmatprep.subr.mxu0 0.0
    %5835 = vmatpush1.msra.mxu0 0.0
    %5836 = vmatprep.subr.mxu0 0.0
    %5837 = vmatpush1.msra.mxu0 0.0
    %5838 = vmatprep.subr.mxu0 0.0
    %5839 = vmatpush1.msra.mxu0 0.0
    %5840 = vmatprep.subr.mxu0 0.0
    %5841 = vmatpush1.msra.mxu0 0.0
    %5842 = vmatprep.subr.mxu0 0.0
    %5843 = vmatpush1.msra.mxu0 0.0
    %5844 = vmatprep.subr.mxu0 0.0
    %5845 = vmatpush1.msra.mxu0 0.0
    %5846 = vmatprep.subr.mxu0 0.0
    %5847 = vmatpush1.msra.mxu0 0.0
    %5848 = vmatprep.subr.mxu0 0.0
    %5849 = vmatpush1.msra.mxu0 0.0
    %5850 = vmatprep.subr.mxu0 0.0
    %5851 = vmatpush1.msra.mxu0 0.0
    %5852 = vmatprep.mubr.f32.mxu0 0.0
    %v5853 = vand.u32 %v5675, 4294901760
    %5854 = vmatmul.mubr.f32.gmra.mrb[0].mxu0 %v5853
    %v5855 = vpop.f32.mrb[0].mxu0
    %v5856 = vadd.f32 %v5755, %v5855
    %v5857 = vpop.f32.mrb[0].mxu0
    %5858 = vmatprep.mubr.f32.mxu0 0.0
    %v5859 = vand.u32 %v5677, 4294901760
    %5860 = vmatmul.mubr.f32.gmra.mrb[0].mxu0 %v5859
    %v5861 = vpop.f32.mrb[0].mxu0
    %v5862 = vadd.f32 %v5765, %v5861
    %v5863 = vpop.f32.mrb[0].mxu0
    %5864 = vdwg.mxu0
    %5865 = vmatprep.subr.mxu0 0.0
    %v5866 = vand.u32 %v5658, 4294901760
    %v5867 = vsub.f32 %v5658, %v5866
    %5868 = vmatpush1.msra.mxu0 %v5867
    %5869 = vmatprep.subr.mxu0 0.0
    %v5870 = vand.u32 %v5659, 4294901760
    %v5871 = vsub.f32 %v5659, %v5870
    %5872 = vmatpush1.msra.mxu0 %v5871
    %5873 = vmatprep.subr.mxu0 0.0
    %v5874 = vand.u32 %v5660, 4294901760
    %v5875 = vsub.f32 %v5660, %v5874
    %5876 = vmatpush1.msra.mxu0 %v5875
    %5877 = vmatprep.subr.mxu0 0.0
    %v5878 = vand.u32 %v5661, 4294901760
    %v5879 = vsub.f32 %v5661, %v5878
    %5880 = vmatpush1.msra.mxu0 %v5879
    %5881 = vmatprep.subr.mxu0 0.0
    %5882 = vmatpush1.msra.mxu0 0.0
    %5883 = vmatprep.subr.mxu0 0.0
    %5884 = vmatpush1.msra.mxu0 0.0
    %5885 = vmatprep.subr.mxu0 0.0
    %5886 = vmatpush1.msra.mxu0 0.0
    %5887 = vmatprep.subr.mxu0 0.0
    %5888 = vmatpush1.msra.mxu0 0.0
    %5889 = vmatprep.subr.mxu0 0.0
    %5890 = vmatpush1.msra.mxu0 0.0
    %5891 = vmatprep.subr.mxu0 0.0
    %5892 = vmatpush1.msra.mxu0 0.0
    %5893 = vmatprep.subr.mxu0 0.0
    %5894 = vmatpush1.msra.mxu0 0.0
    %5895 = vmatprep.subr.mxu0 0.0
    %5896 = vmatpush1.msra.mxu0 0.0
    %5897 = vmatprep.subr.mxu0 0.0
    %5898 = vmatpush1.msra.mxu0 0.0
    %5899 = vmatprep.subr.mxu0 0.0
    %5900 = vmatpush1.msra.mxu0 0.0
    %5901 = vmatprep.subr.mxu0 0.0
    %5902 = vmatpush1.msra.mxu0 0.0
    %5903 = vmatprep.subr.mxu0 0.0
    %5904 = vmatpush1.msra.mxu0 0.0
    %5905 = vmatprep.subr.mxu0 0.0
    %5906 = vmatpush1.msra.mxu0 0.0
    %5907 = vmatprep.subr.mxu0 0.0
    %5908 = vmatpush1.msra.mxu0 0.0
    %5909 = vmatprep.subr.mxu0 0.0
    %5910 = vmatpush1.msra.mxu0 0.0
    %5911 = vmatprep.subr.mxu0 0.0
    %5912 = vmatpush1.msra.mxu0 0.0
    %5913 = vmatprep.subr.mxu0 0.0
    %5914 = vmatpush1.msra.mxu0 0.0
    %5915 = vmatprep.subr.mxu0 0.0
    %5916 = vmatpush1.msra.mxu0 0.0
    %5917 = vmatprep.subr.mxu0 0.0
    %5918 = vmatpush1.msra.mxu0 0.0
    %5919 = vmatprep.subr.mxu0 0.0
    %5920 = vmatpush1.msra.mxu0 0.0
    %5921 = vmatprep.subr.mxu0 0.0
    %5922 = vmatpush1.msra.mxu0 0.0
    %5923 = vmatprep.subr.mxu0 0.0
    %5924 = vmatpush1.msra.mxu0 0.0
    %5925 = vmatprep.subr.mxu0 0.0
    %5926 = vmatpush1.msra.mxu0 0.0
    %5927 = vmatprep.subr.mxu0 0.0
    %5928 = vmatpush1.msra.mxu0 0.0
    %5929 = vmatprep.subr.mxu0 0.0
    %5930 = vmatpush1.msra.mxu0 0.0
    %5931 = vmatprep.subr.mxu0 0.0
    %5932 = vmatpush1.msra.mxu0 0.0
    %5933 = vmatprep.subr.mxu0 0.0
    %5934 = vmatpush1.msra.mxu0 0.0
    %5935 = vmatprep.subr.mxu0 0.0
    %5936 = vmatpush1.msra.mxu0 0.0
    %5937 = vmatprep.mubr.f32.mxu0 0.0
    %v5938 = vand.u32 %v5675, 4294901760
    %v5939 = vsub.f32 %v5675, %v5938
    %5940 = vmatmul.mubr.f32.gmra.mrb[0].mxu0 %v5939
    %v5941 = vpop.f32.mrb[0].mxu0
    %v5942 = vadd.f32 %v5856, %v5941
    %v5943 = vpop.f32.mrb[0].mxu0
    %5944 = vmatprep.mubr.f32.mxu0 0.0
    %v5945 = vand.u32 %v5677, 4294901760
    %v5946 = vsub.f32 %v5677, %v5945
    %5947 = vmatmul.mubr.f32.gmra.mrb[0].mxu0 %v5946
    %v5948 = vpop.f32.mrb[0].mxu0
    %v5949 = vadd.f32 %v5862, %v5948
    %v5950 = vpop.f32.mrb[0].mxu0
    %5951 = vdwg.mxu0
    %5952 = vmatprep.subr.mxu0 0.0
    %v5953 = vand.u32 %v5658, 4294901760
    %5954 = vmatpush1.msra.mxu0 %v5953
    %5955 = vmatprep.subr.mxu0 0.0
    %v5956 = vand.u32 %v5659, 4294901760
    %5957 = vmatpush1.msra.mxu0 %v5956
    %5958 = vmatprep.subr.mxu0 0.0
    %v5959 = vand.u32 %v5660, 4294901760
    %5960 = vmatpush1.msra.mxu0 %v5959
    %5961 = vmatprep.subr.mxu0 0.0
    %v5962 = vand.u32 %v5661, 4294901760
    %5963 = vmatpush1.msra.mxu0 %v5962
    %5964 = vmatprep.subr.mxu0 0.0
    %5965 = vmatpush1.msra.mxu0 0.0
    %5966 = vmatprep.subr.mxu0 0.0
    %5967 = vmatpush1.msra.mxu0 0.0
    %5968 = vmatprep.subr.mxu0 0.0
    %5969 = vmatpush1.msra.mxu0 0.0
    %5970 = vmatprep.subr.mxu0 0.0
    %5971 = vmatpush1.msra.mxu0 0.0
    %5972 = vmatprep.subr.mxu0 0.0
    %5973 = vmatpush1.msra.mxu0 0.0
    %5974 = vmatprep.subr.mxu0 0.0
    %5975 = vmatpush1.msra.mxu0 0.0
    %5976 = vmatprep.subr.mxu0 0.0
    %5977 = vmatpush1.msra.mxu0 0.0
    %5978 = vmatprep.subr.mxu0 0.0
    %5979 = vmatpush1.msra.mxu0 0.0
    %5980 = vmatprep.subr.mxu0 0.0
    %5981 = vmatpush1.msra.mxu0 0.0
    %5982 = vmatprep.subr.mxu0 0.0
    %5983 = vmatpush1.msra.mxu0 0.0
    %5984 = vmatprep.subr.mxu0 0.0
    %5985 = vmatpush1.msra.mxu0 0.0
    %5986 = vmatprep.subr.mxu0 0.0
    %5987 = vmatpush1.msra.mxu0 0.0
    %5988 = vmatprep.subr.mxu0 0.0
    %5989 = vmatpush1.msra.mxu0 0.0
    %5990 = vmatprep.subr.mxu0 0.0
    %5991 = vmatpush1.msra.mxu0 0.0
    %5992 = vmatprep.subr.mxu0 0.0
    %5993 = vmatpush1.msra.mxu0 0.0
    %5994 = vmatprep.subr.mxu0 0.0
    %5995 = vmatpush1.msra.mxu0 0.0
    %5996 = vmatprep.subr.mxu0 0.0
    %5997 = vmatpush1.msra.mxu0 0.0
    %5998 = vmatprep.subr.mxu0 0.0
    %5999 = vmatpush1.msra.mxu0 0.0
    %6000 = vmatprep.subr.mxu0 0.0
    %6001 = vmatpush1.msra.mxu0 0.0
    %6002 = vmatprep.subr.mxu0 0.0
    %6003 = vmatpush1.msra.mxu0 0.0
    %6004 = vmatprep.subr.mxu0 0.0
    %6005 = vmatpush1.msra.mxu0 0.0
    %6006 = vmatprep.subr.mxu0 0.0
    %6007 = vmatpush1.msra.mxu0 0.0
    %6008 = vmatprep.subr.mxu0 0.0
    %6009 = vmatpush1.msra.mxu0 0.0
    %6010 = vmatprep.subr.mxu0 0.0
    %6011 = vmatpush1.msra.mxu0 0.0
    %6012 = vmatprep.subr.mxu0 0.0
    %6013 = vmatpush1.msra.mxu0 0.0
    %6014 = vmatprep.subr.mxu0 0.0
    %6015 = vmatpush1.msra.mxu0 0.0
    %6016 = vmatprep.subr.mxu0 0.0
    %6017 = vmatpush1.msra.mxu0 0.0
    %6018 = vmatprep.subr.mxu0 0.0
    %6019 = vmatpush1.msra.mxu0 0.0
    %6020 = vmatprep.mubr.f32.mxu0 0.0
    %v6021 = vand.u32 %v5675, 4294901760
    %v6022 = vsub.f32 %v5675, %v6021
    %v6023 = vand.u32 %v6022, 4294901760
    %6024 = vmatmul.mubr.f32.gmra.mrb[0].mxu0 %v6023
    %v6025 = vpop.f32.mrb[0].mxu0
    %v6026 = vadd.f32 %v5942, %v6025
    %v6027 = vpop.f32.mrb[0].mxu0
    %6028 = vmatprep.mubr.f32.mxu0 0.0
    %v6029 = vand.u32 %v5677, 4294901760
    %v6030 = vsub.f32 %v5677, %v6029
    %v6031 = vand.u32 %v6030, 4294901760
    %6032 = vmatmul.mubr.f32.gmra.mrb[0].mxu0 %v6031
    %v6033 = vpop.f32.mrb[0].mxu0
    %v6034 = vadd.f32 %v5949, %v6033
    %v6035 = vpop.f32.mrb[0].mxu0
    %6036 = vdwg.mxu0
    %6037 = vmatprep.subr.mxu0 0.0
    %v6038 = vand.u32 %v5658, 4294901760
    %v6039 = vsub.f32 %v5658, %v6038
    %v6040 = vand.u32 %v6039, 4294901760
    %6041 = vmatpush1.msra.mxu0 %v6040
    %6042 = vmatprep.subr.mxu0 0.0
    %v6043 = vand.u32 %v5659, 4294901760
    %v6044 = vsub.f32 %v5659, %v6043
    %v6045 = vand.u32 %v6044, 4294901760
    %6046 = vmatpush1.msra.mxu0 %v6045
    %6047 = vmatprep.subr.mxu0 0.0
    %v6048 = vand.u32 %v5660, 4294901760
    %v6049 = vsub.f32 %v5660, %v6048
    %v6050 = vand.u32 %v6049, 4294901760
    %6051 = vmatpush1.msra.mxu0 %v6050
    %6052 = vmatprep.subr.mxu0 0.0
    %v6053 = vand.u32 %v5661, 4294901760
    %v6054 = vsub.f32 %v5661, %v6053
    %v6055 = vand.u32 %v6054, 4294901760
    %6056 = vmatpush1.msra.mxu0 %v6055
    %6057 = vmatprep.subr.mxu0 0.0
    %6058 = vmatpush1.msra.mxu0 0.0
    %6059 = vmatprep.subr.mxu0 0.0
    %6060 = vmatpush1.msra.mxu0 0.0
    %6061 = vmatprep.subr.mxu0 0.0
    %6062 = vmatpush1.msra.mxu0 0.0
    %6063 = vmatprep.subr.mxu0 0.0
    %6064 = vmatpush1.msra.mxu0 0.0
    %6065 = vmatprep.subr.mxu0 0.0
    %6066 = vmatpush1.msra.mxu0 0.0
    %6067 = vmatprep.subr.mxu0 0.0
    %6068 = vmatpush1.msra.mxu0 0.0
    %6069 = vmatprep.subr.mxu0 0.0
    %6070 = vmatpush1.msra.mxu0 0.0
    %6071 = vmatprep.subr.mxu0 0.0
    %6072 = vmatpush1.msra.mxu0 0.0
    %6073 = vmatprep.subr.mxu0 0.0
    %6074 = vmatpush1.msra.mxu0 0.0
    %6075 = vmatprep.subr.mxu0 0.0
    %6076 = vmatpush1.msra.mxu0 0.0
    %6077 = vmatprep.subr.mxu0 0.0
    %6078 = vmatpush1.msra.mxu0 0.0
    %6079 = vmatprep.subr.mxu0 0.0
    %6080 = vmatpush1.msra.mxu0 0.0
    %6081 = vmatprep.subr.mxu0 0.0
    %6082 = vmatpush1.msra.mxu0 0.0
    %6083 = vmatprep.subr.mxu0 0.0
    %6084 = vmatpush1.msra.mxu0 0.0
    %6085 = vmatprep.subr.mxu0 0.0
    %6086 = vmatpush1.msra.mxu0 0.0
    %6087 = vmatprep.subr.mxu0 0.0
    %6088 = vmatpush1.msra.mxu0 0.0
    %6089 = vmatprep.subr.mxu0 0.0
    %6090 = vmatpush1.msra.mxu0 0.0
    %6091 = vmatprep.subr.mxu0 0.0
    %6092 = vmatpush1.msra.mxu0 0.0
    %6093 = vmatprep.subr.mxu0 0.0
    %6094 = vmatpush1.msra.mxu0 0.0
    %6095 = vmatprep.subr.mxu0 0.0
    %6096 = vmatpush1.msra.mxu0 0.0
    %6097 = vmatprep.subr.mxu0 0.0
    %6098 = vmatpush1.msra.mxu0 0.0
    %6099 = vmatprep.subr.mxu0 0.0
    %6100 = vmatpush1.msra.mxu0 0.0
    %6101 = vmatprep.subr.mxu0 0.0
    %6102 = vmatpush1.msra.mxu0 0.0
    %6103 = vmatprep.subr.mxu0 0.0
    %6104 = vmatpush1.msra.mxu0 0.0
    %6105 = vmatprep.subr.mxu0 0.0
    %6106 = vmatpush1.msra.mxu0 0.0
    %6107 = vmatprep.subr.mxu0 0.0
    %6108 = vmatpush1.msra.mxu0 0.0
    %6109 = vmatprep.subr.mxu0 0.0
    %6110 = vmatpush1.msra.mxu0 0.0
    %6111 = vmatprep.subr.mxu0 0.0
    %6112 = vmatpush1.msra.mxu0 0.0
    %6113 = vmatprep.mubr.f32.mxu0 0.0
    %v6114 = vand.u32 %v5675, 4294901760
    %6115 = vmatmul.mubr.f32.gmra.mrb[0].mxu0 %v6114
    %v6116 = vpop.f32.mrb[0].mxu0
    %v6117 = vadd.f32 %v6026, %v6116
    %v6118 = vpop.f32.mrb[0].mxu0
    %6119 = vmatprep.mubr.f32.mxu0 0.0
    %v6120 = vand.u32 %v5677, 4294901760
    %6121 = vmatmul.mubr.f32.gmra.mrb[0].mxu0 %v6120
    %v6122 = vpop.f32.mrb[0].mxu0
    %v6123 = vadd.f32 %v6034, %v6122
    %v6124 = vpop.f32.mrb[0].mxu0
    %6125 = vdwg.mxu0
    %6126 = vmatprep.subr.mxu0 0.0
    %v6127 = vand.u32 %v5658, 4294901760
    %6128 = vmatpush1.msra.mxu0 %v6127
    %6129 = vmatprep.subr.mxu0 0.0
    %v6130 = vand.u32 %v5659, 4294901760
    %6131 = vmatpush1.msra.mxu0 %v6130
    %6132 = vmatprep.subr.mxu0 0.0
    %v6133 = vand.u32 %v5660, 4294901760
    %6134 = vmatpush1.msra.mxu0 %v6133
    %6135 = vmatprep.subr.mxu0 0.0
    %v6136 = vand.u32 %v5661, 4294901760
    %6137 = vmatpush1.msra.mxu0 %v6136
    %6138 = vmatprep.subr.mxu0 0.0
    %6139 = vmatpush1.msra.mxu0 0.0
    %6140 = vmatprep.subr.mxu0 0.0
    %6141 = vmatpush1.msra.mxu0 0.0
    %6142 = vmatprep.subr.mxu0 0.0
    %6143 = vmatpush1.msra.mxu0 0.0
    %6144 = vmatprep.subr.mxu0 0.0
    %6145 = vmatpush1.msra.mxu0 0.0
    %6146 = vmatprep.subr.mxu0 0.0
    %6147 = vmatpush1.msra.mxu0 0.0
    %6148 = vmatprep.subr.mxu0 0.0
    %6149 = vmatpush1.msra.mxu0 0.0
    %6150 = vmatprep.subr.mxu0 0.0
    %6151 = vmatpush1.msra.mxu0 0.0
    %6152 = vmatprep.subr.mxu0 0.0
    %6153 = vmatpush1.msra.mxu0 0.0
    %6154 = vmatprep.subr.mxu0 0.0
    %6155 = vmatpush1.msra.mxu0 0.0
    %6156 = vmatprep.subr.mxu0 0.0
    %6157 = vmatpush1.msra.mxu0 0.0
    %6158 = vmatprep.subr.mxu0 0.0
    %6159 = vmatpush1.msra.mxu0 0.0
    %6160 = vmatprep.subr.mxu0 0.0
    %6161 = vmatpush1.msra.mxu0 0.0
    %6162 = vmatprep.subr.mxu0 0.0
    %6163 = vmatpush1.msra.mxu0 0.0
    %6164 = vmatprep.subr.mxu0 0.0
    %6165 = vmatpush1.msra.mxu0 0.0
    %6166 = vmatprep.subr.mxu0 0.0
    %6167 = vmatpush1.msra.mxu0 0.0
    %6168 = vmatprep.subr.mxu0 0.0
    %6169 = vmatpush1.msra.mxu0 0.0
    %6170 = vmatprep.subr.mxu0 0.0
    %6171 = vmatpush1.msra.mxu0 0.0
    %6172 = vmatprep.subr.mxu0 0.0
    %6173 = vmatpush1.msra.mxu0 0.0
    %6174 = vmatprep.subr.mxu0 0.0
    %6175 = vmatpush1.msra.mxu0 0.0
    %6176 = vmatprep.subr.mxu0 0.0
    %6177 = vmatpush1.msra.mxu0 0.0
    %6178 = vmatprep.subr.mxu0 0.0
    %6179 = vmatpush1.msra.mxu0 0.0
    %6180 = vmatprep.subr.mxu0 0.0
    %6181 = vmatpush1.msra.mxu0 0.0
    %6182 = vmatprep.subr.mxu0 0.0
    %6183 = vmatpush1.msra.mxu0 0.0
    %6184 = vmatprep.subr.mxu0 0.0
    %6185 = vmatpush1.msra.mxu0 0.0
    %6186 = vmatprep.subr.mxu0 0.0
    %6187 = vmatpush1.msra.mxu0 0.0
    %6188 = vmatprep.subr.mxu0 0.0
    %6189 = vmatpush1.msra.mxu0 0.0
    %6190 = vmatprep.subr.mxu0 0.0
    %6191 = vmatpush1.msra.mxu0 0.0
    %6192 = vmatprep.subr.mxu0 0.0
    %6193 = vmatpush1.msra.mxu0 0.0
    %6194 = vmatprep.mubr.f32.mxu0 0.0
    %v6195 = vand.u32 %v5675, 4294901760
    %6196 = vmatmul.mubr.f32.gmra.mrb[0].mxu0 %v6195
    %v6197 = vpop.f32.mrb[0].mxu0
    %v6198 = vadd.f32 %v6117, %v6197
    %v6199 = vpop.f32.mrb[0].mxu0
    %6200 = vmatprep.mubr.f32.mxu0 0.0
    %v6201 = vand.u32 %v5677, 4294901760
    %6202 = vmatmul.mubr.f32.gmra.mrb[0].mxu0 %v6201
    %v6203 = vpop.f32.mrb[0].mxu0
    %v6204 = vadd.f32 %v6123, %v6203
    %v6205 = vpop.f32.mrb[0].mxu0
    %6206 = vdwg.mxu0
    %vm6207 = vcmask 64512
    %6208 = vst.msk [vmem:[#allocation8] sm:$0xff] %vm6207, %v6198
    %6209 = vst.msk [vmem:[#allocation8 + $0x8] sm:$0xff] %vm6207, %v6204
    %6210 = vrot.lane.b32.xlu0 %v5387, 32
    %v6211 = vpop.permute.xlu0 %6210
    %vm6213 = vcmask 254976
    %6214 = vst.msk [vmem:[#allocation9] sm:$0x3] %vm6213, %v6211
    %6216 = vrot.lane.b32.xlu0 %v5381, 96
    %v6217 = vpop.permute.xlu0 %6216
    %6219 = vst.msk [vmem:[#allocation11] sm:$0x3] %vm6213, %v6217
    // Predicated region
    $region54: #{tpu_custom_call.1} parent=1 // pred_check
      _
    $region55: #{tpu_custom_call.1} parent=1 // pred_check_branch
      %6221 = sbr.rel (0) target = $region57
    $region56: #{tpu_custom_call.1} parent=1 // pred_region
      %s6223 = ssub.s32 256, 256
      %6224 = vsyncadd [#allocation4], %s6223
      %s6225 = sshll.u32 [#allocation8], 4
      %s6226 = int_to_ptr.vmem [resolvable:$true] %s6225
      %6231 = dma.vmem_to_hbm [thread:$0]  %s6226, 256, %s10, [#allocation4], 128, 128, 8
    $region57: #{tpu_custom_call.1} parent=1 // pred_fallthru
      _
    // Predicated region
    $region58: #{tpu_custom_call.1} parent=1 // pred_check
      _
    $region59: #{tpu_custom_call.1} parent=1 // pred_check_branch
      %6233 = sbr.rel (0) target = $region61
    $region60: #{tpu_custom_call.1} parent=1 // pred_region
      %s6235 = ssub.s32 32, 32
      %6236 = vsyncadd [#allocation10], %s6235
      %s6238 = sshll.u32 [#allocation9], 4
      %s6239 = int_to_ptr.vmem [resolvable:$true] %s6238
      %6241 = dma.vmem_to_hbm [thread:$0]  %s6239, 32, %s11, [#allocation10]
    $region61: #{tpu_custom_call.1} parent=1 // pred_fallthru
      _
    // Predicated region
    $region62: #{tpu_custom_call.1} parent=1 // pred_check
      _
    $region63: #{tpu_custom_call.1} parent=1 // pred_check_branch
      %6243 = sbr.rel (0) target = $region65
    $region64: #{tpu_custom_call.1} parent=1 // pred_region
      %s6245 = ssub.s32 32, 32
      %6246 = vsyncadd [#allocation10], %s6245
      %s6248 = sshll.u32 [#allocation11], 4
      %s6249 = int_to_ptr.vmem [resolvable:$true] %s6248
      %6251 = dma.vmem_to_hbm [thread:$0]  %s6249, 32, %s12, [#allocation10]
    $region65: #{tpu_custom_call.1} parent=1 // pred_fallthru
      _
    // Predicated region
    $region66: #{tpu_custom_call.1} parent=1 // pred_check
      _
    $region67: #{tpu_custom_call.1} parent=1 // pred_check_branch
      %6253 = sbr.rel (0) target = $region69
    $region68: #{tpu_custom_call.1} parent=1 // pred_region
      %6254 = dma.done [#allocation4], 256
    $region69: #{tpu_custom_call.1} parent=1 // pred_fallthru
      _
    // Predicated region
    $region70: #{tpu_custom_call.1} parent=1 // pred_check
      _
    $region71: #{tpu_custom_call.1} parent=1 // pred_check_branch
      %6256 = sbr.rel (0) target = $region73
    $region72: #{tpu_custom_call.1} parent=1 // pred_region
      %6257 = dma.done [#allocation10], 32
    $region73: #{tpu_custom_call.1} parent=1 // pred_fallthru
      _
    // Predicated region
    $region74: #{tpu_custom_call.1} parent=1 // pred_check
      _
    $region75: #{tpu_custom_call.1} parent=1 // pred_check_branch
      %6259 = sbr.rel (0) target = $region77
    $region76: #{tpu_custom_call.1} parent=1 // pred_region
      %6260 = dma.done [#allocation10], 32
    $region77: #{tpu_custom_call.1} parent=1 // pred_fallthru
      _
    %6261 = vsyncpa [#allocation3], 1
    %6262 = vsyncpa [#allocation6], 1
    %6263 = vsyncpa [#allocation4], 1
    %6264 = vsyncpa [#allocation10], 1

</llo_original>
